<compile_context>
chip_gen: v5e
topology: v5e:2x2
jax: 0.10.0
libtpu: 0.0.40
codegen_flags: <defaults>
</compile_context>

<pallas_src>
import math

import jax
import jax.numpy as jnp
from jax import lax
from jax.experimental import pallas as pl
from jax.experimental.pallas import tpu as pltpu


# ----------------------------------------------------------------------------
# Fused decoder kernel (one batch element per grid step)
# ----------------------------------------------------------------------------
def _decoder_kernel(x_ref, w1_ref, b1_ref, w2_ref, b2_ref, w3_ref, b3_ref, o_ref):
    """Fused 3-layer ConvTranspose1d decoder, polyphase form.

    x_ref : (1, L, 64)    input latents, channels-last
    w1_ref: (4, 64, 512)  deconv1 taps, w1_ref[t] == W1[:, :, t]
    w2_ref: (4, 512, 256) deconv2 taps
    w3_ref: (5, 256, 48)  deconv3 taps packed into 12 output phases
                          (sources: z0, z1, z2, z3, shift_up(z0))
    o_ref : (1, L, 48)    12 output phases x 4 channels, interleaved outside
    """

    def mm(a, w):
        return jnp.dot(a, w, preferred_element_type=jnp.float32)

    def shift_down(a):  # out[i] = a[i - 1], zero first row
        return jnp.concatenate([jnp.zeros_like(a[:1]), a[:-1]], axis=0)

    def shift_up(a):    # out[i] = a[i + 1], zero last row
        return jnp.concatenate([a[1:], jnp.zeros_like(a[:1])], axis=0)

    x = x_ref[0]                                            # (L, 64)

    # ---- deconv1 (s=2, p=1): y[2q] = x[q]W1 + x[q-1]W3 ; y[2q+1] = x[q]W2 + x[q+1]W0
    b1 = b1_ref[...]
    e1 = jnp.maximum(mm(x, w1_ref[1]) + mm(shift_down(x), w1_ref[3]) + b1, 0.0)
    o1 = jnp.maximum(mm(x, w1_ref[2]) + mm(shift_up(x), w1_ref[0]) + b1, 0.0)

    # ---- deconv2 (s=2, p=1): z[4q+r] written directly in terms of e1 / o1
    b2 = b2_ref[...]
    z0 = jnp.maximum(mm(e1, w2_ref[1]) + mm(shift_down(o1), w2_ref[3]) + b2, 0.0)
    z1 = jnp.maximum(mm(o1, w2_ref[0]) + mm(e1, w2_ref[2]) + b2, 0.0)
    z2 = jnp.maximum(mm(o1, w2_ref[1]) + mm(e1, w2_ref[3]) + b2, 0.0)
    z3 = jnp.maximum(mm(shift_up(e1), w2_ref[0]) + mm(o1, w2_ref[2]) + b2, 0.0)

    # ---- deconv3 (s=3, p=2): 12 output phases packed along the lane dim
    y = (mm(z0, w3_ref[0]) + mm(z1, w3_ref[1]) + mm(z2, w3_ref[2])
         + mm(z3, w3_ref[3]) + mm(shift_up(z0), w3_ref[4]) + b3_ref[...])
    o_ref[0] = y


# ----------------------------------------------------------------------------
# Parameter packing (done once, outside the forward pass)
# ----------------------------------------------------------------------------
def pack_params(p):
    """Pre-pack PyTorch-layout ConvTranspose1d weights for the fused kernel."""
    w1, b1 = p["w1"], p["b1"]            # (64, 512, 4), (512,)
    w2, b2 = p["w2"], p["b2"]            # (512, 256, 4), (256,)
    w3, b3 = p["w3"], p["b3"]            # (256, 4, 4),   (4,)

    w1p = jnp.transpose(w1, (2, 0, 1)).astype(jnp.float32)   # (4, 64, 512)
    w2p = jnp.transpose(w2, (2, 0, 1)).astype(jnp.float32)   # (4, 512, 256)
    u = jnp.transpose(w3, (2, 0, 1)).astype(jnp.float32)     # (4, 256, 4)

    cin3 = w3.shape[0]
    a = jnp.zeros((5, cin3, 48), jnp.float32)
    # Final output index o = 12*q + j, j = 3*r + r3 with
    #   r  = phase of the deconv2 output z (z[4q+r] = z_r[q])
    #   r3 = phase of the stride-3 deconv3
    #   y[3u]   = z[u]   U2
    #   y[3u+1] = z[u+1] U0 + z[u] U3
    #   y[3u+2] = z[u+1] U1
    # Source index 4 == shift_up(z0)  (i.e. z[u+1] when r == 3).
    for r in range(4):
        nxt = r + 1 if r < 3 else 4
        j0, j1, j2 = 3 * r, 3 * r + 1, 3 * r + 2
        a = a.at[r,   :, 4 * j0:4 * j0 + 4].set(u[2])
        a = a.at[nxt, :, 4 * j1:4 * j1 + 4].set(u[0])
        a = a.at[r,   :, 4 * j1:4 * j1 + 4].set(u[3])
        a = a.at[nxt, :, 4 * j2:4 * j2 + 4].set(u[1])

    return dict(
        w1=w1p, b1=b1.reshape(1, -1).astype(jnp.float32),
        w2=w2p, b2=b2.reshape(1, -1).astype(jnp.float32),
        w3=a, b3=jnp.tile(b3.reshape(1, 4), (1, 12)).astype(jnp.float32))


# ----------------------------------------------------------------------------
# Forward wrapper
# ----------------------------------------------------------------------------
def decoder_forward(x_ncl, packed):
    """x_ncl: (B, 64, L) as in PyTorch (NCL).  Returns (B, 4, (4*L - 1) * 3)."""
    B, cin, L = x_ncl.shape
    x = jnp.transpose(x_ncl, (0, 2, 1)).astype(jnp.float32)        # (B, L, 64)

    out48 = pl.pallas_call(
        _decoder_kernel,
        out_shape=jax.ShapeDtypeStruct((B, L, 48), jnp.float32),
        grid=(B,),
        in_specs=[
            pl.BlockSpec((1, L, cin), lambda b: (b, 0, 0)),
            pl.BlockSpec(packed["w1"].shape, lambda b: (0, 0, 0)),
            pl.BlockSpec(packed["b1"].shape, lambda b: (0, 0)),
            pl.BlockSpec(packed["w2"].shape, lambda b: (0, 0, 0)),
            pl.BlockSpec(packed["b2"].shape, lambda b: (0, 0)),
            pl.BlockSpec(packed["w3"].shape, lambda b: (0, 0, 0)),
            pl.BlockSpec(packed["b3"].shape, lambda b: (0, 0)),
        ],
        out_specs=pl.BlockSpec((1, L, 48), lambda b: (b, 0, 0)),
        compiler_params=pltpu.CompilerParams(
            dimension_semantics=("parallel",)),
    )(x, packed["w1"], packed["b1"], packed["w2"], packed["b2"],
      packed["w3"], packed["b3"])

    l_out = (4 * L - 1) * 3
    y = out48.reshape(B, L * 12, 4)[:, :l_out, :]    # interleave the 12 phases
    return jnp.transpose(y, (0, 2, 1))               # (B, 4, L_out)


# ----------------------------------------------------------------------------
# Pure-JAX reference (PyTorch ConvTranspose1d semantics) for validation
# ----------------------------------------------------------------------------
def _ref_conv_transpose1d(x, w, b, stride, padding):
    k = w.shape[-1]
    kern = jnp.flip(jnp.transpose(w, (1, 0, 2)), axis=-1)          # (Cout, Cin, K)
    y = lax.conv_general_dilated(
        x, kern, window_strides=(1,),
        padding=[(k - 1 - padding, k - 1 - padding)],
        lhs_dilation=(stride,), rhs_dilation=(1,),
        dimension_numbers=("NCH", "OIH", "NCH"),
        precision=lax.Precision.HIGHEST)
    return y + b[None, :, None]


def decoder_reference(x, p):
    h = jax.nn.relu(_ref_conv_transpose1d(x, p["w1"], p["b1"], 2, 1))
    h = jax.nn.relu(_ref_conv_transpose1d(h, p["w2"], p["b2"], 2, 1))
    return _ref_conv_transpose1d(h, p["w3"], p["b3"], 3, 2)


# ----------------------------------------------------------------------------
# Deterministic parameters
# ----------------------------------------------------------------------------
def init_params(key):
    def deconv(k, cin, cout, ksz):
        kw, kb = jax.random.split(k)
        bound = 1.0 / math.sqrt(cin * ksz)
        w = jax.random.uniform(kw, (cin, cout, ksz), jnp.float32, -bound, bound)
        b = jax.random.uniform(kb, (cout,), jnp.float32, -bound, bound)
        return w, b

    k1, k2, k3 = jax.random.split(key, 3)
    w1, b1 = deconv(k1, 64, 512, 4)
    w2, b2 = deconv(k2, 512, 256, 4)
    w3, b3 = deconv(k3, 256, 4, 4)
    return dict(w1=w1, b1=b1, w2=w2, b2=b2, w3=w3, b3=b3)


if __name__ == "__main__":
    key = jax.random.PRNGKey(0)
    kp, kx = jax.random.split(key)
    raw = init_params(kp)
    packed = pack_params(raw)

    # VQRNA latent: batch=2, 64 channels, length 17  ->  reconstruction length 201
    x = jax.random.normal(kx, (2, 64, 17), jnp.float32)

    fwd = jax.jit(decoder_forward)
    out = jax.block_until_ready(fwd(x, packed))
    assert out.shape == (2, 4, 201), out.shape

    ref = jax.block_until_ready(decoder_reference(x, raw))
    err = float(jnp.max(jnp.abs(out - ref)))
    scale = float(jnp.max(jnp.abs(ref)))
    assert err <= 1e-2 * scale + 1e-5, f"max abs err {err} (ref scale {scale})"
    print("KERNEL_OK")
</pallas_src>

<mosaic_0001>
module attributes {stable_mosaic.version = 11 : i64} {
  func.func @_decoder_kernel(%arg0: i32, %arg1: memref<1x17x64xf32, #tpu.memory_space<vmem>>, %arg2: memref<4x64x512xf32, #tpu.memory_space<vmem>>, %arg3: memref<1x512xf32, #tpu.memory_space<vmem>>, %arg4: memref<4x512x256xf32, #tpu.memory_space<vmem>>, %arg5: memref<1x256xf32, #tpu.memory_space<vmem>>, %arg6: memref<5x256x48xf32, #tpu.memory_space<vmem>>, %arg7: memref<1x48xf32, #tpu.memory_space<vmem>>, %arg8: memref<1x17x48xf32, #tpu.memory_space<vmem>>) attributes {dimension_semantics = [#tpu.dimension_semantics<parallel>], iteration_bounds = array<i64: 2>, scalar_prefetch = 0 : i64, scratch_operands = 0 : i64, tpu.core_type = #tpu.core_type<tc>, window_params = [{transform_indices = @transform_0, window_bounds = array<i64: 1, 17, 64>}, {pipeline_mode = #tpu.pipeline_mode<synchronous>, transform_indices = @transform_1, window_bounds = array<i64: 4, 64, 512>}, {pipeline_mode = #tpu.pipeline_mode<synchronous>, transform_indices = @transform_2, window_bounds = array<i64: 1, 512>}, {pipeline_mode = #tpu.pipeline_mode<synchronous>, transform_indices = @transform_3, window_bounds = array<i64: 4, 512, 256>}, {pipeline_mode = #tpu.pipeline_mode<synchronous>, transform_indices = @transform_4, window_bounds = array<i64: 1, 256>}, {pipeline_mode = #tpu.pipeline_mode<synchronous>, transform_indices = @transform_5, window_bounds = array<i64: 5, 256, 48>}, {pipeline_mode = #tpu.pipeline_mode<synchronous>, transform_indices = @transform_6, window_bounds = array<i64: 1, 48>}, {transform_indices = @transform_7, window_bounds = array<i64: 1, 17, 48>}]} {
    %c0 = arith.constant 0 : index
    %c0_0 = arith.constant 0 : index
    %c0_1 = arith.constant 0 : index
    %0 = vector.load %arg1[%c0, %c0_0, %c0_1] : memref<1x17x64xf32, #tpu.memory_space<vmem>>, vector<1x17x64xf32>
    %1 = vector.shape_cast %0 : vector<1x17x64xf32> to vector<17x64xf32>
    %c0_2 = arith.constant 0 : index
    %c0_3 = arith.constant 0 : index
    %2 = vector.load %arg3[%c0_2, %c0_3] : memref<1x512xf32, #tpu.memory_space<vmem>>, vector<1x512xf32>
    %c1 = arith.constant 1 : index
    %c0_4 = arith.constant 0 : index
    %c0_5 = arith.constant 0 : index
    %3 = vector.load %arg2[%c1, %c0_4, %c0_5] : memref<4x64x512xf32, #tpu.memory_space<vmem>>, vector<1x64x512xf32>
    %4 = vector.shape_cast %3 : vector<1x64x512xf32> to vector<64x512xf32>
    %cst = arith.constant dense<0.000000e+00> : vector<17x512xf32>
    %5 = tpu.matmul %1, %4, %cst {dimension_numbers = #tpu.dot_dimension_numbers<[1], [0], [0], [1], [0, 0, 1, 1], [], []>} : vector<17x64xf32>, vector<64x512xf32>, vector<17x512xf32> -> vector<17x512xf32>
    %cst_6 = arith.constant 0.000000e+00 : f32
    %6 = vector.broadcast %cst_6 : f32 to vector<1x64xf32>
    %7 = vector.extract_strided_slice %1 {offsets = [0, 0], sizes = [16, 64], strides = [1, 1]} : vector<17x64xf32> to vector<16x64xf32>
    %8 = tpu.concatenate %6, %7 in 0 : vector<1x64xf32>, vector<16x64xf32> -> vector<17x64xf32>
    %c3 = arith.constant 3 : index
    %c0_7 = arith.constant 0 : index
    %c0_8 = arith.constant 0 : index
    %9 = vector.load %arg2[%c3, %c0_7, %c0_8] : memref<4x64x512xf32, #tpu.memory_space<vmem>>, vector<1x64x512xf32>
    %10 = vector.shape_cast %9 : vector<1x64x512xf32> to vector<64x512xf32>
    %cst_9 = arith.constant dense<0.000000e+00> : vector<17x512xf32>
    %11 = tpu.matmul %8, %10, %cst_9 {dimension_numbers = #tpu.dot_dimension_numbers<[1], [0], [0], [1], [0, 0, 1, 1], [], []>} : vector<17x64xf32>, vector<64x512xf32>, vector<17x512xf32> -> vector<17x512xf32>
    %12 = arith.addf %5, %11 : vector<17x512xf32>
    %13 = vector.broadcast %2 : vector<1x512xf32> to vector<17x512xf32>
    %14 = arith.addf %12, %13 : vector<17x512xf32>
    %cst_10 = arith.constant 0.000000e+00 : f32
    %15 = vector.broadcast %cst_10 : f32 to vector<17x512xf32>
    %16 = arith.maximumf %14, %15 : vector<17x512xf32>
    %c2 = arith.constant 2 : index
    %c0_11 = arith.constant 0 : index
    %c0_12 = arith.constant 0 : index
    %17 = vector.load %arg2[%c2, %c0_11, %c0_12] : memref<4x64x512xf32, #tpu.memory_space<vmem>>, vector<1x64x512xf32>
    %18 = vector.shape_cast %17 : vector<1x64x512xf32> to vector<64x512xf32>
    %cst_13 = arith.constant dense<0.000000e+00> : vector<17x512xf32>
    %19 = tpu.matmul %1, %18, %cst_13 {dimension_numbers = #tpu.dot_dimension_numbers<[1], [0], [0], [1], [0, 0, 1, 1], [], []>} : vector<17x64xf32>, vector<64x512xf32>, vector<17x512xf32> -> vector<17x512xf32>
    %20 = vector.extract_strided_slice %1 {offsets = [1, 0], sizes = [16, 64], strides = [1, 1]} : vector<17x64xf32> to vector<16x64xf32>
    %cst_14 = arith.constant 0.000000e+00 : f32
    %21 = vector.broadcast %cst_14 : f32 to vector<1x64xf32>
    %22 = tpu.concatenate %20, %21 in 0 : vector<16x64xf32>, vector<1x64xf32> -> vector<17x64xf32>
    %c0_15 = arith.constant 0 : index
    %c0_16 = arith.constant 0 : index
    %c0_17 = arith.constant 0 : index
    %23 = vector.load %arg2[%c0_15, %c0_16, %c0_17] : memref<4x64x512xf32, #tpu.memory_space<vmem>>, vector<1x64x512xf32>
    %24 = vector.shape_cast %23 : vector<1x64x512xf32> to vector<64x512xf32>
    %cst_18 = arith.constant dense<0.000000e+00> : vector<17x512xf32>
    %25 = tpu.matmul %22, %24, %cst_18 {dimension_numbers = #tpu.dot_dimension_numbers<[1], [0], [0], [1], [0, 0, 1, 1], [], []>} : vector<17x64xf32>, vector<64x512xf32>, vector<17x512xf32> -> vector<17x512xf32>
    %26 = arith.addf %19, %25 : vector<17x512xf32>
    %27 = vector.broadcast %2 : vector<1x512xf32> to vector<17x512xf32>
    %28 = arith.addf %26, %27 : vector<17x512xf32>
    %cst_19 = arith.constant 0.000000e+00 : f32
    %29 = vector.broadcast %cst_19 : f32 to vector<17x512xf32>
    %30 = arith.maximumf %28, %29 : vector<17x512xf32>
    %c0_20 = arith.constant 0 : index
    %c0_21 = arith.constant 0 : index
    %31 = vector.load %arg5[%c0_20, %c0_21] : memref<1x256xf32, #tpu.memory_space<vmem>>, vector<1x256xf32>
    %c1_22 = arith.constant 1 : index
    %c0_23 = arith.constant 0 : index
    %c0_24 = arith.constant 0 : index
    %32 = vector.load %arg4[%c1_22, %c0_23, %c0_24] : memref<4x512x256xf32, #tpu.memory_space<vmem>>, vector<1x512x256xf32>
    %33 = vector.shape_cast %32 : vector<1x512x256xf32> to vector<512x256xf32>
    %cst_25 = arith.constant dense<0.000000e+00> : vector<17x256xf32>
    %34 = tpu.matmul %16, %33, %cst_25 {dimension_numbers = #tpu.dot_dimension_numbers<[1], [0], [0], [1], [0, 0, 1, 1], [], []>} : vector<17x512xf32>, vector<512x256xf32>, vector<17x256xf32> -> vector<17x256xf32>
    %cst_26 = arith.constant 0.000000e+00 : f32
    %35 = vector.broadcast %cst_26 : f32 to vector<1x512xf32>
    %36 = vector.extract_strided_slice %30 {offsets = [0, 0], sizes = [16, 512], strides = [1, 1]} : vector<17x512xf32> to vector<16x512xf32>
    %37 = tpu.concatenate %35, %36 in 0 : vector<1x512xf32>, vector<16x512xf32> -> vector<17x512xf32>
    %c3_27 = arith.constant 3 : index
    %c0_28 = arith.constant 0 : index
    %c0_29 = arith.constant 0 : index
    %38 = vector.load %arg4[%c3_27, %c0_28, %c0_29] : memref<4x512x256xf32, #tpu.memory_space<vmem>>, vector<1x512x256xf32>
    %39 = vector.shape_cast %38 : vector<1x512x256xf32> to vector<512x256xf32>
    %cst_30 = arith.constant dense<0.000000e+00> : vector<17x256xf32>
    %40 = tpu.matmul %37, %39, %cst_30 {dimension_numbers = #tpu.dot_dimension_numbers<[1], [0], [0], [1], [0, 0, 1, 1], [], []>} : vector<17x512xf32>, vector<512x256xf32>, vector<17x256xf32> -> vector<17x256xf32>
    %41 = arith.addf %34, %40 : vector<17x256xf32>
    %42 = vector.broadcast %31 : vector<1x256xf32> to vector<17x256xf32>
    %43 = arith.addf %41, %42 : vector<17x256xf32>
    %cst_31 = arith.constant 0.000000e+00 : f32
    %44 = vector.broadcast %cst_31 : f32 to vector<17x256xf32>
    %45 = arith.maximumf %43, %44 : vector<17x256xf32>
    %c0_32 = arith.constant 0 : index
    %c0_33 = arith.constant 0 : index
    %c0_34 = arith.constant 0 : index
    %46 = vector.load %arg4[%c0_32, %c0_33, %c0_34] : memref<4x512x256xf32, #tpu.memory_space<vmem>>, vector<1x512x256xf32>
    %47 = vector.shape_cast %46 : vector<1x512x256xf32> to vector<512x256xf32>
    %cst_35 = arith.constant dense<0.000000e+00> : vector<17x256xf32>
    %48 = tpu.matmul %30, %47, %cst_35 {dimension_numbers = #tpu.dot_dimension_numbers<[1], [0], [0], [1], [0, 0, 1, 1], [], []>} : vector<17x512xf32>, vector<512x256xf32>, vector<17x256xf32> -> vector<17x256xf32>
    %c2_36 = arith.constant 2 : index
    %c0_37 = arith.constant 0 : index
    %c0_38 = arith.constant 0 : index
    %49 = vector.load %arg4[%c2_36, %c0_37, %c0_38] : memref<4x512x256xf32, #tpu.memory_space<vmem>>, vector<1x512x256xf32>
    %50 = vector.shape_cast %49 : vector<1x512x256xf32> to vector<512x256xf32>
    %cst_39 = arith.constant dense<0.000000e+00> : vector<17x256xf32>
    %51 = tpu.matmul %16, %50, %cst_39 {dimension_numbers = #tpu.dot_dimension_numbers<[1], [0], [0], [1], [0, 0, 1, 1], [], []>} : vector<17x512xf32>, vector<512x256xf32>, vector<17x256xf32> -> vector<17x256xf32>
    %52 = arith.addf %48, %51 : vector<17x256xf32>
    %53 = vector.broadcast %31 : vector<1x256xf32> to vector<17x256xf32>
    %54 = arith.addf %52, %53 : vector<17x256xf32>
    %cst_40 = arith.constant 0.000000e+00 : f32
    %55 = vector.broadcast %cst_40 : f32 to vector<17x256xf32>
    %56 = arith.maximumf %54, %55 : vector<17x256xf32>
    %c1_41 = arith.constant 1 : index
    %c0_42 = arith.constant 0 : index
    %c0_43 = arith.constant 0 : index
    %57 = vector.load %arg4[%c1_41, %c0_42, %c0_43] : memref<4x512x256xf32, #tpu.memory_space<vmem>>, vector<1x512x256xf32>
    %58 = vector.shape_cast %57 : vector<1x512x256xf32> to vector<512x256xf32>
    %cst_44 = arith.constant dense<0.000000e+00> : vector<17x256xf32>
    %59 = tpu.matmul %30, %58, %cst_44 {dimension_numbers = #tpu.dot_dimension_numbers<[1], [0], [0], [1], [0, 0, 1, 1], [], []>} : vector<17x512xf32>, vector<512x256xf32>, vector<17x256xf32> -> vector<17x256xf32>
    %c3_45 = arith.constant 3 : index
    %c0_46 = arith.constant 0 : index
    %c0_47 = arith.constant 0 : index
    %60 = vector.load %arg4[%c3_45, %c0_46, %c0_47] : memref<4x512x256xf32, #tpu.memory_space<vmem>>, vector<1x512x256xf32>
    %61 = vector.shape_cast %60 : vector<1x512x256xf32> to vector<512x256xf32>
    %cst_48 = arith.constant dense<0.000000e+00> : vector<17x256xf32>
    %62 = tpu.matmul %16, %61, %cst_48 {dimension_numbers = #tpu.dot_dimension_numbers<[1], [0], [0], [1], [0, 0, 1, 1], [], []>} : vector<17x512xf32>, vector<512x256xf32>, vector<17x256xf32> -> vector<17x256xf32>
    %63 = arith.addf %59, %62 : vector<17x256xf32>
    %64 = vector.broadcast %31 : vector<1x256xf32> to vector<17x256xf32>
    %65 = arith.addf %63, %64 : vector<17x256xf32>
    %cst_49 = arith.constant 0.000000e+00 : f32
    %66 = vector.broadcast %cst_49 : f32 to vector<17x256xf32>
    %67 = arith.maximumf %65, %66 : vector<17x256xf32>
    %68 = vector.extract_strided_slice %16 {offsets = [1, 0], sizes = [16, 512], strides = [1, 1]} : vector<17x512xf32> to vector<16x512xf32>
    %cst_50 = arith.constant 0.000000e+00 : f32
    %69 = vector.broadcast %cst_50 : f32 to vector<1x512xf32>
    %70 = tpu.concatenate %68, %69 in 0 : vector<16x512xf32>, vector<1x512xf32> -> vector<17x512xf32>
    %c0_51 = arith.constant 0 : index
    %c0_52 = arith.constant 0 : index
    %c0_53 = arith.constant 0 : index
    %71 = vector.load %arg4[%c0_51, %c0_52, %c0_53] : memref<4x512x256xf32, #tpu.memory_space<vmem>>, vector<1x512x256xf32>
    %72 = vector.shape_cast %71 : vector<1x512x256xf32> to vector<512x256xf32>
    %cst_54 = arith.constant dense<0.000000e+00> : vector<17x256xf32>
    %73 = tpu.matmul %70, %72, %cst_54 {dimension_numbers = #tpu.dot_dimension_numbers<[1], [0], [0], [1], [0, 0, 1, 1], [], []>} : vector<17x512xf32>, vector<512x256xf32>, vector<17x256xf32> -> vector<17x256xf32>
    %c2_55 = arith.constant 2 : index
    %c0_56 = arith.constant 0 : index
    %c0_57 = arith.constant 0 : index
    %74 = vector.load %arg4[%c2_55, %c0_56, %c0_57] : memref<4x512x256xf32, #tpu.memory_space<vmem>>, vector<1x512x256xf32>
    %75 = vector.shape_cast %74 : vector<1x512x256xf32> to vector<512x256xf32>
    %cst_58 = arith.constant dense<0.000000e+00> : vector<17x256xf32>
    %76 = tpu.matmul %30, %75, %cst_58 {dimension_numbers = #tpu.dot_dimension_numbers<[1], [0], [0], [1], [0, 0, 1, 1], [], []>} : vector<17x512xf32>, vector<512x256xf32>, vector<17x256xf32> -> vector<17x256xf32>
    %77 = arith.addf %73, %76 : vector<17x256xf32>
    %78 = vector.broadcast %31 : vector<1x256xf32> to vector<17x256xf32>
    %79 = arith.addf %77, %78 : vector<17x256xf32>
    %cst_59 = arith.constant 0.000000e+00 : f32
    %80 = vector.broadcast %cst_59 : f32 to vector<17x256xf32>
    %81 = arith.maximumf %79, %80 : vector<17x256xf32>
    %c0_60 = arith.constant 0 : index
    %c0_61 = arith.constant 0 : index
    %c0_62 = arith.constant 0 : index
    %82 = vector.load %arg6[%c0_60, %c0_61, %c0_62] : memref<5x256x48xf32, #tpu.memory_space<vmem>>, vector<1x256x48xf32>
    %83 = vector.shape_cast %82 : vector<1x256x48xf32> to vector<256x48xf32>
    %cst_63 = arith.constant dense<0.000000e+00> : vector<17x48xf32>
    %84 = tpu.matmul %45, %83, %cst_63 {dimension_numbers = #tpu.dot_dimension_numbers<[1], [0], [0], [1], [0, 0, 1, 1], [], []>} : vector<17x256xf32>, vector<256x48xf32>, vector<17x48xf32> -> vector<17x48xf32>
    %c1_64 = arith.constant 1 : index
    %c0_65 = arith.constant 0 : index
    %c0_66 = arith.constant 0 : index
    %85 = vector.load %arg6[%c1_64, %c0_65, %c0_66] : memref<5x256x48xf32, #tpu.memory_space<vmem>>, vector<1x256x48xf32>
    %86 = vector.shape_cast %85 : vector<1x256x48xf32> to vector<256x48xf32>
    %cst_67 = arith.constant dense<0.000000e+00> : vector<17x48xf32>
    %87 = tpu.matmul %56, %86, %cst_67 {dimension_numbers = #tpu.dot_dimension_numbers<[1], [0], [0], [1], [0, 0, 1, 1], [], []>} : vector<17x256xf32>, vector<256x48xf32>, vector<17x48xf32> -> vector<17x48xf32>
    %88 = arith.addf %84, %87 : vector<17x48xf32>
    %c2_68 = arith.constant 2 : index
    %c0_69 = arith.constant 0 : index
    %c0_70 = arith.constant 0 : index
    %89 = vector.load %arg6[%c2_68, %c0_69, %c0_70] : memref<5x256x48xf32, #tpu.memory_space<vmem>>, vector<1x256x48xf32>
    %90 = vector.shape_cast %89 : vector<1x256x48xf32> to vector<256x48xf32>
    %cst_71 = arith.constant dense<0.000000e+00> : vector<17x48xf32>
    %91 = tpu.matmul %67, %90, %cst_71 {dimension_numbers = #tpu.dot_dimension_numbers<[1], [0], [0], [1], [0, 0, 1, 1], [], []>} : vector<17x256xf32>, vector<256x48xf32>, vector<17x48xf32> -> vector<17x48xf32>
    %92 = arith.addf %88, %91 : vector<17x48xf32>
    %c3_72 = arith.constant 3 : index
    %c0_73 = arith.constant 0 : index
    %c0_74 = arith.constant 0 : index
    %93 = vector.load %arg6[%c3_72, %c0_73, %c0_74] : memref<5x256x48xf32, #tpu.memory_space<vmem>>, vector<1x256x48xf32>
    %94 = vector.shape_cast %93 : vector<1x256x48xf32> to vector<256x48xf32>
    %cst_75 = arith.constant dense<0.000000e+00> : vector<17x48xf32>
    %95 = tpu.matmul %81, %94, %cst_75 {dimension_numbers = #tpu.dot_dimension_numbers<[1], [0], [0], [1], [0, 0, 1, 1], [], []>} : vector<17x256xf32>, vector<256x48xf32>, vector<17x48xf32> -> vector<17x48xf32>
    %96 = arith.addf %92, %95 : vector<17x48xf32>
    %97 = vector.extract_strided_slice %45 {offsets = [1, 0], sizes = [16, 256], strides = [1, 1]} : vector<17x256xf32> to vector<16x256xf32>
    %cst_76 = arith.constant 0.000000e+00 : f32
    %98 = vector.broadcast %cst_76 : f32 to vector<1x256xf32>
    %99 = tpu.concatenate %97, %98 in 0 : vector<16x256xf32>, vector<1x256xf32> -> vector<17x256xf32>
    %c4 = arith.constant 4 : index
    %c0_77 = arith.constant 0 : index
    %c0_78 = arith.constant 0 : index
    %100 = vector.load %arg6[%c4, %c0_77, %c0_78] : memref<5x256x48xf32, #tpu.memory_space<vmem>>, vector<1x256x48xf32>
    %101 = vector.shape_cast %100 : vector<1x256x48xf32> to vector<256x48xf32>
    %cst_79 = arith.constant dense<0.000000e+00> : vector<17x48xf32>
    %102 = tpu.matmul %99, %101, %cst_79 {dimension_numbers = #tpu.dot_dimension_numbers<[1], [0], [0], [1], [0, 0, 1, 1], [], []>} : vector<17x256xf32>, vector<256x48xf32>, vector<17x48xf32> -> vector<17x48xf32>
    %103 = arith.addf %96, %102 : vector<17x48xf32>
    %c0_80 = arith.constant 0 : index
    %c0_81 = arith.constant 0 : index
    %104 = vector.load %arg7[%c0_80, %c0_81] : memref<1x48xf32, #tpu.memory_space<vmem>>, vector<1x48xf32>
    %105 = vector.broadcast %104 : vector<1x48xf32> to vector<17x48xf32>
    %106 = arith.addf %103, %105 : vector<17x48xf32>
    %c0_82 = arith.constant 0 : index
    %c0_83 = arith.constant 0 : index
    %c0_84 = arith.constant 0 : index
    %107 = vector.load %arg8[%c0_82, %c0_83, %c0_84] : memref<1x17x48xf32, #tpu.memory_space<vmem>>, vector<1x17x48xf32>
    %108 = vector.shape_cast %107 : vector<1x17x48xf32> to vector<17x48xf32>
    %109 = vector.shape_cast %106 : vector<17x48xf32> to vector<1x17x48xf32>
    tpu.vector_store %arg8[%c0_82, %c0_83, %c0_84], %109 {strides = array<i32>} : memref<1x17x48xf32, #tpu.memory_space<vmem>>, vector<1x17x48xf32>,
    return
  }
  func.func @transform_0(%arg0: i32) -> (i32, i32, i32) {
    %c0_i32 = arith.constant 0 : i32
    %c0_i32_0 = arith.constant 0 : i32
    %c0_i32_1 = arith.constant 0 : i32
    return %arg0, %c0_i32, %c0_i32_0 : i32, i32, i32
  }
  func.func @transform_1(%arg0: i32) -> (i32, i32, i32) {
    %c0_i32 = arith.constant 0 : i32
    %c0_i32_0 = arith.constant 0 : i32
    %c0_i32_1 = arith.constant 0 : i32
    %c0_i32_2 = arith.constant 0 : i32
    return %c0_i32, %c0_i32_0, %c0_i32_1 : i32, i32, i32
  }
  func.func @transform_2(%arg0: i32) -> (i32, i32) {
    %c0_i32 = arith.constant 0 : i32
    %c0_i32_0 = arith.constant 0 : i32
    %c0_i32_1 = arith.constant 0 : i32
    return %c0_i32, %c0_i32_0 : i32, i32
  }
  func.func @transform_3(%arg0: i32) -> (i32, i32, i32) {
    %c0_i32 = arith.constant 0 : i32
    %c0_i32_0 = arith.constant 0 : i32
    %c0_i32_1 = arith.constant 0 : i32
    %c0_i32_2 = arith.constant 0 : i32
    return %c0_i32, %c0_i32_0, %c0_i32_1 : i32, i32, i32
  }
  func.func @transform_4(%arg0: i32) -> (i32, i32) {
    %c0_i32 = arith.constant 0 : i32
    %c0_i32_0 = arith.constant 0 : i32
    %c0_i32_1 = arith.constant 0 : i32
    return %c0_i32, %c0_i32_0 : i32, i32
  }
  func.func @transform_5(%arg0: i32) -> (i32, i32, i32) {
    %c0_i32 = arith.constant 0 : i32
    %c0_i32_0 = arith.constant 0 : i32
    %c0_i32_1 = arith.constant 0 : i32
    %c0_i32_2 = arith.constant 0 : i32
    return %c0_i32, %c0_i32_0, %c0_i32_1 : i32, i32, i32
  }
  func.func @transform_6(%arg0: i32) -> (i32, i32) {
    %c0_i32 = arith.constant 0 : i32
    %c0_i32_0 = arith.constant 0 : i32
    %c0_i32_1 = arith.constant 0 : i32
    return %c0_i32, %c0_i32_0 : i32, i32
  }
  func.func @transform_7(%arg0: i32) -> (i32, i32, i32) {
    %c0_i32 = arith.constant 0 : i32
    %c0_i32_0 = arith.constant 0 : i32
    %c0_i32_1 = arith.constant 0 : i32
    return %arg0, %c0_i32, %c0_i32_0 : i32, i32, i32
  }
}

</mosaic_0001>

<llo_original>
// kernel: decoder_forward.1
$region0: #{decoder_forward.1}
  #allocation0 [shape = 'u32[]', space=smem, size = 0x4, offset = 0x4, fixed_abs, tag = 'smem constant byte address 0x4 - core index']
  #allocation1 [shape = 'u32[72,128]{1,0:T(1,128)}', space=vmem, size = 0x9000, scoped, tag = 'internal scratch']
  %s0 = inlined_call_operand.vmem [shape: f32[2,17,64], index: 0, kind: input, shape index: {}]
  %s1 = inlined_call_operand.hbm [shape: f32[4,64,512], index: 1, kind: input, shape index: {}]
  %s2 = inlined_call_operand.hbm [shape: f32[1,512], index: 2, kind: input, shape index: {}]
  %s3 = inlined_call_operand.hbm [shape: f32[4,512,256], index: 3, kind: input, shape index: {}]
  %s4 = inlined_call_operand.hbm [shape: f32[1,256], index: 4, kind: input, shape index: {}]
  %s5 = inlined_call_operand.vmem [shape: f32[5,256,48], index: 5, kind: input, shape index: {}]
  %s6 = inlined_call_operand.hbm [shape: f32[1,48], index: 6, kind: input, shape index: {}]
  %s7 = inlined_call_operand.vmem [shape: f32[2,17,48], index: 7, kind: output, shape index: {}]
  %s8 = sld [smem:[#allocation0]]
  $region81: #{decoder_forward.1} parent=0
    _
  %s10 = ssub.s32 1, %s8
  %s11 = scalar_select 0, %s10, %s8
  $region1: #{decoder_forward.1} parent=0
    #allocation2 [shape = 'u8[524288]{0}', space=vmem, size = 0x80000, scoped, tag = 'input window, operand 1, single buffered']
    #allocation3 [shape = 's32[2]{0}', space=sflag, size = 0x8, scoped, tag = 'scoped memory for decoder_forward.1']
    #allocation4 [shape = 'u8[2048]{0}', space=vmem, size = 0x800, scoped, tag = 'input window, operand 2, single buffered']
    #allocation5 [shape = 's32[1]{0}', space=sflag, size = 0x4, scoped, tag = 'scoped memory for decoder_forward.1']
    #allocation6 [shape = 'u8[2097152]{0}', space=vmem, size = 0x200000, scoped, tag = 'input window, operand 3, single buffered']
    #allocation7 [shape = 'u8[1024]{0}', space=vmem, size = 0x400, scoped, tag = 'input window, operand 4, single buffered']
    #allocation8 [shape = 's32[1]{0}', space=sflag, size = 0x4, scoped, tag = 'scoped memory for decoder_forward.1']
    #allocation9 [shape = 'u8[512]{0}', space=vmem, size = 0x400, scoped, tag = 'input window, operand 6, single buffered']
    %12 = vsyncpa [#allocation3], 0
    %13 = vsyncpa [#allocation5], 0
    %14 = vsyncpa [#allocation8], 0
    loop: start=0, step=1, limit=4
    $region2: #{decoder_forward.1} parent=1 // loop_pre_header
      _
    $region3: #{decoder_forward.1} parent=1 // loop_header
      %s16 = sphi 0, %s20
      %p17 = scmp.ge.s32.totalorder %s16, 4
      %s26 = sphi 0, %s28
      %s29 = sphi 0, %s26
      %s30 = sphi 0, %s29
      %s46 = sphi 0, %s30
      %s50 = sphi 0, %s50
      %s52 = sphi 0, %s50
      %s53 = sphi 0, %s52
      %s67 = sphi 0, %s53
      %s71 = sphi 0, %s71
      %s73 = sphi 0, %s71
      %s74 = sphi 0, %s73
      %s88 = sphi 0, %s74
      %s92 = sphi 0, %s92
      %s94 = sphi 0, %s92
      %s95 = sphi 0, %s94
      %s109 = sphi 0, %s95
      %s113 = sphi 0, %s113
      %s115 = sphi 0, %s113
      %s116 = sphi 0, %s115
      %s130 = sphi 0, %s116
      %s134 = sphi 0, %s134
      %s136 = sphi 0, %s134
      %s137 = sphi 0, %s136
      %s151 = sphi 0, %s137
      %s155 = sphi 0, %s155
      %s157 = sphi 0, %s155
      %s158 = sphi 0, %s157
      %s172 = sphi 0, %s158
      %s178 = sphi 0, %s180
      %s181 = sphi 0, %s178
      %s182 = sphi 0, %s181
      %s198 = sphi 0, %s182
    $region4: #{decoder_forward.1} parent=1 // loop_header_branch
      %19 = sbr.rel (%p17) target = $region8
    $region5: #{decoder_forward.1} parent=1 // loop_body
      %s21 = ssub.s32 %s16, 1
      %s22 = ssub.s32 %s16, 2
      %s23 = sadd.s32 %s16, 1
      %s24 = ssub.s32 %s16, %s23
      %p25 = scmp.eq.s32.totalorder %s24, 0
      %s27 = sadd.s32 %s26, 1
      %s28 = scalar_select %p25, %s26, %s27
      %p31 = pneg %p25
      %p32 = scmp.eq.s32.totalorder %s16, 1
      %p33 = por %p31, %p32
      %p34 = scmp.ne.s32.totalorder %s26, %s29
      %p35 = scmp.eq.s32.totalorder %s16, 0
      %p36 = por %p34, %p35
      %p37 = scmp.ne.s32.totalorder %s26, %s29
      %p38 = scmp.eq.s32.totalorder %s21, 1
      %p39 = por %p37, %p38
      %p40 = scmp.ne.s32.totalorder %s29, %s30
      %p41 = scmp.eq.s32.totalorder %s21, 0
      %p42 = por %p40, %p41
      %p43 = scmp.ne.s32.totalorder %s29, %s30
      %p44 = scmp.eq.s32.totalorder %s22, 1
      %p45 = por %p43, %p44
      %p47 = scmp.ne.s32.totalorder %s30, %s46
      %p48 = scmp.eq.s32.totalorder %s22, 0
      %p49 = por %p47, %p48
      %s51 = sadd.s32 %s50, 1
      %p54 = scmp.eq.s32.totalorder %s16, 1
      %p55 = scmp.ne.s32.totalorder %s50, %s52
      %p56 = scmp.eq.s32.totalorder %s16, 0
      %p57 = por %p55, %p56
      %p58 = scmp.ne.s32.totalorder %s50, %s52
      %p59 = scmp.eq.s32.totalorder %s21, 1
      %p60 = por %p58, %p59
      %p61 = scmp.ne.s32.totalorder %s52, %s53
      %p62 = scmp.eq.s32.totalorder %s21, 0
      %p63 = por %p61, %p62
      %p64 = scmp.ne.s32.totalorder %s52, %s53
      %p65 = scmp.eq.s32.totalorder %s22, 1
      %p66 = por %p64, %p65
      %p68 = scmp.ne.s32.totalorder %s53, %s67
      %p69 = scmp.eq.s32.totalorder %s22, 0
      %p70 = por %p68, %p69
      %s72 = sadd.s32 %s71, 1
      %p75 = scmp.eq.s32.totalorder %s16, 1
      %p76 = scmp.ne.s32.totalorder %s71, %s73
      %p77 = scmp.eq.s32.totalorder %s16, 0
      %p78 = por %p76, %p77
      %p79 = scmp.ne.s32.totalorder %s71, %s73
      %p80 = scmp.eq.s32.totalorder %s21, 1
      %p81 = por %p79, %p80
      %p82 = scmp.ne.s32.totalorder %s73, %s74
      %p83 = scmp.eq.s32.totalorder %s21, 0
      %p84 = por %p82, %p83
      %p85 = scmp.ne.s32.totalorder %s73, %s74
      %p86 = scmp.eq.s32.totalorder %s22, 1
      %p87 = por %p85, %p86
      %p89 = scmp.ne.s32.totalorder %s74, %s88
      %p90 = scmp.eq.s32.totalorder %s22, 0
      %p91 = por %p89, %p90
      %s93 = sadd.s32 %s92, 1
      %p96 = scmp.eq.s32.totalorder %s16, 1
      %p97 = scmp.ne.s32.totalorder %s92, %s94
      %p98 = scmp.eq.s32.totalorder %s16, 0
      %p99 = por %p97, %p98
      %p100 = scmp.ne.s32.totalorder %s92, %s94
      %p101 = scmp.eq.s32.totalorder %s21, 1
      %p102 = por %p100, %p101
      %p103 = scmp.ne.s32.totalorder %s94, %s95
      %p104 = scmp.eq.s32.totalorder %s21, 0
      %p105 = por %p103, %p104
      %p106 = scmp.ne.s32.totalorder %s94, %s95
      %p107 = scmp.eq.s32.totalorder %s22, 1
      %p108 = por %p106, %p107
      %p110 = scmp.ne.s32.totalorder %s95, %s109
      %p111 = scmp.eq.s32.totalorder %s22, 0
      %p112 = por %p110, %p111
      %s114 = sadd.s32 %s113, 1
      %p117 = scmp.eq.s32.totalorder %s16, 1
      %p118 = scmp.ne.s32.totalorder %s113, %s115
      %p119 = scmp.eq.s32.totalorder %s16, 0
      %p120 = por %p118, %p119
      %p121 = scmp.ne.s32.totalorder %s113, %s115
      %p122 = scmp.eq.s32.totalorder %s21, 1
      %p123 = por %p121, %p122
      %p124 = scmp.ne.s32.totalorder %s115, %s116
      %p125 = scmp.eq.s32.totalorder %s21, 0
      %p126 = por %p124, %p125
      %p127 = scmp.ne.s32.totalorder %s115, %s116
      %p128 = scmp.eq.s32.totalorder %s22, 1
      %p129 = por %p127, %p128
      %p131 = scmp.ne.s32.totalorder %s116, %s130
      %p132 = scmp.eq.s32.totalorder %s22, 0
      %p133 = por %p131, %p132
      %s135 = sadd.s32 %s134, 1
      %p138 = scmp.eq.s32.totalorder %s16, 1
      %p139 = scmp.ne.s32.totalorder %s134, %s136
      %p140 = scmp.eq.s32.totalorder %s16, 0
      %p141 = por %p139, %p140
      %p142 = scmp.ne.s32.totalorder %s134, %s136
      %p143 = scmp.eq.s32.totalorder %s21, 1
      %p144 = por %p142, %p143
      %p145 = scmp.ne.s32.totalorder %s136, %s137
      %p146 = scmp.eq.s32.totalorder %s21, 0
      %p147 = por %p145, %p146
      %p148 = scmp.ne.s32.totalorder %s136, %s137
      %p149 = scmp.eq.s32.totalorder %s22, 1
      %p150 = por %p148, %p149
      %p152 = scmp.ne.s32.totalorder %s137, %s151
      %p153 = scmp.eq.s32.totalorder %s22, 0
      %p154 = por %p152, %p153
      %s156 = sadd.s32 %s155, 1
      %p159 = scmp.eq.s32.totalorder %s16, 1
      %p160 = scmp.ne.s32.totalorder %s155, %s157
      %p161 = scmp.eq.s32.totalorder %s16, 0
      %p162 = por %p160, %p161
      %p163 = scmp.ne.s32.totalorder %s155, %s157
      %p164 = scmp.eq.s32.totalorder %s21, 1
      %p165 = por %p163, %p164
      %p166 = scmp.ne.s32.totalorder %s157, %s158
      %p167 = scmp.eq.s32.totalorder %s21, 0
      %p168 = por %p166, %p167
      %p169 = scmp.ne.s32.totalorder %s157, %s158
      %p170 = scmp.eq.s32.totalorder %s22, 1
      %p171 = por %p169, %p170
      %p173 = scmp.ne.s32.totalorder %s158, %s172
      %p174 = scmp.eq.s32.totalorder %s22, 0
      %p175 = por %p173, %p174
      %s176 = ssub.s32 %s16, %s23
      %p177 = scmp.eq.s32.totalorder %s176, 0
      %s179 = sadd.s32 %s178, 1
      %s180 = scalar_select %p177, %s178, %s179
      %p183 = pneg %p177
      %p184 = scmp.eq.s32.totalorder %s16, 1
      %p185 = por %p183, %p184
      %p186 = scmp.ne.s32.totalorder %s178, %s181
      %p187 = scmp.eq.s32.totalorder %s16, 0
      %p188 = por %p186, %p187
      %p189 = scmp.ne.s32.totalorder %s178, %s181
      %p190 = scmp.eq.s32.totalorder %s21, 1
      %p191 = por %p189, %p190
      %p192 = scmp.ne.s32.totalorder %s181, %s182
      %p193 = scmp.eq.s32.totalorder %s21, 0
      %p194 = por %p192, %p193
      %p195 = scmp.ne.s32.totalorder %s181, %s182
      %p196 = scmp.eq.s32.totalorder %s22, 1
      %p197 = por %p195, %p196
      %p199 = scmp.ne.s32.totalorder %s182, %s198
      %p200 = scmp.eq.s32.totalorder %s22, 0
      %p201 = por %p199, %p200
      %p202 = scmp.le.s32.totalorder 1, %s16
      %p203 = scmp.lt.s32.totalorder %s16, 3
      %p204 = pnand %p202, %p203
      %p205 = pneg %p204
      // Predicated region
      $region9: #{decoder_forward.1} parent=5 // pred_check
        _
      $region10: #{decoder_forward.1} parent=5 // pred_check_branch
        %207 = sbr.rel (%p204) target = $region12
      $region11: #{decoder_forward.1} parent=5 // pred_region
        %s208 = ssub.s32 %s16, 1
        // Predicated region
        $region13: #{decoder_forward.1} parent=11 // pred_check
          %p209 = pneg %p63
        $region14: #{decoder_forward.1} parent=11 // pred_check_branch
          %211 = sbr.rel (%p209) target = $region16
        $region15: #{decoder_forward.1} parent=11 // pred_region
          %213 = vsyncadd [#allocation3], 0
          %s214 = sshll.u32 %s1, 4
          %s215 = int_to_ptr.hbm [resolvable:$true] %s214
          %s216 = sshll.u32 [#allocation2], 4
          %s217 = int_to_ptr.vmem [resolvable:$true] %s216
          %222 = dma.hbm_to_vmem [thread:$0]  %s215, 16384, %s217, [#allocation3], 512, 512, 32
        $region16: #{decoder_forward.1} parent=11 // pred_fallthru
          _
        // Predicated region
        $region17: #{decoder_forward.1} parent=11 // pred_check
          %p223 = pneg %p84
        $region18: #{decoder_forward.1} parent=11 // pred_check_branch
          %225 = sbr.rel (%p223) target = $region20
        $region19: #{decoder_forward.1} parent=11 // pred_region
          %227 = vsyncadd [#allocation5], 0
          %s229 = sshll.u32 %s2, 4
          %s230 = int_to_ptr.hbm [resolvable:$true] %s229
          %s231 = sshll.u32 [#allocation4], 4
          %s232 = int_to_ptr.vmem [resolvable:$true] %s231
          %234 = dma.hbm_to_vmem [thread:$0]  %s230, 64, %s232, [#allocation5]
        $region20: #{decoder_forward.1} parent=11 // pred_fallthru
          _
        // Predicated region
        $region21: #{decoder_forward.1} parent=11 // pred_check
          %p235 = pneg %p105
        $region22: #{decoder_forward.1} parent=11 // pred_check_branch
          %237 = sbr.rel (%p235) target = $region24
        $region23: #{decoder_forward.1} parent=11 // pred_region
          %239 = vsyncadd [#allocation5], 0
          %s240 = sshll.u32 %s3, 4
          %s241 = int_to_ptr.hbm [resolvable:$true] %s240
          %s242 = sshll.u32 [#allocation6], 4
          %s243 = int_to_ptr.vmem [resolvable:$true] %s242
          %248 = dma.hbm_to_vmem [thread:$0]  %s241, 65536, %s243, [#allocation5], 256, 256, 16
        $region24: #{decoder_forward.1} parent=11 // pred_fallthru
          _
        // Predicated region
        $region25: #{decoder_forward.1} parent=11 // pred_check
          %p249 = pneg %p126
        $region26: #{decoder_forward.1} parent=11 // pred_check_branch
          %251 = sbr.rel (%p249) target = $region28
        $region27: #{decoder_forward.1} parent=11 // pred_region
          %253 = vsyncadd [#allocation8], 0
          %s255 = sshll.u32 %s4, 4
          %s256 = int_to_ptr.hbm [resolvable:$true] %s255
          %s257 = sshll.u32 [#allocation7], 4
          %s258 = int_to_ptr.vmem [resolvable:$true] %s257
          %260 = dma.hbm_to_vmem [thread:$0]  %s256, 32, %s258, [#allocation8]
        $region28: #{decoder_forward.1} parent=11 // pred_fallthru
          _
        // Predicated region
        $region29: #{decoder_forward.1} parent=11 // pred_check
          %p261 = pneg %p147
        $region30: #{decoder_forward.1} parent=11 // pred_check_branch
          %263 = sbr.rel (%p261) target = $region32
        $region31: #{decoder_forward.1} parent=11 // pred_region
          _
        $region32: #{decoder_forward.1} parent=11 // pred_fallthru
          _
        // Predicated region
        $region33: #{decoder_forward.1} parent=11 // pred_check
          %p264 = pneg %p168
        $region34: #{decoder_forward.1} parent=11 // pred_check_branch
          %266 = sbr.rel (%p264) target = $region36
        $region35: #{decoder_forward.1} parent=11 // pred_region
          %268 = vsyncadd [#allocation8], 0
          %s270 = sshll.u32 %s6, 4
          %s271 = int_to_ptr.hbm [resolvable:$true] %s270
          %s272 = sshll.u32 [#allocation9], 4
          %s273 = int_to_ptr.vmem [resolvable:$true] %s272
          %275 = dma.hbm_to_vmem [thread:$0]  %s271, 16, %s273, [#allocation8]
        $region36: #{decoder_forward.1} parent=11 // pred_fallthru
          _
      $region12: #{decoder_forward.1} parent=5 // pred_fallthru
        _
      %p276 = scmp.lt.s32.totalorder %s16, 2
      // Predicated region
      $region37: #{decoder_forward.1} parent=5 // pred_check
        %p277 = pneg %p276
      $region38: #{decoder_forward.1} parent=5 // pred_check_branch
        %279 = sbr.rel (%p277) target = $region40
      $region39: #{decoder_forward.1} parent=5 // pred_region
        // Predicated region
        $region41: #{decoder_forward.1} parent=39 // pred_check
          %p280 = pneg %p36
        $region42: #{decoder_forward.1} parent=39 // pred_check_branch
          %282 = sbr.rel (%p280) target = $region44
        $region43: #{decoder_forward.1} parent=39 // pred_region
          %p283 = scmp.lt.s32.totalorder %s16, 1
          %s284 = scalar_select %p283, %s16, 1
          %s285 = smul.addr %s284, 3
          %s286 = smul.addr %s285, 8
          %s287 = scalar_lea.vmem %s0, %s286
        $region44: #{decoder_forward.1} parent=39 // pred_fallthru
          _
      $region40: #{decoder_forward.1} parent=5 // pred_fallthru
        _
      %p288 = scmp.le.s32.totalorder 1, %s16
      %p289 = scmp.lt.s32.totalorder %s16, 3
      %p290 = pnand %p288, %p289
      %p291 = pneg %p290
      // Predicated region
      $region45: #{decoder_forward.1} parent=5 // pred_check
        _
      $region46: #{decoder_forward.1} parent=5 // pred_check_branch
        %293 = sbr.rel (%p290) target = $region48
      $region47: #{decoder_forward.1} parent=5 // pred_region
        %s294 = ssub.s32 %s16, 1
        // Predicated region
        $region49: #{decoder_forward.1} parent=47 // pred_check
          %p295 = pneg %p63
        $region50: #{decoder_forward.1} parent=47 // pred_check_branch
          %297 = sbr.rel (%p295) target = $region52
        $region51: #{decoder_forward.1} parent=47 // pred_region
          %299 = dma.done [#allocation3], 16384
        $region52: #{decoder_forward.1} parent=47 // pred_fallthru
          _
        // Predicated region
        $region53: #{decoder_forward.1} parent=47 // pred_check
          %p300 = pneg %p84
        $region54: #{decoder_forward.1} parent=47 // pred_check_branch
          %302 = sbr.rel (%p300) target = $region56
        $region55: #{decoder_forward.1} parent=47 // pred_region
          %304 = dma.done [#allocation5], 64
        $region56: #{decoder_forward.1} parent=47 // pred_fallthru
          _
        // Predicated region
        $region57: #{decoder_forward.1} parent=47 // pred_check
          %p305 = pneg %p105
        $region58: #{decoder_forward.1} parent=47 // pred_check_branch
          %307 = sbr.rel (%p305) target = $region60
        $region59: #{decoder_forward.1} parent=47 // pred_region
          %309 = dma.done [#allocation5], 65536
        $region60: #{decoder_forward.1} parent=47 // pred_fallthru
          _
        // Predicated region
        $region61: #{decoder_forward.1} parent=47 // pred_check
          %p310 = pneg %p126
        $region62: #{decoder_forward.1} parent=47 // pred_check_branch
          %312 = sbr.rel (%p310) target = $region64
        $region63: #{decoder_forward.1} parent=47 // pred_region
          %314 = dma.done [#allocation8], 32
        $region64: #{decoder_forward.1} parent=47 // pred_fallthru
          _
        // Predicated region
        $region65: #{decoder_forward.1} parent=47 // pred_check
          %p315 = pneg %p168
        $region66: #{decoder_forward.1} parent=47 // pred_check_branch
          %317 = sbr.rel (%p315) target = $region68
        $region67: #{decoder_forward.1} parent=47 // pred_region
          %319 = dma.done [#allocation8], 16
        $region68: #{decoder_forward.1} parent=47 // pred_fallthru
          _
        %p320 = scmp.lt.s32.totalorder %s21, 1
        %s321 = scalar_select %p320, %s21, 1
        %s322 = smul.addr %s321, 3
        %s323 = smul.addr %s322, 8
        %s324 = scalar_lea.vmem %s0, %s323
        %p325 = pneg %p42
        %p326 = pneg %p39
        %p327 = pneg %p63
        %p328 = pneg %p60
        %p329 = pneg %p84
        %p330 = pneg %p81
        %p331 = pneg %p105
        %p332 = pneg %p102
        %p333 = pneg %p126
        %p334 = pneg %p123
        %p335 = pneg %p147
        %p336 = pneg %p144
        %p337 = pneg %p168
        %p338 = pneg %p165
        %p339 = pneg %p194
        %p340 = pneg %p191
        %p341 = scmp.lt.s32.totalorder %s21, 1
        %s342 = scalar_select %p341, %s21, 1
        %s343 = smul.addr %s342, 3
        %s344 = smul.addr %s343, 8
        %s345 = scalar_lea.vmem %s7, %s344
        %p346 = scmp.lt.s32.totalorder %s21, 1
        %s347 = scalar_select %p346, %s21, 1
        %s348 = smul.addr %s347, 3
        %s349 = smul.addr %s348, 8
        %s350 = scalar_lea.vmem %s0, %s349
        %p351 = scmp.lt.s32.totalorder %s21, 1
        %s352 = scalar_select %p351, %s21, 1
        %s353 = smul.addr %s352, 3
        %s354 = smul.addr %s353, 8
        %s355 = scalar_lea.vmem %s7, %s354
        %v356 = vld [vmem:[%s350] sm:$0xff]
        %v357 = vld [vmem:[%s350 + $0x8] sm:$0xff]
        %v358 = vld [vmem:[%s350 + $0x10] sm:$0x1]
        %v359 = vld [vmem:[#allocation4] sm:$0xf]
        %s360 = scalar_lea.vmem [#allocation2], 256
        %v361 = vld [vmem:[%s360] sm:$0xff]
        %v362 = vld [vmem:[%s360 + $0x8] sm:$0xff]
        %v363 = vld [vmem:[%s360 + $0x10] sm:$0xff]
        %v364 = vld [vmem:[%s360 + $0x18] sm:$0xff]
        %v365 = vld [vmem:[%s360 + $0x20] sm:$0xff]
        %v366 = vld [vmem:[%s360 + $0x28] sm:$0xff]
        %v367 = vld [vmem:[%s360 + $0x30] sm:$0xff]
        %v368 = vld [vmem:[%s360 + $0x38] sm:$0xff]
        %v369 = vld [vmem:[%s360 + $0x40] sm:$0xff]
        %v370 = vld [vmem:[%s360 + $0x48] sm:$0xff]
        %v371 = vld [vmem:[%s360 + $0x50] sm:$0xff]
        %v372 = vld [vmem:[%s360 + $0x58] sm:$0xff]
        %v373 = vld [vmem:[%s360 + $0x60] sm:$0xff]
        %v374 = vld [vmem:[%s360 + $0x68] sm:$0xff]
        %v375 = vld [vmem:[%s360 + $0x70] sm:$0xff]
        %v376 = vld [vmem:[%s360 + $0x78] sm:$0xff]
        %v377 = vld [vmem:[%s360 + $0x80] sm:$0xff]
        %v378 = vld [vmem:[%s360 + $0x88] sm:$0xff]
        %v379 = vld [vmem:[%s360 + $0x90] sm:$0xff]
        %v380 = vld [vmem:[%s360 + $0x98] sm:$0xff]
        %v381 = vld [vmem:[%s360 + $0xa0] sm:$0xff]
        %v382 = vld [vmem:[%s360 + $0xa8] sm:$0xff]
        %v383 = vld [vmem:[%s360 + $0xb0] sm:$0xff]
        %v384 = vld [vmem:[%s360 + $0xb8] sm:$0xff]
        %v385 = vld [vmem:[%s360 + $0xc0] sm:$0xff]
        %v386 = vld [vmem:[%s360 + $0xc8] sm:$0xff]
        %v387 = vld [vmem:[%s360 + $0xd0] sm:$0xff]
        %v388 = vld [vmem:[%s360 + $0xd8] sm:$0xff]
        %v389 = vld [vmem:[%s360 + $0xe0] sm:$0xff]
        %v390 = vld [vmem:[%s360 + $0xe8] sm:$0xff]
        %v391 = vld [vmem:[%s360 + $0xf0] sm:$0xff]
        %v392 = vld [vmem:[%s360 + $0xf8] sm:$0xff]
        %vm395 = vcmask 1040384
        %v396 = vrot.slane %v356, 7
        %v397 = vrot.slane %v357, 7
        %v398 = vsel %vm395, %v396, %v397
        %v400 = vsel %vm395, 0.0, %v396
        %s401 = scalar_lea.vmem [#allocation2], 768
        %v402 = vld [vmem:[%s401] sm:$0xff]
        %v403 = vld [vmem:[%s401 + $0x8] sm:$0xff]
        %v404 = vld [vmem:[%s401 + $0x10] sm:$0xff]
        %v405 = vld [vmem:[%s401 + $0x18] sm:$0xff]
        %v406 = vld [vmem:[%s401 + $0x20] sm:$0xff]
        %v407 = vld [vmem:[%s401 + $0x28] sm:$0xff]
        %v408 = vld [vmem:[%s401 + $0x30] sm:$0xff]
        %v409 = vld [vmem:[%s401 + $0x38] sm:$0xff]
        %v410 = vld [vmem:[%s401 + $0x40] sm:$0xff]
        %v411 = vld [vmem:[%s401 + $0x48] sm:$0xff]
        %v412 = vld [vmem:[%s401 + $0x50] sm:$0xff]
        %v413 = vld [vmem:[%s401 + $0x58] sm:$0xff]
        %v414 = vld [vmem:[%s401 + $0x60] sm:$0xff]
        %v415 = vld [vmem:[%s401 + $0x68] sm:$0xff]
        %v416 = vld [vmem:[%s401 + $0x70] sm:$0xff]
        %v417 = vld [vmem:[%s401 + $0x78] sm:$0xff]
        %v418 = vld [vmem:[%s401 + $0x80] sm:$0xff]
        %v419 = vld [vmem:[%s401 + $0x88] sm:$0xff]
        %v420 = vld [vmem:[%s401 + $0x90] sm:$0xff]
        %v421 = vld [vmem:[%s401 + $0x98] sm:$0xff]
        %v422 = vld [vmem:[%s401 + $0xa0] sm:$0xff]
        %v423 = vld [vmem:[%s401 + $0xa8] sm:$0xff]
        %v424 = vld [vmem:[%s401 + $0xb0] sm:$0xff]
        %v425 = vld [vmem:[%s401 + $0xb8] sm:$0xff]
        %v426 = vld [vmem:[%s401 + $0xc0] sm:$0xff]
        %v427 = vld [vmem:[%s401 + $0xc8] sm:$0xff]
        %v428 = vld [vmem:[%s401 + $0xd0] sm:$0xff]
        %v429 = vld [vmem:[%s401 + $0xd8] sm:$0xff]
        %v430 = vld [vmem:[%s401 + $0xe0] sm:$0xff]
        %v431 = vld [vmem:[%s401 + $0xe8] sm:$0xff]
        %v432 = vld [vmem:[%s401 + $0xf0] sm:$0xff]
        %v433 = vld [vmem:[%s401 + $0xf8] sm:$0xff]
        %vm434 = vcmask 523264
        %v436 = vsel %vm434, %v400, 0
        %v438 = vsel %vm434, %v398, 0
        %v440 = vsel %vm434, %v397, 0
        %442 = vmatpush.msra.mxu0 0.0
        %443 = vmatpush.msra.mxu0 0.0
        %444 = vmatpush.msra.mxu0 0.0
        %445 = vmatpush.msra.mxu0 0.0
        %446 = vmatpush.msra.mxu0 0.0
        %447 = vmatpush.msra.mxu0 0.0
        %448 = vmatpush.msra.mxu0 0.0
        %449 = vmatpush.msra.mxu0 0.0
        %450 = vmatpush.msra.mxu0 %v430
        %451 = vmatpush.msra.mxu0 %v426
        %452 = vmatpush.msra.mxu0 %v422
        %453 = vmatpush.msra.mxu0 %v418
        %454 = vmatpush.msra.mxu0 %v414
        %455 = vmatpush.msra.mxu0 %v410
        %456 = vmatpush.msra.mxu0 %v406
        %457 = vmatpush.msra.mxu0 %v402
        %458 = vmatmul.f32.gmra.mxu0 %v436
        %v459 = vpop.f32.mrf.mxu0
        %v460 = vadd.f32 0.0, %v459
        %461 = vmatmul.f32.gmra.mxu0 %v438
        %v462 = vpop.f32.mrf.mxu0
        %v463 = vadd.f32 0.0, %v462
        %464 = vmatmul.f32.gmra.mxu0 %v440
        %v465 = vpop.f32.mrf.mxu0
        %v466 = vadd.f32 0.0, %v465
        %467 = vdwg.mxu0
        %468 = vmatpush.msra.mxu0 0.0
        %469 = vmatpush.msra.mxu0 0.0
        %470 = vmatpush.msra.mxu0 0.0
        %471 = vmatpush.msra.mxu0 0.0
        %472 = vmatpush.msra.mxu0 0.0
        %473 = vmatpush.msra.mxu0 0.0
        %474 = vmatpush.msra.mxu0 0.0
        %475 = vmatpush.msra.mxu0 0.0
        %476 = vmatpush.msra.mxu0 %v431
        %477 = vmatpush.msra.mxu0 %v427
        %478 = vmatpush.msra.mxu0 %v423
        %479 = vmatpush.msra.mxu0 %v419
        %480 = vmatpush.msra.mxu0 %v415
        %481 = vmatpush.msra.mxu0 %v411
        %482 = vmatpush.msra.mxu0 %v407
        %483 = vmatpush.msra.mxu0 %v403
        %484 = vmatmul.f32.gmra.mxu0 %v436
        %v485 = vpop.f32.mrf.mxu0
        %v486 = vadd.f32 0.0, %v485
        %487 = vmatmul.f32.gmra.mxu0 %v438
        %v488 = vpop.f32.mrf.mxu0
        %v489 = vadd.f32 0.0, %v488
        %490 = vmatmul.f32.gmra.mxu0 %v440
        %v491 = vpop.f32.mrf.mxu0
        %v492 = vadd.f32 0.0, %v491
        %493 = vdwg.mxu0
        %494 = vmatpush.msra.mxu0 0.0
        %495 = vmatpush.msra.mxu0 0.0
        %496 = vmatpush.msra.mxu0 0.0
        %497 = vmatpush.msra.mxu0 0.0
        %498 = vmatpush.msra.mxu0 0.0
        %499 = vmatpush.msra.mxu0 0.0
        %500 = vmatpush.msra.mxu0 0.0
        %501 = vmatpush.msra.mxu0 0.0
        %502 = vmatpush.msra.mxu0 %v432
        %503 = vmatpush.msra.mxu0 %v428
        %504 = vmatpush.msra.mxu0 %v424
        %505 = vmatpush.msra.mxu0 %v420
        %506 = vmatpush.msra.mxu0 %v416
        %507 = vmatpush.msra.mxu0 %v412
        %508 = vmatpush.msra.mxu0 %v408
        %509 = vmatpush.msra.mxu0 %v404
        %510 = vmatmul.f32.gmra.mxu0 %v436
        %v511 = vpop.f32.mrf.mxu0
        %v512 = vadd.f32 0.0, %v511
        %513 = vmatmul.f32.gmra.mxu0 %v438
        %v514 = vpop.f32.mrf.mxu0
        %v515 = vadd.f32 0.0, %v514
        %516 = vmatmul.f32.gmra.mxu0 %v440
        %v517 = vpop.f32.mrf.mxu0
        %v518 = vadd.f32 0.0, %v517
        %519 = vdwg.mxu0
        %520 = vmatpush.msra.mxu0 0.0
        %521 = vmatpush.msra.mxu0 0.0
        %522 = vmatpush.msra.mxu0 0.0
        %523 = vmatpush.msra.mxu0 0.0
        %524 = vmatpush.msra.mxu0 0.0
        %525 = vmatpush.msra.mxu0 0.0
        %526 = vmatpush.msra.mxu0 0.0
        %527 = vmatpush.msra.mxu0 0.0
        %528 = vmatpush.msra.mxu0 %v433
        %529 = vmatpush.msra.mxu0 %v429
        %530 = vmatpush.msra.mxu0 %v425
        %531 = vmatpush.msra.mxu0 %v421
        %532 = vmatpush.msra.mxu0 %v417
        %533 = vmatpush.msra.mxu0 %v413
        %534 = vmatpush.msra.mxu0 %v409
        %535 = vmatpush.msra.mxu0 %v405
        %536 = vmatmul.f32.gmra.mxu0 %v436
        %v537 = vpop.f32.mrf.mxu0
        %v538 = vadd.f32 0.0, %v537
        %539 = vmatmul.f32.gmra.mxu0 %v438
        %v540 = vpop.f32.mrf.mxu0
        %v541 = vadd.f32 0.0, %v540
        %542 = vmatmul.f32.gmra.mxu0 %v440
        %v543 = vpop.f32.mrf.mxu0
        %v544 = vadd.f32 0.0, %v543
        %545 = vdwg.mxu0
        %v546 = vsel %vm434, %v356, 0
        %v548 = vsel %vm434, %v357, 0
        %v551 = vsel %vm434, %v358, 0
        %553 = vmatpush.msra.mxu0 0.0
        %554 = vmatpush.msra.mxu0 0.0
        %555 = vmatpush.msra.mxu0 0.0
        %556 = vmatpush.msra.mxu0 0.0
        %557 = vmatpush.msra.mxu0 0.0
        %558 = vmatpush.msra.mxu0 0.0
        %559 = vmatpush.msra.mxu0 0.0
        %560 = vmatpush.msra.mxu0 0.0
        %561 = vmatpush.msra.mxu0 %v389
        %562 = vmatpush.msra.mxu0 %v385
        %563 = vmatpush.msra.mxu0 %v381
        %564 = vmatpush.msra.mxu0 %v377
        %565 = vmatpush.msra.mxu0 %v373
        %566 = vmatpush.msra.mxu0 %v369
        %567 = vmatpush.msra.mxu0 %v365
        %568 = vmatpush.msra.mxu0 %v361
        %569 = vmatmul.f32.gmra.mxu0 %v546
        %v570 = vpop.f32.mrf.mxu0
        %v571 = vadd.f32 %v460, %v570
        %572 = vmatmul.f32.gmra.mxu0 %v548
        %v573 = vpop.f32.mrf.mxu0
        %v574 = vadd.f32 %v463, %v573
        %575 = vmatmul.f32.gmra.mxu0 %v551
        %v576 = vpop.f32.mrf.mxu0
        %v577 = vadd.f32 %v466, %v576
        %578 = vdwg.mxu0
        %579 = vmatpush.msra.mxu0 0.0
        %580 = vmatpush.msra.mxu0 0.0
        %581 = vmatpush.msra.mxu0 0.0
        %582 = vmatpush.msra.mxu0 0.0
        %583 = vmatpush.msra.mxu0 0.0
        %584 = vmatpush.msra.mxu0 0.0
        %585 = vmatpush.msra.mxu0 0.0
        %586 = vmatpush.msra.mxu0 0.0
        %587 = vmatpush.msra.mxu0 %v390
        %588 = vmatpush.msra.mxu0 %v386
        %589 = vmatpush.msra.mxu0 %v382
        %590 = vmatpush.msra.mxu0 %v378
        %591 = vmatpush.msra.mxu0 %v374
        %592 = vmatpush.msra.mxu0 %v370
        %593 = vmatpush.msra.mxu0 %v366
        %594 = vmatpush.msra.mxu0 %v362
        %595 = vmatmul.f32.gmra.mxu0 %v546
        %v596 = vpop.f32.mrf.mxu0
        %v597 = vadd.f32 %v486, %v596
        %598 = vmatmul.f32.gmra.mxu0 %v548
        %v599 = vpop.f32.mrf.mxu0
        %v600 = vadd.f32 %v489, %v599
        %601 = vmatmul.f32.gmra.mxu0 %v551
        %v602 = vpop.f32.mrf.mxu0
        %v603 = vadd.f32 %v492, %v602
        %604 = vdwg.mxu0
        %605 = vmatpush.msra.mxu0 0.0
        %606 = vmatpush.msra.mxu0 0.0
        %607 = vmatpush.msra.mxu0 0.0
        %608 = vmatpush.msra.mxu0 0.0
        %609 = vmatpush.msra.mxu0 0.0
        %610 = vmatpush.msra.mxu0 0.0
        %611 = vmatpush.msra.mxu0 0.0
        %612 = vmatpush.msra.mxu0 0.0
        %613 = vmatpush.msra.mxu0 %v391
        %614 = vmatpush.msra.mxu0 %v387
        %615 = vmatpush.msra.mxu0 %v383
        %616 = vmatpush.msra.mxu0 %v379
        %617 = vmatpush.msra.mxu0 %v375
        %618 = vmatpush.msra.mxu0 %v371
        %619 = vmatpush.msra.mxu0 %v367
        %620 = vmatpush.msra.mxu0 %v363
        %621 = vmatmul.f32.gmra.mxu0 %v546
        %v622 = vpop.f32.mrf.mxu0
        %v623 = vadd.f32 %v512, %v622
        %624 = vmatmul.f32.gmra.mxu0 %v548
        %v625 = vpop.f32.mrf.mxu0
        %v626 = vadd.f32 %v515, %v625
        %627 = vmatmul.f32.gmra.mxu0 %v551
        %v628 = vpop.f32.mrf.mxu0
        %v629 = vadd.f32 %v518, %v628
        %630 = vdwg.mxu0
        %631 = vmatpush.msra.mxu0 0.0
        %632 = vmatpush.msra.mxu0 0.0
        %633 = vmatpush.msra.mxu0 0.0
        %634 = vmatpush.msra.mxu0 0.0
        %635 = vmatpush.msra.mxu0 0.0
        %636 = vmatpush.msra.mxu0 0.0
        %637 = vmatpush.msra.mxu0 0.0
        %638 = vmatpush.msra.mxu0 0.0
        %639 = vmatpush.msra.mxu0 %v392
        %640 = vmatpush.msra.mxu0 %v388
        %641 = vmatpush.msra.mxu0 %v384
        %642 = vmatpush.msra.mxu0 %v380
        %643 = vmatpush.msra.mxu0 %v376
        %644 = vmatpush.msra.mxu0 %v372
        %645 = vmatpush.msra.mxu0 %v368
        %646 = vmatpush.msra.mxu0 %v364
        %647 = vmatmul.f32.gmra.mxu0 %v546
        %v648 = vpop.f32.mrf.mxu0
        %v649 = vadd.f32 %v538, %v648
        %650 = vmatmul.f32.gmra.mxu0 %v548
        %v651 = vpop.f32.mrf.mxu0
        %v652 = vadd.f32 %v541, %v651
        %653 = vmatmul.f32.gmra.mxu0 %v551
        %v654 = vpop.f32.mrf.mxu0
        %v655 = vadd.f32 %v544, %v654
        %656 = vdwg.mxu0
        %v658 = vperm.slane %v359, 0
        %v659 = vperm.slane %v359, 1
        %v660 = vperm.slane %v359, 2
        %v661 = vperm.slane %v359, 3
        %v666 = vadd.f32 %v571, %v658
        %v667 = vadd.f32 %v597, %v659
        %v668 = vadd.f32 %v623, %v660
        %v669 = vadd.f32 %v649, %v661
        %v670 = vadd.f32 %v574, %v658
        %v671 = vadd.f32 %v600, %v659
        %v672 = vadd.f32 %v626, %v660
        %v673 = vadd.f32 %v652, %v661
        %v674 = vadd.f32 %v577, %v658
        %v675 = vadd.f32 %v603, %v659
        %v676 = vadd.f32 %v629, %v660
        %v677 = vadd.f32 %v655, %v661
        %v678 = vmax.f32 %v666, 0.0
        %v679 = vmax.f32 %v667, 0.0
        %v680 = vmax.f32 %v668, 0.0
        %v681 = vmax.f32 %v669, 0.0
        %v682 = vmax.f32 %v670, 0.0
        %v683 = vmax.f32 %v671, 0.0
        %v684 = vmax.f32 %v672, 0.0
        %v685 = vmax.f32 %v673, 0.0
        %v686 = vmax.f32 %v674, 0.0
        %v687 = vmax.f32 %v675, 0.0
        %v688 = vmax.f32 %v676, 0.0
        %v689 = vmax.f32 %v677, 0.0
        %s690 = scalar_lea.vmem [#allocation2], 512
        %v691 = vld [vmem:[%s690] sm:$0xff]
        %v692 = vld [vmem:[%s690 + $0x8] sm:$0xff]
        %v693 = vld [vmem:[%s690 + $0x10] sm:$0xff]
        %v694 = vld [vmem:[%s690 + $0x18] sm:$0xff]
        %v695 = vld [vmem:[%s690 + $0x20] sm:$0xff]
        %v696 = vld [vmem:[%s690 + $0x28] sm:$0xff]
        %v697 = vld [vmem:[%s690 + $0x30] sm:$0xff]
        %v698 = vld [vmem:[%s690 + $0x38] sm:$0xff]
        %v699 = vld [vmem:[%s690 + $0x40] sm:$0xff]
        %v700 = vld [vmem:[%s690 + $0x48] sm:$0xff]
        %v701 = vld [vmem:[%s690 + $0x50] sm:$0xff]
        %v702 = vld [vmem:[%s690 + $0x58] sm:$0xff]
        %v703 = vld [vmem:[%s690 + $0x60] sm:$0xff]
        %v704 = vld [vmem:[%s690 + $0x68] sm:$0xff]
        %v705 = vld [vmem:[%s690 + $0x70] sm:$0xff]
        %v706 = vld [vmem:[%s690 + $0x78] sm:$0xff]
        %v707 = vld [vmem:[%s690 + $0x80] sm:$0xff]
        %v708 = vld [vmem:[%s690 + $0x88] sm:$0xff]
        %v709 = vld [vmem:[%s690 + $0x90] sm:$0xff]
        %v710 = vld [vmem:[%s690 + $0x98] sm:$0xff]
        %v711 = vld [vmem:[%s690 + $0xa0] sm:$0xff]
        %v712 = vld [vmem:[%s690 + $0xa8] sm:$0xff]
        %v713 = vld [vmem:[%s690 + $0xb0] sm:$0xff]
        %v714 = vld [vmem:[%s690 + $0xb8] sm:$0xff]
        %v715 = vld [vmem:[%s690 + $0xc0] sm:$0xff]
        %v716 = vld [vmem:[%s690 + $0xc8] sm:$0xff]
        %v717 = vld [vmem:[%s690 + $0xd0] sm:$0xff]
        %v718 = vld [vmem:[%s690 + $0xd8] sm:$0xff]
        %v719 = vld [vmem:[%s690 + $0xe0] sm:$0xff]
        %v720 = vld [vmem:[%s690 + $0xe8] sm:$0xff]
        %v721 = vld [vmem:[%s690 + $0xf0] sm:$0xff]
        %v722 = vld [vmem:[%s690 + $0xf8] sm:$0xff]
        %vm723 = vcmask 1046528
        %v724 = vrot.slane %v356, 1
        %v725 = vrot.slane %v357, 1
        %v726 = vsel %vm723, %v724, %v725
        %v727 = vrot.slane %v358, 1
        %v728 = vsel %vm723, %v725, %v727
        %v729 = vld [vmem:[#allocation2] sm:$0xff]
        %v730 = vld [vmem:[#allocation2 + $0x8] sm:$0xff]
        %v731 = vld [vmem:[#allocation2 + $0x10] sm:$0xff]
        %v732 = vld [vmem:[#allocation2 + $0x18] sm:$0xff]
        %v733 = vld [vmem:[#allocation2 + $0x20] sm:$0xff]
        %v734 = vld [vmem:[#allocation2 + $0x28] sm:$0xff]
        %v735 = vld [vmem:[#allocation2 + $0x30] sm:$0xff]
        %v736 = vld [vmem:[#allocation2 + $0x38] sm:$0xff]
        %v737 = vld [vmem:[#allocation2 + $0x40] sm:$0xff]
        %v738 = vld [vmem:[#allocation2 + $0x48] sm:$0xff]
        %v739 = vld [vmem:[#allocation2 + $0x50] sm:$0xff]
        %v740 = vld [vmem:[#allocation2 + $0x58] sm:$0xff]
        %v741 = vld [vmem:[#allocation2 + $0x60] sm:$0xff]
        %v742 = vld [vmem:[#allocation2 + $0x68] sm:$0xff]
        %v743 = vld [vmem:[#allocation2 + $0x70] sm:$0xff]
        %v744 = vld [vmem:[#allocation2 + $0x78] sm:$0xff]
        %v745 = vld [vmem:[#allocation2 + $0x80] sm:$0xff]
        %v746 = vld [vmem:[#allocation2 + $0x88] sm:$0xff]
        %v747 = vld [vmem:[#allocation2 + $0x90] sm:$0xff]
        %v748 = vld [vmem:[#allocation2 + $0x98] sm:$0xff]
        %v749 = vld [vmem:[#allocation2 + $0xa0] sm:$0xff]
        %v750 = vld [vmem:[#allocation2 + $0xa8] sm:$0xff]
        %v751 = vld [vmem:[#allocation2 + $0xb0] sm:$0xff]
        %v752 = vld [vmem:[#allocation2 + $0xb8] sm:$0xff]
        %v753 = vld [vmem:[#allocation2 + $0xc0] sm:$0xff]
        %v754 = vld [vmem:[#allocation2 + $0xc8] sm:$0xff]
        %v755 = vld [vmem:[#allocation2 + $0xd0] sm:$0xff]
        %v756 = vld [vmem:[#allocation2 + $0xd8] sm:$0xff]
        %v757 = vld [vmem:[#allocation2 + $0xe0] sm:$0xff]
        %v758 = vld [vmem:[#allocation2 + $0xe8] sm:$0xff]
        %v759 = vld [vmem:[#allocation2 + $0xf0] sm:$0xff]
        %v760 = vld [vmem:[#allocation2 + $0xf8] sm:$0xff]
        %v761 = vsel %vm434, %v726, 0
        %v763 = vsel %vm434, %v728, 0
        %v766 = vsel %vm434, 0.0, 0
        %768 = vmatpush.msra.mxu0 0.0
        %769 = vmatpush.msra.mxu0 0.0
        %770 = vmatpush.msra.mxu0 0.0
        %771 = vmatpush.msra.mxu0 0.0
        %772 = vmatpush.msra.mxu0 0.0
        %773 = vmatpush.msra.mxu0 0.0
        %774 = vmatpush.msra.mxu0 0.0
        %775 = vmatpush.msra.mxu0 0.0
        %776 = vmatpush.msra.mxu0 %v757
        %777 = vmatpush.msra.mxu0 %v753
        %778 = vmatpush.msra.mxu0 %v749
        %779 = vmatpush.msra.mxu0 %v745
        %780 = vmatpush.msra.mxu0 %v741
        %781 = vmatpush.msra.mxu0 %v737
        %782 = vmatpush.msra.mxu0 %v733
        %783 = vmatpush.msra.mxu0 %v729
        %784 = vmatmul.f32.gmra.mxu0 %v761
        %v785 = vpop.f32.mrf.mxu0
        %v786 = vadd.f32 0.0, %v785
        %787 = vmatmul.f32.gmra.mxu0 %v763
        %v788 = vpop.f32.mrf.mxu0
        %v789 = vadd.f32 0.0, %v788
        %790 = vmatmul.f32.gmra.mxu0 %v766
        %v791 = vpop.f32.mrf.mxu0
        %v792 = vadd.f32 0.0, %v791
        %793 = vdwg.mxu0
        %794 = vmatpush.msra.mxu0 0.0
        %795 = vmatpush.msra.mxu0 0.0
        %796 = vmatpush.msra.mxu0 0.0
        %797 = vmatpush.msra.mxu0 0.0
        %798 = vmatpush.msra.mxu0 0.0
        %799 = vmatpush.msra.mxu0 0.0
        %800 = vmatpush.msra.mxu0 0.0
        %801 = vmatpush.msra.mxu0 0.0
        %802 = vmatpush.msra.mxu0 %v758
        %803 = vmatpush.msra.mxu0 %v754
        %804 = vmatpush.msra.mxu0 %v750
        %805 = vmatpush.msra.mxu0 %v746
        %806 = vmatpush.msra.mxu0 %v742
        %807 = vmatpush.msra.mxu0 %v738
        %808 = vmatpush.msra.mxu0 %v734
        %809 = vmatpush.msra.mxu0 %v730
        %810 = vmatmul.f32.gmra.mxu0 %v761
        %v811 = vpop.f32.mrf.mxu0
        %v812 = vadd.f32 0.0, %v811
        %813 = vmatmul.f32.gmra.mxu0 %v763
        %v814 = vpop.f32.mrf.mxu0
        %v815 = vadd.f32 0.0, %v814
        %816 = vmatmul.f32.gmra.mxu0 %v766
        %v817 = vpop.f32.mrf.mxu0
        %v818 = vadd.f32 0.0, %v817
        %819 = vdwg.mxu0
        %820 = vmatpush.msra.mxu0 0.0
        %821 = vmatpush.msra.mxu0 0.0
        %822 = vmatpush.msra.mxu0 0.0
        %823 = vmatpush.msra.mxu0 0.0
        %824 = vmatpush.msra.mxu0 0.0
        %825 = vmatpush.msra.mxu0 0.0
        %826 = vmatpush.msra.mxu0 0.0
        %827 = vmatpush.msra.mxu0 0.0
        %828 = vmatpush.msra.mxu0 %v759
        %829 = vmatpush.msra.mxu0 %v755
        %830 = vmatpush.msra.mxu0 %v751
        %831 = vmatpush.msra.mxu0 %v747
        %832 = vmatpush.msra.mxu0 %v743
        %833 = vmatpush.msra.mxu0 %v739
        %834 = vmatpush.msra.mxu0 %v735
        %835 = vmatpush.msra.mxu0 %v731
        %836 = vmatmul.f32.gmra.mxu0 %v761
        %v837 = vpop.f32.mrf.mxu0
        %v838 = vadd.f32 0.0, %v837
        %839 = vmatmul.f32.gmra.mxu0 %v763
        %v840 = vpop.f32.mrf.mxu0
        %v841 = vadd.f32 0.0, %v840
        %842 = vmatmul.f32.gmra.mxu0 %v766
        %v843 = vpop.f32.mrf.mxu0
        %v844 = vadd.f32 0.0, %v843
        %845 = vdwg.mxu0
        %846 = vmatpush.msra.mxu0 0.0
        %847 = vmatpush.msra.mxu0 0.0
        %848 = vmatpush.msra.mxu0 0.0
        %849 = vmatpush.msra.mxu0 0.0
        %850 = vmatpush.msra.mxu0 0.0
        %851 = vmatpush.msra.mxu0 0.0
        %852 = vmatpush.msra.mxu0 0.0
        %853 = vmatpush.msra.mxu0 0.0
        %854 = vmatpush.msra.mxu0 %v760
        %855 = vmatpush.msra.mxu0 %v756
        %856 = vmatpush.msra.mxu0 %v752
        %857 = vmatpush.msra.mxu0 %v748
        %858 = vmatpush.msra.mxu0 %v744
        %859 = vmatpush.msra.mxu0 %v740
        %860 = vmatpush.msra.mxu0 %v736
        %861 = vmatpush.msra.mxu0 %v732
        %862 = vmatmul.f32.gmra.mxu0 %v761
        %v863 = vpop.f32.mrf.mxu0
        %v864 = vadd.f32 0.0, %v863
        %865 = vmatmul.f32.gmra.mxu0 %v763
        %v866 = vpop.f32.mrf.mxu0
        %v867 = vadd.f32 0.0, %v866
        %868 = vmatmul.f32.gmra.mxu0 %v766
        %v869 = vpop.f32.mrf.mxu0
        %v870 = vadd.f32 0.0, %v869
        %871 = vdwg.mxu0
        %872 = vmatpush.msra.mxu0 0.0
        %873 = vmatpush.msra.mxu0 0.0
        %874 = vmatpush.msra.mxu0 0.0
        %875 = vmatpush.msra.mxu0 0.0
        %876 = vmatpush.msra.mxu0 0.0
        %877 = vmatpush.msra.mxu0 0.0
        %878 = vmatpush.msra.mxu0 0.0
        %879 = vmatpush.msra.mxu0 0.0
        %880 = vmatpush.msra.mxu0 %v719
        %881 = vmatpush.msra.mxu0 %v715
        %882 = vmatpush.msra.mxu0 %v711
        %883 = vmatpush.msra.mxu0 %v707
        %884 = vmatpush.msra.mxu0 %v703
        %885 = vmatpush.msra.mxu0 %v699
        %886 = vmatpush.msra.mxu0 %v695
        %887 = vmatpush.msra.mxu0 %v691
        %888 = vmatmul.f32.gmra.mxu0 %v546
        %v889 = vpop.f32.mrf.mxu0
        %v890 = vadd.f32 %v786, %v889
        %891 = vmatmul.f32.gmra.mxu0 %v548
        %v892 = vpop.f32.mrf.mxu0
        %v893 = vadd.f32 %v789, %v892
        %894 = vmatmul.f32.gmra.mxu0 %v551
        %v895 = vpop.f32.mrf.mxu0
        %v896 = vadd.f32 %v792, %v895
        %897 = vdwg.mxu0
        %898 = vmatpush.msra.mxu0 0.0
        %899 = vmatpush.msra.mxu0 0.0
        %900 = vmatpush.msra.mxu0 0.0
        %901 = vmatpush.msra.mxu0 0.0
        %902 = vmatpush.msra.mxu0 0.0
        %903 = vmatpush.msra.mxu0 0.0
        %904 = vmatpush.msra.mxu0 0.0
        %905 = vmatpush.msra.mxu0 0.0
        %906 = vmatpush.msra.mxu0 %v720
        %907 = vmatpush.msra.mxu0 %v716
        %908 = vmatpush.msra.mxu0 %v712
        %909 = vmatpush.msra.mxu0 %v708
        %910 = vmatpush.msra.mxu0 %v704
        %911 = vmatpush.msra.mxu0 %v700
        %912 = vmatpush.msra.mxu0 %v696
        %913 = vmatpush.msra.mxu0 %v692
        %914 = vmatmul.f32.gmra.mxu0 %v546
        %v915 = vpop.f32.mrf.mxu0
        %v916 = vadd.f32 %v812, %v915
        %917 = vmatmul.f32.gmra.mxu0 %v548
        %v918 = vpop.f32.mrf.mxu0
        %v919 = vadd.f32 %v815, %v918
        %920 = vmatmul.f32.gmra.mxu0 %v551
        %v921 = vpop.f32.mrf.mxu0
        %v922 = vadd.f32 %v818, %v921
        %923 = vdwg.mxu0
        %924 = vmatpush.msra.mxu0 0.0
        %925 = vmatpush.msra.mxu0 0.0
        %926 = vmatpush.msra.mxu0 0.0
        %927 = vmatpush.msra.mxu0 0.0
        %928 = vmatpush.msra.mxu0 0.0
        %929 = vmatpush.msra.mxu0 0.0
        %930 = vmatpush.msra.mxu0 0.0
        %931 = vmatpush.msra.mxu0 0.0
        %932 = vmatpush.msra.mxu0 %v721
        %933 = vmatpush.msra.mxu0 %v717
        %934 = vmatpush.msra.mxu0 %v713
        %935 = vmatpush.msra.mxu0 %v709
        %936 = vmatpush.msra.mxu0 %v705
        %937 = vmatpush.msra.mxu0 %v701
        %938 = vmatpush.msra.mxu0 %v697
        %939 = vmatpush.msra.mxu0 %v693
        %940 = vmatmul.f32.gmra.mxu0 %v546
        %v941 = vpop.f32.mrf.mxu0
        %v942 = vadd.f32 %v838, %v941
        %943 = vmatmul.f32.gmra.mxu0 %v548
        %v944 = vpop.f32.mrf.mxu0
        %v945 = vadd.f32 %v841, %v944
        %946 = vmatmul.f32.gmra.mxu0 %v551
        %v947 = vpop.f32.mrf.mxu0
        %v948 = vadd.f32 %v844, %v947
        %949 = vdwg.mxu0
        %950 = vmatpush.msra.mxu0 0.0
        %951 = vmatpush.msra.mxu0 0.0
        %952 = vmatpush.msra.mxu0 0.0
        %953 = vmatpush.msra.mxu0 0.0
        %954 = vmatpush.msra.mxu0 0.0
        %955 = vmatpush.msra.mxu0 0.0
        %956 = vmatpush.msra.mxu0 0.0
        %957 = vmatpush.msra.mxu0 0.0
        %958 = vmatpush.msra.mxu0 %v722
        %959 = vmatpush.msra.mxu0 %v718
        %960 = vmatpush.msra.mxu0 %v714
        %961 = vmatpush.msra.mxu0 %v710
        %962 = vmatpush.msra.mxu0 %v706
        %963 = vmatpush.msra.mxu0 %v702
        %964 = vmatpush.msra.mxu0 %v698
        %965 = vmatpush.msra.mxu0 %v694
        %966 = vmatmul.f32.gmra.mxu0 %v546
        %v967 = vpop.f32.mrf.mxu0
        %v968 = vadd.f32 %v864, %v967
        %969 = vmatmul.f32.gmra.mxu0 %v548
        %v970 = vpop.f32.mrf.mxu0
        %v971 = vadd.f32 %v867, %v970
        %972 = vmatmul.f32.gmra.mxu0 %v551
        %v973 = vpop.f32.mrf.mxu0
        %v974 = vadd.f32 %v870, %v973
        %975 = vdwg.mxu0
        %v976 = vadd.f32 %v890, %v658
        %v977 = vadd.f32 %v916, %v659
        %v978 = vadd.f32 %v942, %v660
        %v979 = vadd.f32 %v968, %v661
        %v980 = vadd.f32 %v893, %v658
        %v981 = vadd.f32 %v919, %v659
        %v982 = vadd.f32 %v945, %v660
        %v983 = vadd.f32 %v971, %v661
        %v984 = vadd.f32 %v896, %v658
        %v985 = vadd.f32 %v922, %v659
        %v986 = vadd.f32 %v948, %v660
        %v987 = vadd.f32 %v974, %v661
        %v988 = vmax.f32 %v976, 0.0
        %v989 = vmax.f32 %v977, 0.0
        %v990 = vmax.f32 %v978, 0.0
        %v991 = vmax.f32 %v979, 0.0
        %v992 = vmax.f32 %v980, 0.0
        %v993 = vmax.f32 %v981, 0.0
        %v994 = vmax.f32 %v982, 0.0
        %v995 = vmax.f32 %v983, 0.0
        %v996 = vmax.f32 %v984, 0.0
        %v997 = vmax.f32 %v985, 0.0
        %v998 = vmax.f32 %v986, 0.0
        %v999 = vmax.f32 %v987, 0.0
        %v1000 = vld [vmem:[#allocation7] sm:$0x3]
        %s1001 = scalar_lea.vmem [#allocation6], 1024
        %v1002 = vld [vmem:[%s1001] sm:$0xff]
        %v1003 = vld [vmem:[%s1001 + $0x8] sm:$0xff]
        %v1004 = vld [vmem:[%s1001 + $0x10] sm:$0xff]
        %v1005 = vld [vmem:[%s1001 + $0x18] sm:$0xff]
        %v1006 = vld [vmem:[%s1001 + $0x20] sm:$0xff]
        %v1007 = vld [vmem:[%s1001 + $0x28] sm:$0xff]
        %v1008 = vld [vmem:[%s1001 + $0x30] sm:$0xff]
        %v1009 = vld [vmem:[%s1001 + $0x38] sm:$0xff]
        %v1010 = vld [vmem:[%s1001 + $0x40] sm:$0xff]
        %v1011 = vld [vmem:[%s1001 + $0x48] sm:$0xff]
        %v1012 = vld [vmem:[%s1001 + $0x50] sm:$0xff]
        %v1013 = vld [vmem:[%s1001 + $0x58] sm:$0xff]
        %v1014 = vld [vmem:[%s1001 + $0x60] sm:$0xff]
        %v1015 = vld [vmem:[%s1001 + $0x68] sm:$0xff]
        %v1016 = vld [vmem:[%s1001 + $0x70] sm:$0xff]
        %v1017 = vld [vmem:[%s1001 + $0x78] sm:$0xff]
        %v1018 = vld [vmem:[%s1001 + $0x80] sm:$0xff]
        %v1019 = vld [vmem:[%s1001 + $0x88] sm:$0xff]
        %v1020 = vld [vmem:[%s1001 + $0x90] sm:$0xff]
        %v1021 = vld [vmem:[%s1001 + $0x98] sm:$0xff]
        %v1022 = vld [vmem:[%s1001 + $0xa0] sm:$0xff]
        %v1023 = vld [vmem:[%s1001 + $0xa8] sm:$0xff]
        %v1024 = vld [vmem:[%s1001 + $0xb0] sm:$0xff]
        %v1025 = vld [vmem:[%s1001 + $0xb8] sm:$0xff]
        %v1026 = vld [vmem:[%s1001 + $0xc0] sm:$0xff]
        %v1027 = vld [vmem:[%s1001 + $0xc8] sm:$0xff]
        %v1028 = vld [vmem:[%s1001 + $0xd0] sm:$0xff]
        %v1029 = vld [vmem:[%s1001 + $0xd8] sm:$0xff]
        %v1030 = vld [vmem:[%s1001 + $0xe0] sm:$0xff]
        %v1031 = vld [vmem:[%s1001 + $0xe8] sm:$0xff]
        %v1032 = vld [vmem:[%s1001 + $0xf0] sm:$0xff]
        %v1033 = vld [vmem:[%s1001 + $0xf8] sm:$0xff]
        %v1034 = vld [vmem:[%s1001 + $0x100] sm:$0xff]
        %v1035 = vld [vmem:[%s1001 + $0x108] sm:$0xff]
        %v1036 = vld [vmem:[%s1001 + $0x110] sm:$0xff]
        %v1037 = vld [vmem:[%s1001 + $0x118] sm:$0xff]
        %v1038 = vld [vmem:[%s1001 + $0x120] sm:$0xff]
        %v1039 = vld [vmem:[%s1001 + $0x128] sm:$0xff]
        %v1040 = vld [vmem:[%s1001 + $0x130] sm:$0xff]
        %v1041 = vld [vmem:[%s1001 + $0x138] sm:$0xff]
        %v1042 = vld [vmem:[%s1001 + $0x140] sm:$0xff]
        %v1043 = vld [vmem:[%s1001 + $0x148] sm:$0xff]
        %v1044 = vld [vmem:[%s1001 + $0x150] sm:$0xff]
        %v1045 = vld [vmem:[%s1001 + $0x158] sm:$0xff]
        %v1046 = vld [vmem:[%s1001 + $0x160] sm:$0xff]
        %v1047 = vld [vmem:[%s1001 + $0x168] sm:$0xff]
        %v1048 = vld [vmem:[%s1001 + $0x170] sm:$0xff]
        %v1049 = vld [vmem:[%s1001 + $0x178] sm:$0xff]
        %v1050 = vld [vmem:[%s1001 + $0x180] sm:$0xff]
        %v1051 = vld [vmem:[%s1001 + $0x188] sm:$0xff]
        %v1052 = vld [vmem:[%s1001 + $0x190] sm:$0xff]
        %v1053 = vld [vmem:[%s1001 + $0x198] sm:$0xff]
        %v1054 = vld [vmem:[%s1001 + $0x1a0] sm:$0xff]
        %v1055 = vld [vmem:[%s1001 + $0x1a8] sm:$0xff]
        %v1056 = vld [vmem:[%s1001 + $0x1b0] sm:$0xff]
        %v1057 = vld [vmem:[%s1001 + $0x1b8] sm:$0xff]
        %v1058 = vld [vmem:[%s1001 + $0x1c0] sm:$0xff]
        %v1059 = vld [vmem:[%s1001 + $0x1c8] sm:$0xff]
        %v1060 = vld [vmem:[%s1001 + $0x1d0] sm:$0xff]
        %v1061 = vld [vmem:[%s1001 + $0x1d8] sm:$0xff]
        %v1062 = vld [vmem:[%s1001 + $0x1e0] sm:$0xff]
        %v1063 = vld [vmem:[%s1001 + $0x1e8] sm:$0xff]
        %v1064 = vld [vmem:[%s1001 + $0x1f0] sm:$0xff]
        %v1065 = vld [vmem:[%s1001 + $0x1f8] sm:$0xff]
        %v1066 = vld [vmem:[%s1001 + $0x200] sm:$0xff]
        %v1067 = vld [vmem:[%s1001 + $0x208] sm:$0xff]
        %v1068 = vld [vmem:[%s1001 + $0x210] sm:$0xff]
        %v1069 = vld [vmem:[%s1001 + $0x218] sm:$0xff]
        %v1070 = vld [vmem:[%s1001 + $0x220] sm:$0xff]
        %v1071 = vld [vmem:[%s1001 + $0x228] sm:$0xff]
        %v1072 = vld [vmem:[%s1001 + $0x230] sm:$0xff]
        %v1073 = vld [vmem:[%s1001 + $0x238] sm:$0xff]
        %v1074 = vld [vmem:[%s1001 + $0x240] sm:$0xff]
        %v1075 = vld [vmem:[%s1001 + $0x248] sm:$0xff]
        %v1076 = vld [vmem:[%s1001 + $0x250] sm:$0xff]
        %v1077 = vld [vmem:[%s1001 + $0x258] sm:$0xff]
        %v1078 = vld [vmem:[%s1001 + $0x260] sm:$0xff]
        %v1079 = vld [vmem:[%s1001 + $0x268] sm:$0xff]
        %v1080 = vld [vmem:[%s1001 + $0x270] sm:$0xff]
        %v1081 = vld [vmem:[%s1001 + $0x278] sm:$0xff]
        %v1082 = vld [vmem:[%s1001 + $0x280] sm:$0xff]
        %v1083 = vld [vmem:[%s1001 + $0x288] sm:$0xff]
        %v1084 = vld [vmem:[%s1001 + $0x290] sm:$0xff]
        %v1085 = vld [vmem:[%s1001 + $0x298] sm:$0xff]
        %v1086 = vld [vmem:[%s1001 + $0x2a0] sm:$0xff]
        %v1087 = vld [vmem:[%s1001 + $0x2a8] sm:$0xff]
        %v1088 = vld [vmem:[%s1001 + $0x2b0] sm:$0xff]
        %v1089 = vld [vmem:[%s1001 + $0x2b8] sm:$0xff]
        %v1090 = vld [vmem:[%s1001 + $0x2c0] sm:$0xff]
        %v1091 = vld [vmem:[%s1001 + $0x2c8] sm:$0xff]
        %v1092 = vld [vmem:[%s1001 + $0x2d0] sm:$0xff]
        %v1093 = vld [vmem:[%s1001 + $0x2d8] sm:$0xff]
        %v1094 = vld [vmem:[%s1001 + $0x2e0] sm:$0xff]
        %v1095 = vld [vmem:[%s1001 + $0x2e8] sm:$0xff]
        %v1096 = vld [vmem:[%s1001 + $0x2f0] sm:$0xff]
        %v1097 = vld [vmem:[%s1001 + $0x2f8] sm:$0xff]
        %v1098 = vld [vmem:[%s1001 + $0x300] sm:$0xff]
        %v1099 = vld [vmem:[%s1001 + $0x308] sm:$0xff]
        %v1100 = vld [vmem:[%s1001 + $0x310] sm:$0xff]
        %v1101 = vld [vmem:[%s1001 + $0x318] sm:$0xff]
        %v1102 = vld [vmem:[%s1001 + $0x320] sm:$0xff]
        %v1103 = vld [vmem:[%s1001 + $0x328] sm:$0xff]
        %v1104 = vld [vmem:[%s1001 + $0x330] sm:$0xff]
        %v1105 = vld [vmem:[%s1001 + $0x338] sm:$0xff]
        %v1106 = vld [vmem:[%s1001 + $0x340] sm:$0xff]
        %v1107 = vld [vmem:[%s1001 + $0x348] sm:$0xff]
        %v1108 = vld [vmem:[%s1001 + $0x350] sm:$0xff]
        %v1109 = vld [vmem:[%s1001 + $0x358] sm:$0xff]
        %v1110 = vld [vmem:[%s1001 + $0x360] sm:$0xff]
        %v1111 = vld [vmem:[%s1001 + $0x368] sm:$0xff]
        %v1112 = vld [vmem:[%s1001 + $0x370] sm:$0xff]
        %v1113 = vld [vmem:[%s1001 + $0x378] sm:$0xff]
        %v1114 = vld [vmem:[%s1001 + $0x380] sm:$0xff]
        %v1115 = vld [vmem:[%s1001 + $0x388] sm:$0xff]
        %v1116 = vld [vmem:[%s1001 + $0x390] sm:$0xff]
        %v1117 = vld [vmem:[%s1001 + $0x398] sm:$0xff]
        %v1118 = vld [vmem:[%s1001 + $0x3a0] sm:$0xff]
        %v1119 = vld [vmem:[%s1001 + $0x3a8] sm:$0xff]
        %v1120 = vld [vmem:[%s1001 + $0x3b0] sm:$0xff]
        %v1121 = vld [vmem:[%s1001 + $0x3b8] sm:$0xff]
        %v1122 = vld [vmem:[%s1001 + $0x3c0] sm:$0xff]
        %v1123 = vld [vmem:[%s1001 + $0x3c8] sm:$0xff]
        %v1124 = vld [vmem:[%s1001 + $0x3d0] sm:$0xff]
        %v1125 = vld [vmem:[%s1001 + $0x3d8] sm:$0xff]
        %v1126 = vld [vmem:[%s1001 + $0x3e0] sm:$0xff]
        %v1127 = vld [vmem:[%s1001 + $0x3e8] sm:$0xff]
        %v1128 = vld [vmem:[%s1001 + $0x3f0] sm:$0xff]
        %v1129 = vld [vmem:[%s1001 + $0x3f8] sm:$0xff]
        %v1138 = vrot.slane %v988, 7
        %v1139 = vrot.slane %v989, 7
        %v1140 = vrot.slane %v990, 7
        %v1141 = vrot.slane %v991, 7
        %v1142 = vrot.slane %v992, 7
        %v1143 = vsel %vm395, %v1138, %v1142
        %v1144 = vrot.slane %v993, 7
        %v1145 = vsel %vm395, %v1139, %v1144
        %v1146 = vrot.slane %v994, 7
        %v1147 = vsel %vm395, %v1140, %v1146
        %v1148 = vrot.slane %v995, 7
        %v1149 = vsel %vm395, %v1141, %v1148
        %v1162 = vsel %vm395, 0.0, %v1138
        %v1163 = vsel %vm395, 0.0, %v1139
        %v1164 = vsel %vm395, 0.0, %v1140
        %v1165 = vsel %vm395, 0.0, %v1141
        %s1166 = scalar_lea.vmem [#allocation6], 3072
        %v1167 = vld [vmem:[%s1166] sm:$0xff]
        %v1168 = vld [vmem:[%s1166 + $0x8] sm:$0xff]
        %v1169 = vld [vmem:[%s1166 + $0x10] sm:$0xff]
        %v1170 = vld [vmem:[%s1166 + $0x18] sm:$0xff]
        %v1171 = vld [vmem:[%s1166 + $0x20] sm:$0xff]
        %v1172 = vld [vmem:[%s1166 + $0x28] sm:$0xff]
        %v1173 = vld [vmem:[%s1166 + $0x30] sm:$0xff]
        %v1174 = vld [vmem:[%s1166 + $0x38] sm:$0xff]
        %v1175 = vld [vmem:[%s1166 + $0x40] sm:$0xff]
        %v1176 = vld [vmem:[%s1166 + $0x48] sm:$0xff]
        %v1177 = vld [vmem:[%s1166 + $0x50] sm:$0xff]
        %v1178 = vld [vmem:[%s1166 + $0x58] sm:$0xff]
        %v1179 = vld [vmem:[%s1166 + $0x60] sm:$0xff]
        %v1180 = vld [vmem:[%s1166 + $0x68] sm:$0xff]
        %v1181 = vld [vmem:[%s1166 + $0x70] sm:$0xff]
        %v1182 = vld [vmem:[%s1166 + $0x78] sm:$0xff]
        %v1183 = vld [vmem:[%s1166 + $0x80] sm:$0xff]
        %v1184 = vld [vmem:[%s1166 + $0x88] sm:$0xff]
        %v1185 = vld [vmem:[%s1166 + $0x90] sm:$0xff]
        %v1186 = vld [vmem:[%s1166 + $0x98] sm:$0xff]
        %v1187 = vld [vmem:[%s1166 + $0xa0] sm:$0xff]
        %v1188 = vld [vmem:[%s1166 + $0xa8] sm:$0xff]
        %v1189 = vld [vmem:[%s1166 + $0xb0] sm:$0xff]
        %v1190 = vld [vmem:[%s1166 + $0xb8] sm:$0xff]
        %v1191 = vld [vmem:[%s1166 + $0xc0] sm:$0xff]
        %v1192 = vld [vmem:[%s1166 + $0xc8] sm:$0xff]
        %v1193 = vld [vmem:[%s1166 + $0xd0] sm:$0xff]
        %v1194 = vld [vmem:[%s1166 + $0xd8] sm:$0xff]
        %v1195 = vld [vmem:[%s1166 + $0xe0] sm:$0xff]
        %v1196 = vld [vmem:[%s1166 + $0xe8] sm:$0xff]
        %v1197 = vld [vmem:[%s1166 + $0xf0] sm:$0xff]
        %v1198 = vld [vmem:[%s1166 + $0xf8] sm:$0xff]
        %v1199 = vld [vmem:[%s1166 + $0x100] sm:$0xff]
        %v1200 = vld [vmem:[%s1166 + $0x108] sm:$0xff]
        %v1201 = vld [vmem:[%s1166 + $0x110] sm:$0xff]
        %v1202 = vld [vmem:[%s1166 + $0x118] sm:$0xff]
        %v1203 = vld [vmem:[%s1166 + $0x120] sm:$0xff]
        %v1204 = vld [vmem:[%s1166 + $0x128] sm:$0xff]
        %v1205 = vld [vmem:[%s1166 + $0x130] sm:$0xff]
        %v1206 = vld [vmem:[%s1166 + $0x138] sm:$0xff]
        %v1207 = vld [vmem:[%s1166 + $0x140] sm:$0xff]
        %v1208 = vld [vmem:[%s1166 + $0x148] sm:$0xff]
        %v1209 = vld [vmem:[%s1166 + $0x150] sm:$0xff]
        %v1210 = vld [vmem:[%s1166 + $0x158] sm:$0xff]
        %v1211 = vld [vmem:[%s1166 + $0x160] sm:$0xff]
        %v1212 = vld [vmem:[%s1166 + $0x168] sm:$0xff]
        %v1213 = vld [vmem:[%s1166 + $0x170] sm:$0xff]
        %v1214 = vld [vmem:[%s1166 + $0x178] sm:$0xff]
        %v1215 = vld [vmem:[%s1166 + $0x180] sm:$0xff]
        %v1216 = vld [vmem:[%s1166 + $0x188] sm:$0xff]
        %v1217 = vld [vmem:[%s1166 + $0x190] sm:$0xff]
        %v1218 = vld [vmem:[%s1166 + $0x198] sm:$0xff]
        %v1219 = vld [vmem:[%s1166 + $0x1a0] sm:$0xff]
        %v1220 = vld [vmem:[%s1166 + $0x1a8] sm:$0xff]
        %v1221 = vld [vmem:[%s1166 + $0x1b0] sm:$0xff]
        %v1222 = vld [vmem:[%s1166 + $0x1b8] sm:$0xff]
        %v1223 = vld [vmem:[%s1166 + $0x1c0] sm:$0xff]
        %v1224 = vld [vmem:[%s1166 + $0x1c8] sm:$0xff]
        %v1225 = vld [vmem:[%s1166 + $0x1d0] sm:$0xff]
        %v1226 = vld [vmem:[%s1166 + $0x1d8] sm:$0xff]
        %v1227 = vld [vmem:[%s1166 + $0x1e0] sm:$0xff]
        %v1228 = vld [vmem:[%s1166 + $0x1e8] sm:$0xff]
        %v1229 = vld [vmem:[%s1166 + $0x1f0] sm:$0xff]
        %v1230 = vld [vmem:[%s1166 + $0x1f8] sm:$0xff]
        %v1231 = vld [vmem:[%s1166 + $0x200] sm:$0xff]
        %v1232 = vld [vmem:[%s1166 + $0x208] sm:$0xff]
        %v1233 = vld [vmem:[%s1166 + $0x210] sm:$0xff]
        %v1234 = vld [vmem:[%s1166 + $0x218] sm:$0xff]
        %v1235 = vld [vmem:[%s1166 + $0x220] sm:$0xff]
        %v1236 = vld [vmem:[%s1166 + $0x228] sm:$0xff]
        %v1237 = vld [vmem:[%s1166 + $0x230] sm:$0xff]
        %v1238 = vld [vmem:[%s1166 + $0x238] sm:$0xff]
        %v1239 = vld [vmem:[%s1166 + $0x240] sm:$0xff]
        %v1240 = vld [vmem:[%s1166 + $0x248] sm:$0xff]
        %v1241 = vld [vmem:[%s1166 + $0x250] sm:$0xff]
        %v1242 = vld [vmem:[%s1166 + $0x258] sm:$0xff]
        %v1243 = vld [vmem:[%s1166 + $0x260] sm:$0xff]
        %v1244 = vld [vmem:[%s1166 + $0x268] sm:$0xff]
        %v1245 = vld [vmem:[%s1166 + $0x270] sm:$0xff]
        %v1246 = vld [vmem:[%s1166 + $0x278] sm:$0xff]
        %v1247 = vld [vmem:[%s1166 + $0x280] sm:$0xff]
        %v1248 = vld [vmem:[%s1166 + $0x288] sm:$0xff]
        %v1249 = vld [vmem:[%s1166 + $0x290] sm:$0xff]
        %v1250 = vld [vmem:[%s1166 + $0x298] sm:$0xff]
        %v1251 = vld [vmem:[%s1166 + $0x2a0] sm:$0xff]
        %v1252 = vld [vmem:[%s1166 + $0x2a8] sm:$0xff]
        %v1253 = vld [vmem:[%s1166 + $0x2b0] sm:$0xff]
        %v1254 = vld [vmem:[%s1166 + $0x2b8] sm:$0xff]
        %v1255 = vld [vmem:[%s1166 + $0x2c0] sm:$0xff]
        %v1256 = vld [vmem:[%s1166 + $0x2c8] sm:$0xff]
        %v1257 = vld [vmem:[%s1166 + $0x2d0] sm:$0xff]
        %v1258 = vld [vmem:[%s1166 + $0x2d8] sm:$0xff]
        %v1259 = vld [vmem:[%s1166 + $0x2e0] sm:$0xff]
        %v1260 = vld [vmem:[%s1166 + $0x2e8] sm:$0xff]
        %v1261 = vld [vmem:[%s1166 + $0x2f0] sm:$0xff]
        %v1262 = vld [vmem:[%s1166 + $0x2f8] sm:$0xff]
        %v1263 = vld [vmem:[%s1166 + $0x300] sm:$0xff]
        %v1264 = vld [vmem:[%s1166 + $0x308] sm:$0xff]
        %v1265 = vld [vmem:[%s1166 + $0x310] sm:$0xff]
        %v1266 = vld [vmem:[%s1166 + $0x318] sm:$0xff]
        %v1267 = vld [vmem:[%s1166 + $0x320] sm:$0xff]
        %v1268 = vld [vmem:[%s1166 + $0x328] sm:$0xff]
        %v1269 = vld [vmem:[%s1166 + $0x330] sm:$0xff]
        %v1270 = vld [vmem:[%s1166 + $0x338] sm:$0xff]
        %v1271 = vld [vmem:[%s1166 + $0x340] sm:$0xff]
        %v1272 = vld [vmem:[%s1166 + $0x348] sm:$0xff]
        %v1273 = vld [vmem:[%s1166 + $0x350] sm:$0xff]
        %v1274 = vld [vmem:[%s1166 + $0x358] sm:$0xff]
        %v1275 = vld [vmem:[%s1166 + $0x360] sm:$0xff]
        %v1276 = vld [vmem:[%s1166 + $0x368] sm:$0xff]
        %v1277 = vld [vmem:[%s1166 + $0x370] sm:$0xff]
        %v1278 = vld [vmem:[%s1166 + $0x378] sm:$0xff]
        %v1279 = vld [vmem:[%s1166 + $0x380] sm:$0xff]
        %v1280 = vld [vmem:[%s1166 + $0x388] sm:$0xff]
        %v1281 = vld [vmem:[%s1166 + $0x390] sm:$0xff]
        %v1282 = vld [vmem:[%s1166 + $0x398] sm:$0xff]
        %v1283 = vld [vmem:[%s1166 + $0x3a0] sm:$0xff]
        %v1284 = vld [vmem:[%s1166 + $0x3a8] sm:$0xff]
        %v1285 = vld [vmem:[%s1166 + $0x3b0] sm:$0xff]
        %v1286 = vld [vmem:[%s1166 + $0x3b8] sm:$0xff]
        %v1287 = vld [vmem:[%s1166 + $0x3c0] sm:$0xff]
        %v1288 = vld [vmem:[%s1166 + $0x3c8] sm:$0xff]
        %v1289 = vld [vmem:[%s1166 + $0x3d0] sm:$0xff]
        %v1290 = vld [vmem:[%s1166 + $0x3d8] sm:$0xff]
        %v1291 = vld [vmem:[%s1166 + $0x3e0] sm:$0xff]
        %v1292 = vld [vmem:[%s1166 + $0x3e8] sm:$0xff]
        %v1293 = vld [vmem:[%s1166 + $0x3f0] sm:$0xff]
        %v1294 = vld [vmem:[%s1166 + $0x3f8] sm:$0xff]
        %1295 = vmatpush.msra.mxu0 %v1197
        %1296 = vmatpush.msra.mxu0 %v1195
        %1297 = vmatpush.msra.mxu0 %v1193
        %1298 = vmatpush.msra.mxu0 %v1191
        %1299 = vmatpush.msra.mxu0 %v1189
        %1300 = vmatpush.msra.mxu0 %v1187
        %1301 = vmatpush.msra.mxu0 %v1185
        %1302 = vmatpush.msra.mxu0 %v1183
        %1303 = vmatpush.msra.mxu0 %v1181
        %1304 = vmatpush.msra.mxu0 %v1179
        %1305 = vmatpush.msra.mxu0 %v1177
        %1306 = vmatpush.msra.mxu0 %v1175
        %1307 = vmatpush.msra.mxu0 %v1173
        %1308 = vmatpush.msra.mxu0 %v1171
        %1309 = vmatpush.msra.mxu0 %v1169
        %1310 = vmatpush.msra.mxu0 %v1167
        %1311 = vmatmul.f32.gmra.mxu0 %v1162
        %v1312 = vpop.f32.mrf.mxu0
        %v1313 = vadd.f32 0.0, %v1312
        %1314 = vmatmul.f32.gmra.mxu0 %v1143
        %v1315 = vpop.f32.mrf.mxu0
        %v1316 = vadd.f32 0.0, %v1315
        %1317 = vmatmul.f32.gmra.mxu0 %v1142
        %v1318 = vpop.f32.mrf.mxu0
        %v1319 = vadd.f32 0.0, %v1318
        %1320 = vdwg.mxu0
        %1321 = vmatpush.msra.mxu0 %v1229
        %1322 = vmatpush.msra.mxu0 %v1227
        %1323 = vmatpush.msra.mxu0 %v1225
        %1324 = vmatpush.msra.mxu0 %v1223
        %1325 = vmatpush.msra.mxu0 %v1221
        %1326 = vmatpush.msra.mxu0 %v1219
        %1327 = vmatpush.msra.mxu0 %v1217
        %1328 = vmatpush.msra.mxu0 %v1215
        %1329 = vmatpush.msra.mxu0 %v1213
        %1330 = vmatpush.msra.mxu0 %v1211
        %1331 = vmatpush.msra.mxu0 %v1209
        %1332 = vmatpush.msra.mxu0 %v1207
        %1333 = vmatpush.msra.mxu0 %v1205
        %1334 = vmatpush.msra.mxu0 %v1203
        %1335 = vmatpush.msra.mxu0 %v1201
        %1336 = vmatpush.msra.mxu0 %v1199
        %1337 = vmatmul.f32.gmra.mxu0 %v1163
        %v1338 = vpop.f32.mrf.mxu0
        %v1339 = vadd.f32 %v1313, %v1338
        %1340 = vmatmul.f32.gmra.mxu0 %v1145
        %v1341 = vpop.f32.mrf.mxu0
        %v1342 = vadd.f32 %v1316, %v1341
        %1343 = vmatmul.f32.gmra.mxu0 %v1144
        %v1344 = vpop.f32.mrf.mxu0
        %v1345 = vadd.f32 %v1319, %v1344
        %1346 = vdwg.mxu0
        %1347 = vmatpush.msra.mxu0 %v1261
        %1348 = vmatpush.msra.mxu0 %v1259
        %1349 = vmatpush.msra.mxu0 %v1257
        %1350 = vmatpush.msra.mxu0 %v1255
        %1351 = vmatpush.msra.mxu0 %v1253
        %1352 = vmatpush.msra.mxu0 %v1251
        %1353 = vmatpush.msra.mxu0 %v1249
        %1354 = vmatpush.msra.mxu0 %v1247
        %1355 = vmatpush.msra.mxu0 %v1245
        %1356 = vmatpush.msra.mxu0 %v1243
        %1357 = vmatpush.msra.mxu0 %v1241
        %1358 = vmatpush.msra.mxu0 %v1239
        %1359 = vmatpush.msra.mxu0 %v1237
        %1360 = vmatpush.msra.mxu0 %v1235
        %1361 = vmatpush.msra.mxu0 %v1233
        %1362 = vmatpush.msra.mxu0 %v1231
        %1363 = vmatmul.f32.gmra.mxu0 %v1164
        %v1364 = vpop.f32.mrf.mxu0
        %v1365 = vadd.f32 %v1339, %v1364
        %1366 = vmatmul.f32.gmra.mxu0 %v1147
        %v1367 = vpop.f32.mrf.mxu0
        %v1368 = vadd.f32 %v1342, %v1367
        %1369 = vmatmul.f32.gmra.mxu0 %v1146
        %v1370 = vpop.f32.mrf.mxu0
        %v1371 = vadd.f32 %v1345, %v1370
        %1372 = vdwg.mxu0
        %1373 = vmatpush.msra.mxu0 %v1293
        %1374 = vmatpush.msra.mxu0 %v1291
        %1375 = vmatpush.msra.mxu0 %v1289
        %1376 = vmatpush.msra.mxu0 %v1287
        %1377 = vmatpush.msra.mxu0 %v1285
        %1378 = vmatpush.msra.mxu0 %v1283
        %1379 = vmatpush.msra.mxu0 %v1281
        %1380 = vmatpush.msra.mxu0 %v1279
        %1381 = vmatpush.msra.mxu0 %v1277
        %1382 = vmatpush.msra.mxu0 %v1275
        %1383 = vmatpush.msra.mxu0 %v1273
        %1384 = vmatpush.msra.mxu0 %v1271
        %1385 = vmatpush.msra.mxu0 %v1269
        %1386 = vmatpush.msra.mxu0 %v1267
        %1387 = vmatpush.msra.mxu0 %v1265
        %1388 = vmatpush.msra.mxu0 %v1263
        %1389 = vmatmul.f32.gmra.mxu0 %v1165
        %v1390 = vpop.f32.mrf.mxu0
        %v1391 = vadd.f32 %v1365, %v1390
        %1392 = vmatmul.f32.gmra.mxu0 %v1149
        %v1393 = vpop.f32.mrf.mxu0
        %v1394 = vadd.f32 %v1368, %v1393
        %1395 = vmatmul.f32.gmra.mxu0 %v1148
        %v1396 = vpop.f32.mrf.mxu0
        %v1397 = vadd.f32 %v1371, %v1396
        %1398 = vdwg.mxu0
        %1399 = vmatpush.msra.mxu0 %v1198
        %1400 = vmatpush.msra.mxu0 %v1196
        %1401 = vmatpush.msra.mxu0 %v1194
        %1402 = vmatpush.msra.mxu0 %v1192
        %1403 = vmatpush.msra.mxu0 %v1190
        %1404 = vmatpush.msra.mxu0 %v1188
        %1405 = vmatpush.msra.mxu0 %v1186
        %1406 = vmatpush.msra.mxu0 %v1184
        %1407 = vmatpush.msra.mxu0 %v1182
        %1408 = vmatpush.msra.mxu0 %v1180
        %1409 = vmatpush.msra.mxu0 %v1178
        %1410 = vmatpush.msra.mxu0 %v1176
        %1411 = vmatpush.msra.mxu0 %v1174
        %1412 = vmatpush.msra.mxu0 %v1172
        %1413 = vmatpush.msra.mxu0 %v1170
        %1414 = vmatpush.msra.mxu0 %v1168
        %1415 = vmatmul.f32.gmra.mxu0 %v1162
        %v1416 = vpop.f32.mrf.mxu0
        %v1417 = vadd.f32 0.0, %v1416
        %1418 = vmatmul.f32.gmra.mxu0 %v1143
        %v1419 = vpop.f32.mrf.mxu0
        %v1420 = vadd.f32 0.0, %v1419
        %1421 = vmatmul.f32.gmra.mxu0 %v1142
        %v1422 = vpop.f32.mrf.mxu0
        %v1423 = vadd.f32 0.0, %v1422
        %1424 = vdwg.mxu0
        %1425 = vmatpush.msra.mxu0 %v1230
        %1426 = vmatpush.msra.mxu0 %v1228
        %1427 = vmatpush.msra.mxu0 %v1226
        %1428 = vmatpush.msra.mxu0 %v1224
        %1429 = vmatpush.msra.mxu0 %v1222
        %1430 = vmatpush.msra.mxu0 %v1220
        %1431 = vmatpush.msra.mxu0 %v1218
        %1432 = vmatpush.msra.mxu0 %v1216
        %1433 = vmatpush.msra.mxu0 %v1214
        %1434 = vmatpush.msra.mxu0 %v1212
        %1435 = vmatpush.msra.mxu0 %v1210
        %1436 = vmatpush.msra.mxu0 %v1208
        %1437 = vmatpush.msra.mxu0 %v1206
        %1438 = vmatpush.msra.mxu0 %v1204
        %1439 = vmatpush.msra.mxu0 %v1202
        %1440 = vmatpush.msra.mxu0 %v1200
        %1441 = vmatmul.f32.gmra.mxu0 %v1163
        %v1442 = vpop.f32.mrf.mxu0
        %v1443 = vadd.f32 %v1417, %v1442
        %1444 = vmatmul.f32.gmra.mxu0 %v1145
        %v1445 = vpop.f32.mrf.mxu0
        %v1446 = vadd.f32 %v1420, %v1445
        %1447 = vmatmul.f32.gmra.mxu0 %v1144
        %v1448 = vpop.f32.mrf.mxu0
        %v1449 = vadd.f32 %v1423, %v1448
        %1450 = vdwg.mxu0
        %1451 = vmatpush.msra.mxu0 %v1262
        %1452 = vmatpush.msra.mxu0 %v1260
        %1453 = vmatpush.msra.mxu0 %v1258
        %1454 = vmatpush.msra.mxu0 %v1256
        %1455 = vmatpush.msra.mxu0 %v1254
        %1456 = vmatpush.msra.mxu0 %v1252
        %1457 = vmatpush.msra.mxu0 %v1250
        %1458 = vmatpush.msra.mxu0 %v1248
        %1459 = vmatpush.msra.mxu0 %v1246
        %1460 = vmatpush.msra.mxu0 %v1244
        %1461 = vmatpush.msra.mxu0 %v1242
        %1462 = vmatpush.msra.mxu0 %v1240
        %1463 = vmatpush.msra.mxu0 %v1238
        %1464 = vmatpush.msra.mxu0 %v1236
        %1465 = vmatpush.msra.mxu0 %v1234
        %1466 = vmatpush.msra.mxu0 %v1232
        %1467 = vmatmul.f32.gmra.mxu0 %v1164
        %v1468 = vpop.f32.mrf.mxu0
        %v1469 = vadd.f32 %v1443, %v1468
        %1470 = vmatmul.f32.gmra.mxu0 %v1147
        %v1471 = vpop.f32.mrf.mxu0
        %v1472 = vadd.f32 %v1446, %v1471
        %1473 = vmatmul.f32.gmra.mxu0 %v1146
        %v1474 = vpop.f32.mrf.mxu0
        %v1475 = vadd.f32 %v1449, %v1474
        %1476 = vdwg.mxu0
        %1477 = vmatpush.msra.mxu0 %v1294
        %1478 = vmatpush.msra.mxu0 %v1292
        %1479 = vmatpush.msra.mxu0 %v1290
        %1480 = vmatpush.msra.mxu0 %v1288
        %1481 = vmatpush.msra.mxu0 %v1286
        %1482 = vmatpush.msra.mxu0 %v1284
        %1483 = vmatpush.msra.mxu0 %v1282
        %1484 = vmatpush.msra.mxu0 %v1280
        %1485 = vmatpush.msra.mxu0 %v1278
        %1486 = vmatpush.msra.mxu0 %v1276
        %1487 = vmatpush.msra.mxu0 %v1274
        %1488 = vmatpush.msra.mxu0 %v1272
        %1489 = vmatpush.msra.mxu0 %v1270
        %1490 = vmatpush.msra.mxu0 %v1268
        %1491 = vmatpush.msra.mxu0 %v1266
        %1492 = vmatpush.msra.mxu0 %v1264
        %1493 = vmatmul.f32.gmra.mxu0 %v1165
        %v1494 = vpop.f32.mrf.mxu0
        %v1495 = vadd.f32 %v1469, %v1494
        %1496 = vmatmul.f32.gmra.mxu0 %v1149
        %v1497 = vpop.f32.mrf.mxu0
        %v1498 = vadd.f32 %v1472, %v1497
        %1499 = vmatmul.f32.gmra.mxu0 %v1148
        %v1500 = vpop.f32.mrf.mxu0
        %v1501 = vadd.f32 %v1475, %v1500
        %1502 = vdwg.mxu0
        %1503 = vmatpush.msra.mxu0 %v1032
        %1504 = vmatpush.msra.mxu0 %v1030
        %1505 = vmatpush.msra.mxu0 %v1028
        %1506 = vmatpush.msra.mxu0 %v1026
        %1507 = vmatpush.msra.mxu0 %v1024
        %1508 = vmatpush.msra.mxu0 %v1022
        %1509 = vmatpush.msra.mxu0 %v1020
        %1510 = vmatpush.msra.mxu0 %v1018
        %1511 = vmatpush.msra.mxu0 %v1016
        %1512 = vmatpush.msra.mxu0 %v1014
        %1513 = vmatpush.msra.mxu0 %v1012
        %1514 = vmatpush.msra.mxu0 %v1010
        %1515 = vmatpush.msra.mxu0 %v1008
        %1516 = vmatpush.msra.mxu0 %v1006
        %1517 = vmatpush.msra.mxu0 %v1004
        %1518 = vmatpush.msra.mxu0 %v1002
        %1519 = vmatmul.f32.gmra.mxu0 %v678
        %v1520 = vpop.f32.mrf.mxu0
        %v1521 = vadd.f32 %v1391, %v1520
        %1522 = vmatmul.f32.gmra.mxu0 %v682
        %v1523 = vpop.f32.mrf.mxu0
        %v1524 = vadd.f32 %v1394, %v1523
        %1525 = vmatmul.f32.gmra.mxu0 %v686
        %v1526 = vpop.f32.mrf.mxu0
        %v1527 = vadd.f32 %v1397, %v1526
        %1528 = vdwg.mxu0
        %1529 = vmatpush.msra.mxu0 %v1064
        %1530 = vmatpush.msra.mxu0 %v1062
        %1531 = vmatpush.msra.mxu0 %v1060
        %1532 = vmatpush.msra.mxu0 %v1058
        %1533 = vmatpush.msra.mxu0 %v1056
        %1534 = vmatpush.msra.mxu0 %v1054
        %1535 = vmatpush.msra.mxu0 %v1052
        %1536 = vmatpush.msra.mxu0 %v1050
        %1537 = vmatpush.msra.mxu0 %v1048
        %1538 = vmatpush.msra.mxu0 %v1046
        %1539 = vmatpush.msra.mxu0 %v1044
        %1540 = vmatpush.msra.mxu0 %v1042
        %1541 = vmatpush.msra.mxu0 %v1040
        %1542 = vmatpush.msra.mxu0 %v1038
        %1543 = vmatpush.msra.mxu0 %v1036
        %1544 = vmatpush.msra.mxu0 %v1034
        %1545 = vmatmul.f32.gmra.mxu0 %v679
        %v1546 = vpop.f32.mrf.mxu0
        %v1547 = vadd.f32 %v1521, %v1546
        %1548 = vmatmul.f32.gmra.mxu0 %v683
        %v1549 = vpop.f32.mrf.mxu0
        %v1550 = vadd.f32 %v1524, %v1549
        %1551 = vmatmul.f32.gmra.mxu0 %v687
        %v1552 = vpop.f32.mrf.mxu0
        %v1553 = vadd.f32 %v1527, %v1552
        %1554 = vdwg.mxu0
        %1555 = vmatpush.msra.mxu0 %v1096
        %1556 = vmatpush.msra.mxu0 %v1094
        %1557 = vmatpush.msra.mxu0 %v1092
        %1558 = vmatpush.msra.mxu0 %v1090
        %1559 = vmatpush.msra.mxu0 %v1088
        %1560 = vmatpush.msra.mxu0 %v1086
        %1561 = vmatpush.msra.mxu0 %v1084
        %1562 = vmatpush.msra.mxu0 %v1082
        %1563 = vmatpush.msra.mxu0 %v1080
        %1564 = vmatpush.msra.mxu0 %v1078
        %1565 = vmatpush.msra.mxu0 %v1076
        %1566 = vmatpush.msra.mxu0 %v1074
        %1567 = vmatpush.msra.mxu0 %v1072
        %1568 = vmatpush.msra.mxu0 %v1070
        %1569 = vmatpush.msra.mxu0 %v1068
        %1570 = vmatpush.msra.mxu0 %v1066
        %1571 = vmatmul.f32.gmra.mxu0 %v680
        %v1572 = vpop.f32.mrf.mxu0
        %v1573 = vadd.f32 %v1547, %v1572
        %1574 = vmatmul.f32.gmra.mxu0 %v684
        %v1575 = vpop.f32.mrf.mxu0
        %v1576 = vadd.f32 %v1550, %v1575
        %1577 = vmatmul.f32.gmra.mxu0 %v688
        %v1578 = vpop.f32.mrf.mxu0
        %v1579 = vadd.f32 %v1553, %v1578
        %1580 = vdwg.mxu0
        %1581 = vmatpush.msra.mxu0 %v1128
        %1582 = vmatpush.msra.mxu0 %v1126
        %1583 = vmatpush.msra.mxu0 %v1124
        %1584 = vmatpush.msra.mxu0 %v1122
        %1585 = vmatpush.msra.mxu0 %v1120
        %1586 = vmatpush.msra.mxu0 %v1118
        %1587 = vmatpush.msra.mxu0 %v1116
        %1588 = vmatpush.msra.mxu0 %v1114
        %1589 = vmatpush.msra.mxu0 %v1112
        %1590 = vmatpush.msra.mxu0 %v1110
        %1591 = vmatpush.msra.mxu0 %v1108
        %1592 = vmatpush.msra.mxu0 %v1106
        %1593 = vmatpush.msra.mxu0 %v1104
        %1594 = vmatpush.msra.mxu0 %v1102
        %1595 = vmatpush.msra.mxu0 %v1100
        %1596 = vmatpush.msra.mxu0 %v1098
        %1597 = vmatmul.f32.gmra.mxu0 %v681
        %v1598 = vpop.f32.mrf.mxu0
        %v1599 = vadd.f32 %v1573, %v1598
        %1600 = vmatmul.f32.gmra.mxu0 %v685
        %v1601 = vpop.f32.mrf.mxu0
        %v1602 = vadd.f32 %v1576, %v1601
        %1603 = vmatmul.f32.gmra.mxu0 %v689
        %v1604 = vpop.f32.mrf.mxu0
        %v1605 = vadd.f32 %v1579, %v1604
        %1606 = vdwg.mxu0
        %1607 = vmatpush.msra.mxu0 %v1033
        %1608 = vmatpush.msra.mxu0 %v1031
        %1609 = vmatpush.msra.mxu0 %v1029
        %1610 = vmatpush.msra.mxu0 %v1027
        %1611 = vmatpush.msra.mxu0 %v1025
        %1612 = vmatpush.msra.mxu0 %v1023
        %1613 = vmatpush.msra.mxu0 %v1021
        %1614 = vmatpush.msra.mxu0 %v1019
        %1615 = vmatpush.msra.mxu0 %v1017
        %1616 = vmatpush.msra.mxu0 %v1015
        %1617 = vmatpush.msra.mxu0 %v1013
        %1618 = vmatpush.msra.mxu0 %v1011
        %1619 = vmatpush.msra.mxu0 %v1009
        %1620 = vmatpush.msra.mxu0 %v1007
        %1621 = vmatpush.msra.mxu0 %v1005
        %1622 = vmatpush.msra.mxu0 %v1003
        %1623 = vmatmul.f32.gmra.mxu0 %v678
        %v1624 = vpop.f32.mrf.mxu0
        %v1625 = vadd.f32 %v1495, %v1624
        %1626 = vmatmul.f32.gmra.mxu0 %v682
        %v1627 = vpop.f32.mrf.mxu0
        %v1628 = vadd.f32 %v1498, %v1627
        %1629 = vmatmul.f32.gmra.mxu0 %v686
        %v1630 = vpop.f32.mrf.mxu0
        %v1631 = vadd.f32 %v1501, %v1630
        %1632 = vdwg.mxu0
        %1633 = vmatpush.msra.mxu0 %v1065
        %1634 = vmatpush.msra.mxu0 %v1063
        %1635 = vmatpush.msra.mxu0 %v1061
        %1636 = vmatpush.msra.mxu0 %v1059
        %1637 = vmatpush.msra.mxu0 %v1057
        %1638 = vmatpush.msra.mxu0 %v1055
        %1639 = vmatpush.msra.mxu0 %v1053
        %1640 = vmatpush.msra.mxu0 %v1051
        %1641 = vmatpush.msra.mxu0 %v1049
        %1642 = vmatpush.msra.mxu0 %v1047
        %1643 = vmatpush.msra.mxu0 %v1045
        %1644 = vmatpush.msra.mxu0 %v1043
        %1645 = vmatpush.msra.mxu0 %v1041
        %1646 = vmatpush.msra.mxu0 %v1039
        %1647 = vmatpush.msra.mxu0 %v1037
        %1648 = vmatpush.msra.mxu0 %v1035
        %1649 = vmatmul.f32.gmra.mxu0 %v679
        %v1650 = vpop.f32.mrf.mxu0
        %v1651 = vadd.f32 %v1625, %v1650
        %1652 = vmatmul.f32.gmra.mxu0 %v683
        %v1653 = vpop.f32.mrf.mxu0
        %v1654 = vadd.f32 %v1628, %v1653
        %1655 = vmatmul.f32.gmra.mxu0 %v687
        %v1656 = vpop.f32.mrf.mxu0
        %v1657 = vadd.f32 %v1631, %v1656
        %1658 = vdwg.mxu0
        %1659 = vmatpush.msra.mxu0 %v1097
        %1660 = vmatpush.msra.mxu0 %v1095
        %1661 = vmatpush.msra.mxu0 %v1093
        %1662 = vmatpush.msra.mxu0 %v1091
        %1663 = vmatpush.msra.mxu0 %v1089
        %1664 = vmatpush.msra.mxu0 %v1087
        %1665 = vmatpush.msra.mxu0 %v1085
        %1666 = vmatpush.msra.mxu0 %v1083
        %1667 = vmatpush.msra.mxu0 %v1081
        %1668 = vmatpush.msra.mxu0 %v1079
        %1669 = vmatpush.msra.mxu0 %v1077
        %1670 = vmatpush.msra.mxu0 %v1075
        %1671 = vmatpush.msra.mxu0 %v1073
        %1672 = vmatpush.msra.mxu0 %v1071
        %1673 = vmatpush.msra.mxu0 %v1069
        %1674 = vmatpush.msra.mxu0 %v1067
        %1675 = vmatmul.f32.gmra.mxu0 %v680
        %v1676 = vpop.f32.mrf.mxu0
        %v1677 = vadd.f32 %v1651, %v1676
        %1678 = vmatmul.f32.gmra.mxu0 %v684
        %v1679 = vpop.f32.mrf.mxu0
        %v1680 = vadd.f32 %v1654, %v1679
        %1681 = vmatmul.f32.gmra.mxu0 %v688
        %v1682 = vpop.f32.mrf.mxu0
        %v1683 = vadd.f32 %v1657, %v1682
        %1684 = vdwg.mxu0
        %1685 = vmatpush.msra.mxu0 %v1129
        %1686 = vmatpush.msra.mxu0 %v1127
        %1687 = vmatpush.msra.mxu0 %v1125
        %1688 = vmatpush.msra.mxu0 %v1123
        %1689 = vmatpush.msra.mxu0 %v1121
        %1690 = vmatpush.msra.mxu0 %v1119
        %1691 = vmatpush.msra.mxu0 %v1117
        %1692 = vmatpush.msra.mxu0 %v1115
        %1693 = vmatpush.msra.mxu0 %v1113
        %1694 = vmatpush.msra.mxu0 %v1111
        %1695 = vmatpush.msra.mxu0 %v1109
        %1696 = vmatpush.msra.mxu0 %v1107
        %1697 = vmatpush.msra.mxu0 %v1105
        %1698 = vmatpush.msra.mxu0 %v1103
        %1699 = vmatpush.msra.mxu0 %v1101
        %1700 = vmatpush.msra.mxu0 %v1099
        %1701 = vmatmul.f32.gmra.mxu0 %v681
        %v1702 = vpop.f32.mrf.mxu0
        %v1703 = vadd.f32 %v1677, %v1702
        %1704 = vmatmul.f32.gmra.mxu0 %v685
        %v1705 = vpop.f32.mrf.mxu0
        %v1706 = vadd.f32 %v1680, %v1705
        %1707 = vmatmul.f32.gmra.mxu0 %v689
        %v1708 = vpop.f32.mrf.mxu0
        %v1709 = vadd.f32 %v1683, %v1708
        %1710 = vdwg.mxu0
        %v1712 = vperm.slane %v1000, 0
        %v1713 = vperm.slane %v1000, 1
        %v1716 = vadd.f32 %v1599, %v1712
        %v1717 = vadd.f32 %v1703, %v1713
        %v1718 = vadd.f32 %v1602, %v1712
        %v1719 = vadd.f32 %v1706, %v1713
        %v1720 = vadd.f32 %v1605, %v1712
        %v1721 = vadd.f32 %v1709, %v1713
        %v1722 = vmax.f32 %v1716, 0.0
        %v1723 = vmax.f32 %v1717, 0.0
        %v1724 = vmax.f32 %v1718, 0.0
        %v1725 = vmax.f32 %v1719, 0.0
        %v1726 = vmax.f32 %v1720, 0.0
        %v1727 = vmax.f32 %v1721, 0.0
        %v1728 = vld [vmem:[#allocation6] sm:$0xff]
        %v1729 = vld [vmem:[#allocation6 + $0x8] sm:$0xff]
        %v1730 = vld [vmem:[#allocation6 + $0x10] sm:$0xff]
        %v1731 = vld [vmem:[#allocation6 + $0x18] sm:$0xff]
        %v1732 = vld [vmem:[#allocation6 + $0x20] sm:$0xff]
        %v1733 = vld [vmem:[#allocation6 + $0x28] sm:$0xff]
        %v1734 = vld [vmem:[#allocation6 + $0x30] sm:$0xff]
        %v1735 = vld [vmem:[#allocation6 + $0x38] sm:$0xff]
        %v1736 = vld [vmem:[#allocation6 + $0x40] sm:$0xff]
        %v1737 = vld [vmem:[#allocation6 + $0x48] sm:$0xff]
        %v1738 = vld [vmem:[#allocation6 + $0x50] sm:$0xff]
        %v1739 = vld [vmem:[#allocation6 + $0x58] sm:$0xff]
        %v1740 = vld [vmem:[#allocation6 + $0x60] sm:$0xff]
        %v1741 = vld [vmem:[#allocation6 + $0x68] sm:$0xff]
        %v1742 = vld [vmem:[#allocation6 + $0x70] sm:$0xff]
        %v1743 = vld [vmem:[#allocation6 + $0x78] sm:$0xff]
        %v1744 = vld [vmem:[#allocation6 + $0x80] sm:$0xff]
        %v1745 = vld [vmem:[#allocation6 + $0x88] sm:$0xff]
        %v1746 = vld [vmem:[#allocation6 + $0x90] sm:$0xff]
        %v1747 = vld [vmem:[#allocation6 + $0x98] sm:$0xff]
        %v1748 = vld [vmem:[#allocation6 + $0xa0] sm:$0xff]
        %v1749 = vld [vmem:[#allocation6 + $0xa8] sm:$0xff]
        %v1750 = vld [vmem:[#allocation6 + $0xb0] sm:$0xff]
        %v1751 = vld [vmem:[#allocation6 + $0xb8] sm:$0xff]
        %v1752 = vld [vmem:[#allocation6 + $0xc0] sm:$0xff]
        %v1753 = vld [vmem:[#allocation6 + $0xc8] sm:$0xff]
        %v1754 = vld [vmem:[#allocation6 + $0xd0] sm:$0xff]
        %v1755 = vld [vmem:[#allocation6 + $0xd8] sm:$0xff]
        %v1756 = vld [vmem:[#allocation6 + $0xe0] sm:$0xff]
        %v1757 = vld [vmem:[#allocation6 + $0xe8] sm:$0xff]
        %v1758 = vld [vmem:[#allocation6 + $0xf0] sm:$0xff]
        %v1759 = vld [vmem:[#allocation6 + $0xf8] sm:$0xff]
        %v1760 = vld [vmem:[#allocation6 + $0x100] sm:$0xff]
        %v1761 = vld [vmem:[#allocation6 + $0x108] sm:$0xff]
        %v1762 = vld [vmem:[#allocation6 + $0x110] sm:$0xff]
        %v1763 = vld [vmem:[#allocation6 + $0x118] sm:$0xff]
        %v1764 = vld [vmem:[#allocation6 + $0x120] sm:$0xff]
        %v1765 = vld [vmem:[#allocation6 + $0x128] sm:$0xff]
        %v1766 = vld [vmem:[#allocation6 + $0x130] sm:$0xff]
        %v1767 = vld [vmem:[#allocation6 + $0x138] sm:$0xff]
        %v1768 = vld [vmem:[#allocation6 + $0x140] sm:$0xff]
        %v1769 = vld [vmem:[#allocation6 + $0x148] sm:$0xff]
        %v1770 = vld [vmem:[#allocation6 + $0x150] sm:$0xff]
        %v1771 = vld [vmem:[#allocation6 + $0x158] sm:$0xff]
        %v1772 = vld [vmem:[#allocation6 + $0x160] sm:$0xff]
        %v1773 = vld [vmem:[#allocation6 + $0x168] sm:$0xff]
        %v1774 = vld [vmem:[#allocation6 + $0x170] sm:$0xff]
        %v1775 = vld [vmem:[#allocation6 + $0x178] sm:$0xff]
        %v1776 = vld [vmem:[#allocation6 + $0x180] sm:$0xff]
        %v1777 = vld [vmem:[#allocation6 + $0x188] sm:$0xff]
        %v1778 = vld [vmem:[#allocation6 + $0x190] sm:$0xff]
        %v1779 = vld [vmem:[#allocation6 + $0x198] sm:$0xff]
        %v1780 = vld [vmem:[#allocation6 + $0x1a0] sm:$0xff]
        %v1781 = vld [vmem:[#allocation6 + $0x1a8] sm:$0xff]
        %v1782 = vld [vmem:[#allocation6 + $0x1b0] sm:$0xff]
        %v1783 = vld [vmem:[#allocation6 + $0x1b8] sm:$0xff]
        %v1784 = vld [vmem:[#allocation6 + $0x1c0] sm:$0xff]
        %v1785 = vld [vmem:[#allocation6 + $0x1c8] sm:$0xff]
        %v1786 = vld [vmem:[#allocation6 + $0x1d0] sm:$0xff]
        %v1787 = vld [vmem:[#allocation6 + $0x1d8] sm:$0xff]
        %v1788 = vld [vmem:[#allocation6 + $0x1e0] sm:$0xff]
        %v1789 = vld [vmem:[#allocation6 + $0x1e8] sm:$0xff]
        %v1790 = vld [vmem:[#allocation6 + $0x1f0] sm:$0xff]
        %v1791 = vld [vmem:[#allocation6 + $0x1f8] sm:$0xff]
        %v1792 = vld [vmem:[#allocation6 + $0x200] sm:$0xff]
        %v1793 = vld [vmem:[#allocation6 + $0x208] sm:$0xff]
        %v1794 = vld [vmem:[#allocation6 + $0x210] sm:$0xff]
        %v1795 = vld [vmem:[#allocation6 + $0x218] sm:$0xff]
        %v1796 = vld [vmem:[#allocation6 + $0x220] sm:$0xff]
        %v1797 = vld [vmem:[#allocation6 + $0x228] sm:$0xff]
        %v1798 = vld [vmem:[#allocation6 + $0x230] sm:$0xff]
        %v1799 = vld [vmem:[#allocation6 + $0x238] sm:$0xff]
        %v1800 = vld [vmem:[#allocation6 + $0x240] sm:$0xff]
        %v1801 = vld [vmem:[#allocation6 + $0x248] sm:$0xff]
        %v1802 = vld [vmem:[#allocation6 + $0x250] sm:$0xff]
        %v1803 = vld [vmem:[#allocation6 + $0x258] sm:$0xff]
        %v1804 = vld [vmem:[#allocation6 + $0x260] sm:$0xff]
        %v1805 = vld [vmem:[#allocation6 + $0x268] sm:$0xff]
        %v1806 = vld [vmem:[#allocation6 + $0x270] sm:$0xff]
        %v1807 = vld [vmem:[#allocation6 + $0x278] sm:$0xff]
        %v1808 = vld [vmem:[#allocation6 + $0x280] sm:$0xff]
        %v1809 = vld [vmem:[#allocation6 + $0x288] sm:$0xff]
        %v1810 = vld [vmem:[#allocation6 + $0x290] sm:$0xff]
        %v1811 = vld [vmem:[#allocation6 + $0x298] sm:$0xff]
        %v1812 = vld [vmem:[#allocation6 + $0x2a0] sm:$0xff]
        %v1813 = vld [vmem:[#allocation6 + $0x2a8] sm:$0xff]
        %v1814 = vld [vmem:[#allocation6 + $0x2b0] sm:$0xff]
        %v1815 = vld [vmem:[#allocation6 + $0x2b8] sm:$0xff]
        %v1816 = vld [vmem:[#allocation6 + $0x2c0] sm:$0xff]
        %v1817 = vld [vmem:[#allocation6 + $0x2c8] sm:$0xff]
        %v1818 = vld [vmem:[#allocation6 + $0x2d0] sm:$0xff]
        %v1819 = vld [vmem:[#allocation6 + $0x2d8] sm:$0xff]
        %v1820 = vld [vmem:[#allocation6 + $0x2e0] sm:$0xff]
        %v1821 = vld [vmem:[#allocation6 + $0x2e8] sm:$0xff]
        %v1822 = vld [vmem:[#allocation6 + $0x2f0] sm:$0xff]
        %v1823 = vld [vmem:[#allocation6 + $0x2f8] sm:$0xff]
        %v1824 = vld [vmem:[#allocation6 + $0x300] sm:$0xff]
        %v1825 = vld [vmem:[#allocation6 + $0x308] sm:$0xff]
        %v1826 = vld [vmem:[#allocation6 + $0x310] sm:$0xff]
        %v1827 = vld [vmem:[#allocation6 + $0x318] sm:$0xff]
        %v1828 = vld [vmem:[#allocation6 + $0x320] sm:$0xff]
        %v1829 = vld [vmem:[#allocation6 + $0x328] sm:$0xff]
        %v1830 = vld [vmem:[#allocation6 + $0x330] sm:$0xff]
        %v1831 = vld [vmem:[#allocation6 + $0x338] sm:$0xff]
        %v1832 = vld [vmem:[#allocation6 + $0x340] sm:$0xff]
        %v1833 = vld [vmem:[#allocation6 + $0x348] sm:$0xff]
        %v1834 = vld [vmem:[#allocation6 + $0x350] sm:$0xff]
        %v1835 = vld [vmem:[#allocation6 + $0x358] sm:$0xff]
        %v1836 = vld [vmem:[#allocation6 + $0x360] sm:$0xff]
        %v1837 = vld [vmem:[#allocation6 + $0x368] sm:$0xff]
        %v1838 = vld [vmem:[#allocation6 + $0x370] sm:$0xff]
        %v1839 = vld [vmem:[#allocation6 + $0x378] sm:$0xff]
        %v1840 = vld [vmem:[#allocation6 + $0x380] sm:$0xff]
        %v1841 = vld [vmem:[#allocation6 + $0x388] sm:$0xff]
        %v1842 = vld [vmem:[#allocation6 + $0x390] sm:$0xff]
        %v1843 = vld [vmem:[#allocation6 + $0x398] sm:$0xff]
        %v1844 = vld [vmem:[#allocation6 + $0x3a0] sm:$0xff]
        %v1845 = vld [vmem:[#allocation6 + $0x3a8] sm:$0xff]
        %v1846 = vld [vmem:[#allocation6 + $0x3b0] sm:$0xff]
        %v1847 = vld [vmem:[#allocation6 + $0x3b8] sm:$0xff]
        %v1848 = vld [vmem:[#allocation6 + $0x3c0] sm:$0xff]
        %v1849 = vld [vmem:[#allocation6 + $0x3c8] sm:$0xff]
        %v1850 = vld [vmem:[#allocation6 + $0x3d0] sm:$0xff]
        %v1851 = vld [vmem:[#allocation6 + $0x3d8] sm:$0xff]
        %v1852 = vld [vmem:[#allocation6 + $0x3e0] sm:$0xff]
        %v1853 = vld [vmem:[#allocation6 + $0x3e8] sm:$0xff]
        %v1854 = vld [vmem:[#allocation6 + $0x3f0] sm:$0xff]
        %v1855 = vld [vmem:[#allocation6 + $0x3f8] sm:$0xff]
        %s1856 = scalar_lea.vmem [#allocation6], 2048
        %v1857 = vld [vmem:[%s1856] sm:$0xff]
        %v1858 = vld [vmem:[%s1856 + $0x8] sm:$0xff]
        %v1859 = vld [vmem:[%s1856 + $0x10] sm:$0xff]
        %v1860 = vld [vmem:[%s1856 + $0x18] sm:$0xff]
        %v1861 = vld [vmem:[%s1856 + $0x20] sm:$0xff]
        %v1862 = vld [vmem:[%s1856 + $0x28] sm:$0xff]
        %v1863 = vld [vmem:[%s1856 + $0x30] sm:$0xff]
        %v1864 = vld [vmem:[%s1856 + $0x38] sm:$0xff]
        %v1865 = vld [vmem:[%s1856 + $0x40] sm:$0xff]
        %v1866 = vld [vmem:[%s1856 + $0x48] sm:$0xff]
        %v1867 = vld [vmem:[%s1856 + $0x50] sm:$0xff]
        %v1868 = vld [vmem:[%s1856 + $0x58] sm:$0xff]
        %v1869 = vld [vmem:[%s1856 + $0x60] sm:$0xff]
        %v1870 = vld [vmem:[%s1856 + $0x68] sm:$0xff]
        %v1871 = vld [vmem:[%s1856 + $0x70] sm:$0xff]
        %v1872 = vld [vmem:[%s1856 + $0x78] sm:$0xff]
        %v1873 = vld [vmem:[%s1856 + $0x80] sm:$0xff]
        %v1874 = vld [vmem:[%s1856 + $0x88] sm:$0xff]
        %v1875 = vld [vmem:[%s1856 + $0x90] sm:$0xff]
        %v1876 = vld [vmem:[%s1856 + $0x98] sm:$0xff]
        %v1877 = vld [vmem:[%s1856 + $0xa0] sm:$0xff]
        %v1878 = vld [vmem:[%s1856 + $0xa8] sm:$0xff]
        %v1879 = vld [vmem:[%s1856 + $0xb0] sm:$0xff]
        %v1880 = vld [vmem:[%s1856 + $0xb8] sm:$0xff]
        %v1881 = vld [vmem:[%s1856 + $0xc0] sm:$0xff]
        %v1882 = vld [vmem:[%s1856 + $0xc8] sm:$0xff]
        %v1883 = vld [vmem:[%s1856 + $0xd0] sm:$0xff]
        %v1884 = vld [vmem:[%s1856 + $0xd8] sm:$0xff]
        %v1885 = vld [vmem:[%s1856 + $0xe0] sm:$0xff]
        %v1886 = vld [vmem:[%s1856 + $0xe8] sm:$0xff]
        %v1887 = vld [vmem:[%s1856 + $0xf0] sm:$0xff]
        %v1888 = vld [vmem:[%s1856 + $0xf8] sm:$0xff]
        %v1889 = vld [vmem:[%s1856 + $0x100] sm:$0xff]
        %v1890 = vld [vmem:[%s1856 + $0x108] sm:$0xff]
        %v1891 = vld [vmem:[%s1856 + $0x110] sm:$0xff]
        %v1892 = vld [vmem:[%s1856 + $0x118] sm:$0xff]
        %v1893 = vld [vmem:[%s1856 + $0x120] sm:$0xff]
        %v1894 = vld [vmem:[%s1856 + $0x128] sm:$0xff]
        %v1895 = vld [vmem:[%s1856 + $0x130] sm:$0xff]
        %v1896 = vld [vmem:[%s1856 + $0x138] sm:$0xff]
        %v1897 = vld [vmem:[%s1856 + $0x140] sm:$0xff]
        %v1898 = vld [vmem:[%s1856 + $0x148] sm:$0xff]
        %v1899 = vld [vmem:[%s1856 + $0x150] sm:$0xff]
        %v1900 = vld [vmem:[%s1856 + $0x158] sm:$0xff]
        %v1901 = vld [vmem:[%s1856 + $0x160] sm:$0xff]
        %v1902 = vld [vmem:[%s1856 + $0x168] sm:$0xff]
        %v1903 = vld [vmem:[%s1856 + $0x170] sm:$0xff]
        %v1904 = vld [vmem:[%s1856 + $0x178] sm:$0xff]
        %v1905 = vld [vmem:[%s1856 + $0x180] sm:$0xff]
        %v1906 = vld [vmem:[%s1856 + $0x188] sm:$0xff]
        %v1907 = vld [vmem:[%s1856 + $0x190] sm:$0xff]
        %v1908 = vld [vmem:[%s1856 + $0x198] sm:$0xff]
        %v1909 = vld [vmem:[%s1856 + $0x1a0] sm:$0xff]
        %v1910 = vld [vmem:[%s1856 + $0x1a8] sm:$0xff]
        %v1911 = vld [vmem:[%s1856 + $0x1b0] sm:$0xff]
        %v1912 = vld [vmem:[%s1856 + $0x1b8] sm:$0xff]
        %v1913 = vld [vmem:[%s1856 + $0x1c0] sm:$0xff]
        %v1914 = vld [vmem:[%s1856 + $0x1c8] sm:$0xff]
        %v1915 = vld [vmem:[%s1856 + $0x1d0] sm:$0xff]
        %v1916 = vld [vmem:[%s1856 + $0x1d8] sm:$0xff]
        %v1917 = vld [vmem:[%s1856 + $0x1e0] sm:$0xff]
        %v1918 = vld [vmem:[%s1856 + $0x1e8] sm:$0xff]
        %v1919 = vld [vmem:[%s1856 + $0x1f0] sm:$0xff]
        %v1920 = vld [vmem:[%s1856 + $0x1f8] sm:$0xff]
        %v1921 = vld [vmem:[%s1856 + $0x200] sm:$0xff]
        %v1922 = vld [vmem:[%s1856 + $0x208] sm:$0xff]
        %v1923 = vld [vmem:[%s1856 + $0x210] sm:$0xff]
        %v1924 = vld [vmem:[%s1856 + $0x218] sm:$0xff]
        %v1925 = vld [vmem:[%s1856 + $0x220] sm:$0xff]
        %v1926 = vld [vmem:[%s1856 + $0x228] sm:$0xff]
        %v1927 = vld [vmem:[%s1856 + $0x230] sm:$0xff]
        %v1928 = vld [vmem:[%s1856 + $0x238] sm:$0xff]
        %v1929 = vld [vmem:[%s1856 + $0x240] sm:$0xff]
        %v1930 = vld [vmem:[%s1856 + $0x248] sm:$0xff]
        %v1931 = vld [vmem:[%s1856 + $0x250] sm:$0xff]
        %v1932 = vld [vmem:[%s1856 + $0x258] sm:$0xff]
        %v1933 = vld [vmem:[%s1856 + $0x260] sm:$0xff]
        %v1934 = vld [vmem:[%s1856 + $0x268] sm:$0xff]
        %v1935 = vld [vmem:[%s1856 + $0x270] sm:$0xff]
        %v1936 = vld [vmem:[%s1856 + $0x278] sm:$0xff]
        %v1937 = vld [vmem:[%s1856 + $0x280] sm:$0xff]
        %v1938 = vld [vmem:[%s1856 + $0x288] sm:$0xff]
        %v1939 = vld [vmem:[%s1856 + $0x290] sm:$0xff]
        %v1940 = vld [vmem:[%s1856 + $0x298] sm:$0xff]
        %v1941 = vld [vmem:[%s1856 + $0x2a0] sm:$0xff]
        %v1942 = vld [vmem:[%s1856 + $0x2a8] sm:$0xff]
        %v1943 = vld [vmem:[%s1856 + $0x2b0] sm:$0xff]
        %v1944 = vld [vmem:[%s1856 + $0x2b8] sm:$0xff]
        %v1945 = vld [vmem:[%s1856 + $0x2c0] sm:$0xff]
        %v1946 = vld [vmem:[%s1856 + $0x2c8] sm:$0xff]
        %v1947 = vld [vmem:[%s1856 + $0x2d0] sm:$0xff]
        %v1948 = vld [vmem:[%s1856 + $0x2d8] sm:$0xff]
        %v1949 = vld [vmem:[%s1856 + $0x2e0] sm:$0xff]
        %v1950 = vld [vmem:[%s1856 + $0x2e8] sm:$0xff]
        %v1951 = vld [vmem:[%s1856 + $0x2f0] sm:$0xff]
        %v1952 = vld [vmem:[%s1856 + $0x2f8] sm:$0xff]
        %v1953 = vld [vmem:[%s1856 + $0x300] sm:$0xff]
        %v1954 = vld [vmem:[%s1856 + $0x308] sm:$0xff]
        %v1955 = vld [vmem:[%s1856 + $0x310] sm:$0xff]
        %v1956 = vld [vmem:[%s1856 + $0x318] sm:$0xff]
        %v1957 = vld [vmem:[%s1856 + $0x320] sm:$0xff]
        %v1958 = vld [vmem:[%s1856 + $0x328] sm:$0xff]
        %v1959 = vld [vmem:[%s1856 + $0x330] sm:$0xff]
        %v1960 = vld [vmem:[%s1856 + $0x338] sm:$0xff]
        %v1961 = vld [vmem:[%s1856 + $0x340] sm:$0xff]
        %v1962 = vld [vmem:[%s1856 + $0x348] sm:$0xff]
        %v1963 = vld [vmem:[%s1856 + $0x350] sm:$0xff]
        %v1964 = vld [vmem:[%s1856 + $0x358] sm:$0xff]
        %v1965 = vld [vmem:[%s1856 + $0x360] sm:$0xff]
        %v1966 = vld [vmem:[%s1856 + $0x368] sm:$0xff]
        %v1967 = vld [vmem:[%s1856 + $0x370] sm:$0xff]
        %v1968 = vld [vmem:[%s1856 + $0x378] sm:$0xff]
        %v1969 = vld [vmem:[%s1856 + $0x380] sm:$0xff]
        %v1970 = vld [vmem:[%s1856 + $0x388] sm:$0xff]
        %v1971 = vld [vmem:[%s1856 + $0x390] sm:$0xff]
        %v1972 = vld [vmem:[%s1856 + $0x398] sm:$0xff]
        %v1973 = vld [vmem:[%s1856 + $0x3a0] sm:$0xff]
        %v1974 = vld [vmem:[%s1856 + $0x3a8] sm:$0xff]
        %v1975 = vld [vmem:[%s1856 + $0x3b0] sm:$0xff]
        %v1976 = vld [vmem:[%s1856 + $0x3b8] sm:$0xff]
        %v1977 = vld [vmem:[%s1856 + $0x3c0] sm:$0xff]
        %v1978 = vld [vmem:[%s1856 + $0x3c8] sm:$0xff]
        %v1979 = vld [vmem:[%s1856 + $0x3d0] sm:$0xff]
        %v1980 = vld [vmem:[%s1856 + $0x3d8] sm:$0xff]
        %v1981 = vld [vmem:[%s1856 + $0x3e0] sm:$0xff]
        %v1982 = vld [vmem:[%s1856 + $0x3e8] sm:$0xff]
        %v1983 = vld [vmem:[%s1856 + $0x3f0] sm:$0xff]
        %v1984 = vld [vmem:[%s1856 + $0x3f8] sm:$0xff]
        %1985 = vmatpush.msra.mxu0 %v1887
        %1986 = vmatpush.msra.mxu0 %v1885
        %1987 = vmatpush.msra.mxu0 %v1883
        %1988 = vmatpush.msra.mxu0 %v1881
        %1989 = vmatpush.msra.mxu0 %v1879
        %1990 = vmatpush.msra.mxu0 %v1877
        %1991 = vmatpush.msra.mxu0 %v1875
        %1992 = vmatpush.msra.mxu0 %v1873
        %1993 = vmatpush.msra.mxu0 %v1871
        %1994 = vmatpush.msra.mxu0 %v1869
        %1995 = vmatpush.msra.mxu0 %v1867
        %1996 = vmatpush.msra.mxu0 %v1865
        %1997 = vmatpush.msra.mxu0 %v1863
        %1998 = vmatpush.msra.mxu0 %v1861
        %1999 = vmatpush.msra.mxu0 %v1859
        %2000 = vmatpush.msra.mxu0 %v1857
        %2001 = vmatmul.f32.gmra.mxu0 %v678
        %v2002 = vpop.f32.mrf.mxu0
        %v2003 = vadd.f32 0.0, %v2002
        %2004 = vmatmul.f32.gmra.mxu0 %v682
        %v2005 = vpop.f32.mrf.mxu0
        %v2006 = vadd.f32 0.0, %v2005
        %2007 = vmatmul.f32.gmra.mxu0 %v686
        %v2008 = vpop.f32.mrf.mxu0
        %v2009 = vadd.f32 0.0, %v2008
        %2010 = vdwg.mxu0
        %2011 = vmatpush.msra.mxu0 %v1919
        %2012 = vmatpush.msra.mxu0 %v1917
        %2013 = vmatpush.msra.mxu0 %v1915
        %2014 = vmatpush.msra.mxu0 %v1913
        %2015 = vmatpush.msra.mxu0 %v1911
        %2016 = vmatpush.msra.mxu0 %v1909
        %2017 = vmatpush.msra.mxu0 %v1907
        %2018 = vmatpush.msra.mxu0 %v1905
        %2019 = vmatpush.msra.mxu0 %v1903
        %2020 = vmatpush.msra.mxu0 %v1901
        %2021 = vmatpush.msra.mxu0 %v1899
        %2022 = vmatpush.msra.mxu0 %v1897
        %2023 = vmatpush.msra.mxu0 %v1895
        %2024 = vmatpush.msra.mxu0 %v1893
        %2025 = vmatpush.msra.mxu0 %v1891
        %2026 = vmatpush.msra.mxu0 %v1889
        %2027 = vmatmul.f32.gmra.mxu0 %v679
        %v2028 = vpop.f32.mrf.mxu0
        %v2029 = vadd.f32 %v2003, %v2028
        %2030 = vmatmul.f32.gmra.mxu0 %v683
        %v2031 = vpop.f32.mrf.mxu0
        %v2032 = vadd.f32 %v2006, %v2031
        %2033 = vmatmul.f32.gmra.mxu0 %v687
        %v2034 = vpop.f32.mrf.mxu0
        %v2035 = vadd.f32 %v2009, %v2034
        %2036 = vdwg.mxu0
        %2037 = vmatpush.msra.mxu0 %v1951
        %2038 = vmatpush.msra.mxu0 %v1949
        %2039 = vmatpush.msra.mxu0 %v1947
        %2040 = vmatpush.msra.mxu0 %v1945
        %2041 = vmatpush.msra.mxu0 %v1943
        %2042 = vmatpush.msra.mxu0 %v1941
        %2043 = vmatpush.msra.mxu0 %v1939
        %2044 = vmatpush.msra.mxu0 %v1937
        %2045 = vmatpush.msra.mxu0 %v1935
        %2046 = vmatpush.msra.mxu0 %v1933
        %2047 = vmatpush.msra.mxu0 %v1931
        %2048 = vmatpush.msra.mxu0 %v1929
        %2049 = vmatpush.msra.mxu0 %v1927
        %2050 = vmatpush.msra.mxu0 %v1925
        %2051 = vmatpush.msra.mxu0 %v1923
        %2052 = vmatpush.msra.mxu0 %v1921
        %2053 = vmatmul.f32.gmra.mxu0 %v680
        %v2054 = vpop.f32.mrf.mxu0
        %v2055 = vadd.f32 %v2029, %v2054
        %2056 = vmatmul.f32.gmra.mxu0 %v684
        %v2057 = vpop.f32.mrf.mxu0
        %v2058 = vadd.f32 %v2032, %v2057
        %2059 = vmatmul.f32.gmra.mxu0 %v688
        %v2060 = vpop.f32.mrf.mxu0
        %v2061 = vadd.f32 %v2035, %v2060
        %2062 = vdwg.mxu0
        %2063 = vmatpush.msra.mxu0 %v1983
        %2064 = vmatpush.msra.mxu0 %v1981
        %2065 = vmatpush.msra.mxu0 %v1979
        %2066 = vmatpush.msra.mxu0 %v1977
        %2067 = vmatpush.msra.mxu0 %v1975
        %2068 = vmatpush.msra.mxu0 %v1973
        %2069 = vmatpush.msra.mxu0 %v1971
        %2070 = vmatpush.msra.mxu0 %v1969
        %2071 = vmatpush.msra.mxu0 %v1967
        %2072 = vmatpush.msra.mxu0 %v1965
        %2073 = vmatpush.msra.mxu0 %v1963
        %2074 = vmatpush.msra.mxu0 %v1961
        %2075 = vmatpush.msra.mxu0 %v1959
        %2076 = vmatpush.msra.mxu0 %v1957
        %2077 = vmatpush.msra.mxu0 %v1955
        %2078 = vmatpush.msra.mxu0 %v1953
        %2079 = vmatmul.f32.gmra.mxu0 %v681
        %v2080 = vpop.f32.mrf.mxu0
        %v2081 = vadd.f32 %v2055, %v2080
        %2082 = vmatmul.f32.gmra.mxu0 %v685
        %v2083 = vpop.f32.mrf.mxu0
        %v2084 = vadd.f32 %v2058, %v2083
        %2085 = vmatmul.f32.gmra.mxu0 %v689
        %v2086 = vpop.f32.mrf.mxu0
        %v2087 = vadd.f32 %v2061, %v2086
        %2088 = vdwg.mxu0
        %2089 = vmatpush.msra.mxu0 %v1888
        %2090 = vmatpush.msra.mxu0 %v1886
        %2091 = vmatpush.msra.mxu0 %v1884
        %2092 = vmatpush.msra.mxu0 %v1882
        %2093 = vmatpush.msra.mxu0 %v1880
        %2094 = vmatpush.msra.mxu0 %v1878
        %2095 = vmatpush.msra.mxu0 %v1876
        %2096 = vmatpush.msra.mxu0 %v1874
        %2097 = vmatpush.msra.mxu0 %v1872
        %2098 = vmatpush.msra.mxu0 %v1870
        %2099 = vmatpush.msra.mxu0 %v1868
        %2100 = vmatpush.msra.mxu0 %v1866
        %2101 = vmatpush.msra.mxu0 %v1864
        %2102 = vmatpush.msra.mxu0 %v1862
        %2103 = vmatpush.msra.mxu0 %v1860
        %2104 = vmatpush.msra.mxu0 %v1858
        %2105 = vmatmul.f32.gmra.mxu0 %v678
        %v2106 = vpop.f32.mrf.mxu0
        %v2107 = vadd.f32 0.0, %v2106
        %2108 = vmatmul.f32.gmra.mxu0 %v682
        %v2109 = vpop.f32.mrf.mxu0
        %v2110 = vadd.f32 0.0, %v2109
        %2111 = vmatmul.f32.gmra.mxu0 %v686
        %v2112 = vpop.f32.mrf.mxu0
        %v2113 = vadd.f32 0.0, %v2112
        %2114 = vdwg.mxu0
        %2115 = vmatpush.msra.mxu0 %v1920
        %2116 = vmatpush.msra.mxu0 %v1918
        %2117 = vmatpush.msra.mxu0 %v1916
        %2118 = vmatpush.msra.mxu0 %v1914
        %2119 = vmatpush.msra.mxu0 %v1912
        %2120 = vmatpush.msra.mxu0 %v1910
        %2121 = vmatpush.msra.mxu0 %v1908
        %2122 = vmatpush.msra.mxu0 %v1906
        %2123 = vmatpush.msra.mxu0 %v1904
        %2124 = vmatpush.msra.mxu0 %v1902
        %2125 = vmatpush.msra.mxu0 %v1900
        %2126 = vmatpush.msra.mxu0 %v1898
        %2127 = vmatpush.msra.mxu0 %v1896
        %2128 = vmatpush.msra.mxu0 %v1894
        %2129 = vmatpush.msra.mxu0 %v1892
        %2130 = vmatpush.msra.mxu0 %v1890
        %2131 = vmatmul.f32.gmra.mxu0 %v679
        %v2132 = vpop.f32.mrf.mxu0
        %v2133 = vadd.f32 %v2107, %v2132
        %2134 = vmatmul.f32.gmra.mxu0 %v683
        %v2135 = vpop.f32.mrf.mxu0
        %v2136 = vadd.f32 %v2110, %v2135
        %2137 = vmatmul.f32.gmra.mxu0 %v687
        %v2138 = vpop.f32.mrf.mxu0
        %v2139 = vadd.f32 %v2113, %v2138
        %2140 = vdwg.mxu0
        %2141 = vmatpush.msra.mxu0 %v1952
        %2142 = vmatpush.msra.mxu0 %v1950
        %2143 = vmatpush.msra.mxu0 %v1948
        %2144 = vmatpush.msra.mxu0 %v1946
        %2145 = vmatpush.msra.mxu0 %v1944
        %2146 = vmatpush.msra.mxu0 %v1942
        %2147 = vmatpush.msra.mxu0 %v1940
        %2148 = vmatpush.msra.mxu0 %v1938
        %2149 = vmatpush.msra.mxu0 %v1936
        %2150 = vmatpush.msra.mxu0 %v1934
        %2151 = vmatpush.msra.mxu0 %v1932
        %2152 = vmatpush.msra.mxu0 %v1930
        %2153 = vmatpush.msra.mxu0 %v1928
        %2154 = vmatpush.msra.mxu0 %v1926
        %2155 = vmatpush.msra.mxu0 %v1924
        %2156 = vmatpush.msra.mxu0 %v1922
        %2157 = vmatmul.f32.gmra.mxu0 %v680
        %v2158 = vpop.f32.mrf.mxu0
        %v2159 = vadd.f32 %v2133, %v2158
        %2160 = vmatmul.f32.gmra.mxu0 %v684
        %v2161 = vpop.f32.mrf.mxu0
        %v2162 = vadd.f32 %v2136, %v2161
        %2163 = vmatmul.f32.gmra.mxu0 %v688
        %v2164 = vpop.f32.mrf.mxu0
        %v2165 = vadd.f32 %v2139, %v2164
        %2166 = vdwg.mxu0
        %2167 = vmatpush.msra.mxu0 %v1984
        %2168 = vmatpush.msra.mxu0 %v1982
        %2169 = vmatpush.msra.mxu0 %v1980
        %2170 = vmatpush.msra.mxu0 %v1978
        %2171 = vmatpush.msra.mxu0 %v1976
        %2172 = vmatpush.msra.mxu0 %v1974
        %2173 = vmatpush.msra.mxu0 %v1972
        %2174 = vmatpush.msra.mxu0 %v1970
        %2175 = vmatpush.msra.mxu0 %v1968
        %2176 = vmatpush.msra.mxu0 %v1966
        %2177 = vmatpush.msra.mxu0 %v1964
        %2178 = vmatpush.msra.mxu0 %v1962
        %2179 = vmatpush.msra.mxu0 %v1960
        %2180 = vmatpush.msra.mxu0 %v1958
        %2181 = vmatpush.msra.mxu0 %v1956
        %2182 = vmatpush.msra.mxu0 %v1954
        %2183 = vmatmul.f32.gmra.mxu0 %v681
        %v2184 = vpop.f32.mrf.mxu0
        %v2185 = vadd.f32 %v2159, %v2184
        %2186 = vmatmul.f32.gmra.mxu0 %v685
        %v2187 = vpop.f32.mrf.mxu0
        %v2188 = vadd.f32 %v2162, %v2187
        %2189 = vmatmul.f32.gmra.mxu0 %v689
        %v2190 = vpop.f32.mrf.mxu0
        %v2191 = vadd.f32 %v2165, %v2190
        %2192 = vdwg.mxu0
        %2193 = vmatpush.msra.mxu0 %v1758
        %2194 = vmatpush.msra.mxu0 %v1756
        %2195 = vmatpush.msra.mxu0 %v1754
        %2196 = vmatpush.msra.mxu0 %v1752
        %2197 = vmatpush.msra.mxu0 %v1750
        %2198 = vmatpush.msra.mxu0 %v1748
        %2199 = vmatpush.msra.mxu0 %v1746
        %2200 = vmatpush.msra.mxu0 %v1744
        %2201 = vmatpush.msra.mxu0 %v1742
        %2202 = vmatpush.msra.mxu0 %v1740
        %2203 = vmatpush.msra.mxu0 %v1738
        %2204 = vmatpush.msra.mxu0 %v1736
        %2205 = vmatpush.msra.mxu0 %v1734
        %2206 = vmatpush.msra.mxu0 %v1732
        %2207 = vmatpush.msra.mxu0 %v1730
        %2208 = vmatpush.msra.mxu0 %v1728
        %2209 = vmatmul.f32.gmra.mxu0 %v988
        %v2210 = vpop.f32.mrf.mxu0
        %v2211 = vadd.f32 %v2081, %v2210
        %2212 = vmatmul.f32.gmra.mxu0 %v992
        %v2213 = vpop.f32.mrf.mxu0
        %v2214 = vadd.f32 %v2084, %v2213
        %2215 = vmatmul.f32.gmra.mxu0 %v996
        %v2216 = vpop.f32.mrf.mxu0
        %v2217 = vadd.f32 %v2087, %v2216
        %2218 = vdwg.mxu0
        %2219 = vmatpush.msra.mxu0 %v1790
        %2220 = vmatpush.msra.mxu0 %v1788
        %2221 = vmatpush.msra.mxu0 %v1786
        %2222 = vmatpush.msra.mxu0 %v1784
        %2223 = vmatpush.msra.mxu0 %v1782
        %2224 = vmatpush.msra.mxu0 %v1780
        %2225 = vmatpush.msra.mxu0 %v1778
        %2226 = vmatpush.msra.mxu0 %v1776
        %2227 = vmatpush.msra.mxu0 %v1774
        %2228 = vmatpush.msra.mxu0 %v1772
        %2229 = vmatpush.msra.mxu0 %v1770
        %2230 = vmatpush.msra.mxu0 %v1768
        %2231 = vmatpush.msra.mxu0 %v1766
        %2232 = vmatpush.msra.mxu0 %v1764
        %2233 = vmatpush.msra.mxu0 %v1762
        %2234 = vmatpush.msra.mxu0 %v1760
        %2235 = vmatmul.f32.gmra.mxu0 %v989
        %v2236 = vpop.f32.mrf.mxu0
        %v2237 = vadd.f32 %v2211, %v2236
        %2238 = vmatmul.f32.gmra.mxu0 %v993
        %v2239 = vpop.f32.mrf.mxu0
        %v2240 = vadd.f32 %v2214, %v2239
        %2241 = vmatmul.f32.gmra.mxu0 %v997
        %v2242 = vpop.f32.mrf.mxu0
        %v2243 = vadd.f32 %v2217, %v2242
        %2244 = vdwg.mxu0
        %2245 = vmatpush.msra.mxu0 %v1822
        %2246 = vmatpush.msra.mxu0 %v1820
        %2247 = vmatpush.msra.mxu0 %v1818
        %2248 = vmatpush.msra.mxu0 %v1816
        %2249 = vmatpush.msra.mxu0 %v1814
        %2250 = vmatpush.msra.mxu0 %v1812
        %2251 = vmatpush.msra.mxu0 %v1810
        %2252 = vmatpush.msra.mxu0 %v1808
        %2253 = vmatpush.msra.mxu0 %v1806
        %2254 = vmatpush.msra.mxu0 %v1804
        %2255 = vmatpush.msra.mxu0 %v1802
        %2256 = vmatpush.msra.mxu0 %v1800
        %2257 = vmatpush.msra.mxu0 %v1798
        %2258 = vmatpush.msra.mxu0 %v1796
        %2259 = vmatpush.msra.mxu0 %v1794
        %2260 = vmatpush.msra.mxu0 %v1792
        %2261 = vmatmul.f32.gmra.mxu0 %v990
        %v2262 = vpop.f32.mrf.mxu0
        %v2263 = vadd.f32 %v2237, %v2262
        %2264 = vmatmul.f32.gmra.mxu0 %v994
        %v2265 = vpop.f32.mrf.mxu0
        %v2266 = vadd.f32 %v2240, %v2265
        %2267 = vmatmul.f32.gmra.mxu0 %v998
        %v2268 = vpop.f32.mrf.mxu0
        %v2269 = vadd.f32 %v2243, %v2268
        %2270 = vdwg.mxu0
        %2271 = vmatpush.msra.mxu0 %v1854
        %2272 = vmatpush.msra.mxu0 %v1852
        %2273 = vmatpush.msra.mxu0 %v1850
        %2274 = vmatpush.msra.mxu0 %v1848
        %2275 = vmatpush.msra.mxu0 %v1846
        %2276 = vmatpush.msra.mxu0 %v1844
        %2277 = vmatpush.msra.mxu0 %v1842
        %2278 = vmatpush.msra.mxu0 %v1840
        %2279 = vmatpush.msra.mxu0 %v1838
        %2280 = vmatpush.msra.mxu0 %v1836
        %2281 = vmatpush.msra.mxu0 %v1834
        %2282 = vmatpush.msra.mxu0 %v1832
        %2283 = vmatpush.msra.mxu0 %v1830
        %2284 = vmatpush.msra.mxu0 %v1828
        %2285 = vmatpush.msra.mxu0 %v1826
        %2286 = vmatpush.msra.mxu0 %v1824
        %2287 = vmatmul.f32.gmra.mxu0 %v991
        %v2288 = vpop.f32.mrf.mxu0
        %v2289 = vadd.f32 %v2263, %v2288
        %2290 = vmatmul.f32.gmra.mxu0 %v995
        %v2291 = vpop.f32.mrf.mxu0
        %v2292 = vadd.f32 %v2266, %v2291
        %2293 = vmatmul.f32.gmra.mxu0 %v999
        %v2294 = vpop.f32.mrf.mxu0
        %v2295 = vadd.f32 %v2269, %v2294
        %2296 = vdwg.mxu0
        %2297 = vmatpush.msra.mxu0 %v1759
        %2298 = vmatpush.msra.mxu0 %v1757
        %2299 = vmatpush.msra.mxu0 %v1755
        %2300 = vmatpush.msra.mxu0 %v1753
        %2301 = vmatpush.msra.mxu0 %v1751
        %2302 = vmatpush.msra.mxu0 %v1749
        %2303 = vmatpush.msra.mxu0 %v1747
        %2304 = vmatpush.msra.mxu0 %v1745
        %2305 = vmatpush.msra.mxu0 %v1743
        %2306 = vmatpush.msra.mxu0 %v1741
        %2307 = vmatpush.msra.mxu0 %v1739
        %2308 = vmatpush.msra.mxu0 %v1737
        %2309 = vmatpush.msra.mxu0 %v1735
        %2310 = vmatpush.msra.mxu0 %v1733
        %2311 = vmatpush.msra.mxu0 %v1731
        %2312 = vmatpush.msra.mxu0 %v1729
        %2313 = vmatmul.f32.gmra.mxu0 %v988
        %v2314 = vpop.f32.mrf.mxu0
        %v2315 = vadd.f32 %v2185, %v2314
        %2316 = vmatmul.f32.gmra.mxu0 %v992
        %v2317 = vpop.f32.mrf.mxu0
        %v2318 = vadd.f32 %v2188, %v2317
        %2319 = vmatmul.f32.gmra.mxu0 %v996
        %v2320 = vpop.f32.mrf.mxu0
        %v2321 = vadd.f32 %v2191, %v2320
        %2322 = vdwg.mxu0
        %2323 = vmatpush.msra.mxu0 %v1791
        %2324 = vmatpush.msra.mxu0 %v1789
        %2325 = vmatpush.msra.mxu0 %v1787
        %2326 = vmatpush.msra.mxu0 %v1785
        %2327 = vmatpush.msra.mxu0 %v1783
        %2328 = vmatpush.msra.mxu0 %v1781
        %2329 = vmatpush.msra.mxu0 %v1779
        %2330 = vmatpush.msra.mxu0 %v1777
        %2331 = vmatpush.msra.mxu0 %v1775
        %2332 = vmatpush.msra.mxu0 %v1773
        %2333 = vmatpush.msra.mxu0 %v1771
        %2334 = vmatpush.msra.mxu0 %v1769
        %2335 = vmatpush.msra.mxu0 %v1767
        %2336 = vmatpush.msra.mxu0 %v1765
        %2337 = vmatpush.msra.mxu0 %v1763
        %2338 = vmatpush.msra.mxu0 %v1761
        %2339 = vmatmul.f32.gmra.mxu0 %v989
        %v2340 = vpop.f32.mrf.mxu0
        %v2341 = vadd.f32 %v2315, %v2340
        %2342 = vmatmul.f32.gmra.mxu0 %v993
        %v2343 = vpop.f32.mrf.mxu0
        %v2344 = vadd.f32 %v2318, %v2343
        %2345 = vmatmul.f32.gmra.mxu0 %v997
        %v2346 = vpop.f32.mrf.mxu0
        %v2347 = vadd.f32 %v2321, %v2346
        %2348 = vdwg.mxu0
        %2349 = vmatpush.msra.mxu0 %v1823
        %2350 = vmatpush.msra.mxu0 %v1821
        %2351 = vmatpush.msra.mxu0 %v1819
        %2352 = vmatpush.msra.mxu0 %v1817
        %2353 = vmatpush.msra.mxu0 %v1815
        %2354 = vmatpush.msra.mxu0 %v1813
        %2355 = vmatpush.msra.mxu0 %v1811
        %2356 = vmatpush.msra.mxu0 %v1809
        %2357 = vmatpush.msra.mxu0 %v1807
        %2358 = vmatpush.msra.mxu0 %v1805
        %2359 = vmatpush.msra.mxu0 %v1803
        %2360 = vmatpush.msra.mxu0 %v1801
        %2361 = vmatpush.msra.mxu0 %v1799
        %2362 = vmatpush.msra.mxu0 %v1797
        %2363 = vmatpush.msra.mxu0 %v1795
        %2364 = vmatpush.msra.mxu0 %v1793
        %2365 = vmatmul.f32.gmra.mxu0 %v990
        %v2366 = vpop.f32.mrf.mxu0
        %v2367 = vadd.f32 %v2341, %v2366
        %2368 = vmatmul.f32.gmra.mxu0 %v994
        %v2369 = vpop.f32.mrf.mxu0
        %v2370 = vadd.f32 %v2344, %v2369
        %2371 = vmatmul.f32.gmra.mxu0 %v998
        %v2372 = vpop.f32.mrf.mxu0
        %v2373 = vadd.f32 %v2347, %v2372
        %2374 = vdwg.mxu0
        %2375 = vmatpush.msra.mxu0 %v1855
        %2376 = vmatpush.msra.mxu0 %v1853
        %2377 = vmatpush.msra.mxu0 %v1851
        %2378 = vmatpush.msra.mxu0 %v1849
        %2379 = vmatpush.msra.mxu0 %v1847
        %2380 = vmatpush.msra.mxu0 %v1845
        %2381 = vmatpush.msra.mxu0 %v1843
        %2382 = vmatpush.msra.mxu0 %v1841
        %2383 = vmatpush.msra.mxu0 %v1839
        %2384 = vmatpush.msra.mxu0 %v1837
        %2385 = vmatpush.msra.mxu0 %v1835
        %2386 = vmatpush.msra.mxu0 %v1833
        %2387 = vmatpush.msra.mxu0 %v1831
        %2388 = vmatpush.msra.mxu0 %v1829
        %2389 = vmatpush.msra.mxu0 %v1827
        %2390 = vmatpush.msra.mxu0 %v1825
        %2391 = vmatmul.f32.gmra.mxu0 %v991
        %v2392 = vpop.f32.mrf.mxu0
        %v2393 = vadd.f32 %v2367, %v2392
        %2394 = vmatmul.f32.gmra.mxu0 %v995
        %v2395 = vpop.f32.mrf.mxu0
        %v2396 = vadd.f32 %v2370, %v2395
        %2397 = vmatmul.f32.gmra.mxu0 %v999
        %v2398 = vpop.f32.mrf.mxu0
        %v2399 = vadd.f32 %v2373, %v2398
        %2400 = vdwg.mxu0
        %v2401 = vadd.f32 %v2289, %v1712
        %v2402 = vadd.f32 %v2393, %v1713
        %v2403 = vadd.f32 %v2292, %v1712
        %v2404 = vadd.f32 %v2396, %v1713
        %v2405 = vadd.f32 %v2295, %v1712
        %v2406 = vadd.f32 %v2399, %v1713
        %v2407 = vmax.f32 %v2401, 0.0
        %v2408 = vmax.f32 %v2402, 0.0
        %v2409 = vmax.f32 %v2403, 0.0
        %v2410 = vmax.f32 %v2404, 0.0
        %v2411 = vmax.f32 %v2405, 0.0
        %v2412 = vmax.f32 %v2406, 0.0
        %2413 = vmatpush.msra.mxu0 %v1197
        %2414 = vmatpush.msra.mxu0 %v1195
        %2415 = vmatpush.msra.mxu0 %v1193
        %2416 = vmatpush.msra.mxu0 %v1191
        %2417 = vmatpush.msra.mxu0 %v1189
        %2418 = vmatpush.msra.mxu0 %v1187
        %2419 = vmatpush.msra.mxu0 %v1185
        %2420 = vmatpush.msra.mxu0 %v1183
        %2421 = vmatpush.msra.mxu0 %v1181
        %2422 = vmatpush.msra.mxu0 %v1179
        %2423 = vmatpush.msra.mxu0 %v1177
        %2424 = vmatpush.msra.mxu0 %v1175
        %2425 = vmatpush.msra.mxu0 %v1173
        %2426 = vmatpush.msra.mxu0 %v1171
        %2427 = vmatpush.msra.mxu0 %v1169
        %2428 = vmatpush.msra.mxu0 %v1167
        %2429 = vmatmul.f32.gmra.mxu0 %v678
        %v2430 = vpop.f32.mrf.mxu0
        %v2431 = vadd.f32 0.0, %v2430
        %2432 = vmatmul.f32.gmra.mxu0 %v682
        %v2433 = vpop.f32.mrf.mxu0
        %v2434 = vadd.f32 0.0, %v2433
        %2435 = vmatmul.f32.gmra.mxu0 %v686
        %v2436 = vpop.f32.mrf.mxu0
        %v2437 = vadd.f32 0.0, %v2436
        %2438 = vdwg.mxu0
        %2439 = vmatpush.msra.mxu0 %v1229
        %2440 = vmatpush.msra.mxu0 %v1227
        %2441 = vmatpush.msra.mxu0 %v1225
        %2442 = vmatpush.msra.mxu0 %v1223
        %2443 = vmatpush.msra.mxu0 %v1221
        %2444 = vmatpush.msra.mxu0 %v1219
        %2445 = vmatpush.msra.mxu0 %v1217
        %2446 = vmatpush.msra.mxu0 %v1215
        %2447 = vmatpush.msra.mxu0 %v1213
        %2448 = vmatpush.msra.mxu0 %v1211
        %2449 = vmatpush.msra.mxu0 %v1209
        %2450 = vmatpush.msra.mxu0 %v1207
        %2451 = vmatpush.msra.mxu0 %v1205
        %2452 = vmatpush.msra.mxu0 %v1203
        %2453 = vmatpush.msra.mxu0 %v1201
        %2454 = vmatpush.msra.mxu0 %v1199
        %2455 = vmatmul.f32.gmra.mxu0 %v679
        %v2456 = vpop.f32.mrf.mxu0
        %v2457 = vadd.f32 %v2431, %v2456
        %2458 = vmatmul.f32.gmra.mxu0 %v683
        %v2459 = vpop.f32.mrf.mxu0
        %v2460 = vadd.f32 %v2434, %v2459
        %2461 = vmatmul.f32.gmra.mxu0 %v687
        %v2462 = vpop.f32.mrf.mxu0
        %v2463 = vadd.f32 %v2437, %v2462
        %2464 = vdwg.mxu0
        %2465 = vmatpush.msra.mxu0 %v1261
        %2466 = vmatpush.msra.mxu0 %v1259
        %2467 = vmatpush.msra.mxu0 %v1257
        %2468 = vmatpush.msra.mxu0 %v1255
        %2469 = vmatpush.msra.mxu0 %v1253
        %2470 = vmatpush.msra.mxu0 %v1251
        %2471 = vmatpush.msra.mxu0 %v1249
        %2472 = vmatpush.msra.mxu0 %v1247
        %2473 = vmatpush.msra.mxu0 %v1245
        %2474 = vmatpush.msra.mxu0 %v1243
        %2475 = vmatpush.msra.mxu0 %v1241
        %2476 = vmatpush.msra.mxu0 %v1239
        %2477 = vmatpush.msra.mxu0 %v1237
        %2478 = vmatpush.msra.mxu0 %v1235
        %2479 = vmatpush.msra.mxu0 %v1233
        %2480 = vmatpush.msra.mxu0 %v1231
        %2481 = vmatmul.f32.gmra.mxu0 %v680
        %v2482 = vpop.f32.mrf.mxu0
        %v2483 = vadd.f32 %v2457, %v2482
        %2484 = vmatmul.f32.gmra.mxu0 %v684
        %v2485 = vpop.f32.mrf.mxu0
        %v2486 = vadd.f32 %v2460, %v2485
        %2487 = vmatmul.f32.gmra.mxu0 %v688
        %v2488 = vpop.f32.mrf.mxu0
        %v2489 = vadd.f32 %v2463, %v2488
        %2490 = vdwg.mxu0
        %2491 = vmatpush.msra.mxu0 %v1293
        %2492 = vmatpush.msra.mxu0 %v1291
        %2493 = vmatpush.msra.mxu0 %v1289
        %2494 = vmatpush.msra.mxu0 %v1287
        %2495 = vmatpush.msra.mxu0 %v1285
        %2496 = vmatpush.msra.mxu0 %v1283
        %2497 = vmatpush.msra.mxu0 %v1281
        %2498 = vmatpush.msra.mxu0 %v1279
        %2499 = vmatpush.msra.mxu0 %v1277
        %2500 = vmatpush.msra.mxu0 %v1275
        %2501 = vmatpush.msra.mxu0 %v1273
        %2502 = vmatpush.msra.mxu0 %v1271
        %2503 = vmatpush.msra.mxu0 %v1269
        %2504 = vmatpush.msra.mxu0 %v1267
        %2505 = vmatpush.msra.mxu0 %v1265
        %2506 = vmatpush.msra.mxu0 %v1263
        %2507 = vmatmul.f32.gmra.mxu0 %v681
        %v2508 = vpop.f32.mrf.mxu0
        %v2509 = vadd.f32 %v2483, %v2508
        %2510 = vmatmul.f32.gmra.mxu0 %v685
        %v2511 = vpop.f32.mrf.mxu0
        %v2512 = vadd.f32 %v2486, %v2511
        %2513 = vmatmul.f32.gmra.mxu0 %v689
        %v2514 = vpop.f32.mrf.mxu0
        %v2515 = vadd.f32 %v2489, %v2514
        %2516 = vdwg.mxu0
        %2517 = vmatpush.msra.mxu0 %v1198
        %2518 = vmatpush.msra.mxu0 %v1196
        %2519 = vmatpush.msra.mxu0 %v1194
        %2520 = vmatpush.msra.mxu0 %v1192
        %2521 = vmatpush.msra.mxu0 %v1190
        %2522 = vmatpush.msra.mxu0 %v1188
        %2523 = vmatpush.msra.mxu0 %v1186
        %2524 = vmatpush.msra.mxu0 %v1184
        %2525 = vmatpush.msra.mxu0 %v1182
        %2526 = vmatpush.msra.mxu0 %v1180
        %2527 = vmatpush.msra.mxu0 %v1178
        %2528 = vmatpush.msra.mxu0 %v1176
        %2529 = vmatpush.msra.mxu0 %v1174
        %2530 = vmatpush.msra.mxu0 %v1172
        %2531 = vmatpush.msra.mxu0 %v1170
        %2532 = vmatpush.msra.mxu0 %v1168
        %2533 = vmatmul.f32.gmra.mxu0 %v678
        %v2534 = vpop.f32.mrf.mxu0
        %v2535 = vadd.f32 0.0, %v2534
        %2536 = vmatmul.f32.gmra.mxu0 %v682
        %v2537 = vpop.f32.mrf.mxu0
        %v2538 = vadd.f32 0.0, %v2537
        %2539 = vmatmul.f32.gmra.mxu0 %v686
        %v2540 = vpop.f32.mrf.mxu0
        %v2541 = vadd.f32 0.0, %v2540
        %2542 = vdwg.mxu0
        %2543 = vmatpush.msra.mxu0 %v1230
        %2544 = vmatpush.msra.mxu0 %v1228
        %2545 = vmatpush.msra.mxu0 %v1226
        %2546 = vmatpush.msra.mxu0 %v1224
        %2547 = vmatpush.msra.mxu0 %v1222
        %2548 = vmatpush.msra.mxu0 %v1220
        %2549 = vmatpush.msra.mxu0 %v1218
        %2550 = vmatpush.msra.mxu0 %v1216
        %2551 = vmatpush.msra.mxu0 %v1214
        %2552 = vmatpush.msra.mxu0 %v1212
        %2553 = vmatpush.msra.mxu0 %v1210
        %2554 = vmatpush.msra.mxu0 %v1208
        %2555 = vmatpush.msra.mxu0 %v1206
        %2556 = vmatpush.msra.mxu0 %v1204
        %2557 = vmatpush.msra.mxu0 %v1202
        %2558 = vmatpush.msra.mxu0 %v1200
        %2559 = vmatmul.f32.gmra.mxu0 %v679
        %v2560 = vpop.f32.mrf.mxu0
        %v2561 = vadd.f32 %v2535, %v2560
        %2562 = vmatmul.f32.gmra.mxu0 %v683
        %v2563 = vpop.f32.mrf.mxu0
        %v2564 = vadd.f32 %v2538, %v2563
        %2565 = vmatmul.f32.gmra.mxu0 %v687
        %v2566 = vpop.f32.mrf.mxu0
        %v2567 = vadd.f32 %v2541, %v2566
        %2568 = vdwg.mxu0
        %2569 = vmatpush.msra.mxu0 %v1262
        %2570 = vmatpush.msra.mxu0 %v1260
        %2571 = vmatpush.msra.mxu0 %v1258
        %2572 = vmatpush.msra.mxu0 %v1256
        %2573 = vmatpush.msra.mxu0 %v1254
        %2574 = vmatpush.msra.mxu0 %v1252
        %2575 = vmatpush.msra.mxu0 %v1250
        %2576 = vmatpush.msra.mxu0 %v1248
        %2577 = vmatpush.msra.mxu0 %v1246
        %2578 = vmatpush.msra.mxu0 %v1244
        %2579 = vmatpush.msra.mxu0 %v1242
        %2580 = vmatpush.msra.mxu0 %v1240
        %2581 = vmatpush.msra.mxu0 %v1238
        %2582 = vmatpush.msra.mxu0 %v1236
        %2583 = vmatpush.msra.mxu0 %v1234
        %2584 = vmatpush.msra.mxu0 %v1232
        %2585 = vmatmul.f32.gmra.mxu0 %v680
        %v2586 = vpop.f32.mrf.mxu0
        %v2587 = vadd.f32 %v2561, %v2586
        %2588 = vmatmul.f32.gmra.mxu0 %v684
        %v2589 = vpop.f32.mrf.mxu0
        %v2590 = vadd.f32 %v2564, %v2589
        %2591 = vmatmul.f32.gmra.mxu0 %v688
        %v2592 = vpop.f32.mrf.mxu0
        %v2593 = vadd.f32 %v2567, %v2592
        %2594 = vdwg.mxu0
        %2595 = vmatpush.msra.mxu0 %v1294
        %2596 = vmatpush.msra.mxu0 %v1292
        %2597 = vmatpush.msra.mxu0 %v1290
        %2598 = vmatpush.msra.mxu0 %v1288
        %2599 = vmatpush.msra.mxu0 %v1286
        %2600 = vmatpush.msra.mxu0 %v1284
        %2601 = vmatpush.msra.mxu0 %v1282
        %2602 = vmatpush.msra.mxu0 %v1280
        %2603 = vmatpush.msra.mxu0 %v1278
        %2604 = vmatpush.msra.mxu0 %v1276
        %2605 = vmatpush.msra.mxu0 %v1274
        %2606 = vmatpush.msra.mxu0 %v1272
        %2607 = vmatpush.msra.mxu0 %v1270
        %2608 = vmatpush.msra.mxu0 %v1268
        %2609 = vmatpush.msra.mxu0 %v1266
        %2610 = vmatpush.msra.mxu0 %v1264
        %2611 = vmatmul.f32.gmra.mxu0 %v681
        %v2612 = vpop.f32.mrf.mxu0
        %v2613 = vadd.f32 %v2587, %v2612
        %2614 = vmatmul.f32.gmra.mxu0 %v685
        %v2615 = vpop.f32.mrf.mxu0
        %v2616 = vadd.f32 %v2590, %v2615
        %2617 = vmatmul.f32.gmra.mxu0 %v689
        %v2618 = vpop.f32.mrf.mxu0
        %v2619 = vadd.f32 %v2593, %v2618
        %2620 = vdwg.mxu0
        %2621 = vmatpush.msra.mxu0 %v1032
        %2622 = vmatpush.msra.mxu0 %v1030
        %2623 = vmatpush.msra.mxu0 %v1028
        %2624 = vmatpush.msra.mxu0 %v1026
        %2625 = vmatpush.msra.mxu0 %v1024
        %2626 = vmatpush.msra.mxu0 %v1022
        %2627 = vmatpush.msra.mxu0 %v1020
        %2628 = vmatpush.msra.mxu0 %v1018
        %2629 = vmatpush.msra.mxu0 %v1016
        %2630 = vmatpush.msra.mxu0 %v1014
        %2631 = vmatpush.msra.mxu0 %v1012
        %2632 = vmatpush.msra.mxu0 %v1010
        %2633 = vmatpush.msra.mxu0 %v1008
        %2634 = vmatpush.msra.mxu0 %v1006
        %2635 = vmatpush.msra.mxu0 %v1004
        %2636 = vmatpush.msra.mxu0 %v1002
        %2637 = vmatmul.f32.gmra.mxu0 %v988
        %v2638 = vpop.f32.mrf.mxu0
        %v2639 = vadd.f32 %v2509, %v2638
        %2640 = vmatmul.f32.gmra.mxu0 %v992
        %v2641 = vpop.f32.mrf.mxu0
        %v2642 = vadd.f32 %v2512, %v2641
        %2643 = vmatmul.f32.gmra.mxu0 %v996
        %v2644 = vpop.f32.mrf.mxu0
        %v2645 = vadd.f32 %v2515, %v2644
        %2646 = vdwg.mxu0
        %2647 = vmatpush.msra.mxu0 %v1064
        %2648 = vmatpush.msra.mxu0 %v1062
        %2649 = vmatpush.msra.mxu0 %v1060
        %2650 = vmatpush.msra.mxu0 %v1058
        %2651 = vmatpush.msra.mxu0 %v1056
        %2652 = vmatpush.msra.mxu0 %v1054
        %2653 = vmatpush.msra.mxu0 %v1052
        %2654 = vmatpush.msra.mxu0 %v1050
        %2655 = vmatpush.msra.mxu0 %v1048
        %2656 = vmatpush.msra.mxu0 %v1046
        %2657 = vmatpush.msra.mxu0 %v1044
        %2658 = vmatpush.msra.mxu0 %v1042
        %2659 = vmatpush.msra.mxu0 %v1040
        %2660 = vmatpush.msra.mxu0 %v1038
        %2661 = vmatpush.msra.mxu0 %v1036
        %2662 = vmatpush.msra.mxu0 %v1034
        %2663 = vmatmul.f32.gmra.mxu0 %v989
        %v2664 = vpop.f32.mrf.mxu0
        %v2665 = vadd.f32 %v2639, %v2664
        %2666 = vmatmul.f32.gmra.mxu0 %v993
        %v2667 = vpop.f32.mrf.mxu0
        %v2668 = vadd.f32 %v2642, %v2667
        %2669 = vmatmul.f32.gmra.mxu0 %v997
        %v2670 = vpop.f32.mrf.mxu0
        %v2671 = vadd.f32 %v2645, %v2670
        %2672 = vdwg.mxu0
        %2673 = vmatpush.msra.mxu0 %v1096
        %2674 = vmatpush.msra.mxu0 %v1094
        %2675 = vmatpush.msra.mxu0 %v1092
        %2676 = vmatpush.msra.mxu0 %v1090
        %2677 = vmatpush.msra.mxu0 %v1088
        %2678 = vmatpush.msra.mxu0 %v1086
        %2679 = vmatpush.msra.mxu0 %v1084
        %2680 = vmatpush.msra.mxu0 %v1082
        %2681 = vmatpush.msra.mxu0 %v1080
        %2682 = vmatpush.msra.mxu0 %v1078
        %2683 = vmatpush.msra.mxu0 %v1076
        %2684 = vmatpush.msra.mxu0 %v1074
        %2685 = vmatpush.msra.mxu0 %v1072
        %2686 = vmatpush.msra.mxu0 %v1070
        %2687 = vmatpush.msra.mxu0 %v1068
        %2688 = vmatpush.msra.mxu0 %v1066
        %2689 = vmatmul.f32.gmra.mxu0 %v990
        %v2690 = vpop.f32.mrf.mxu0
        %v2691 = vadd.f32 %v2665, %v2690
        %2692 = vmatmul.f32.gmra.mxu0 %v994
        %v2693 = vpop.f32.mrf.mxu0
        %v2694 = vadd.f32 %v2668, %v2693
        %2695 = vmatmul.f32.gmra.mxu0 %v998
        %v2696 = vpop.f32.mrf.mxu0
        %v2697 = vadd.f32 %v2671, %v2696
        %2698 = vdwg.mxu0
        %2699 = vmatpush.msra.mxu0 %v1128
        %2700 = vmatpush.msra.mxu0 %v1126
        %2701 = vmatpush.msra.mxu0 %v1124
        %2702 = vmatpush.msra.mxu0 %v1122
        %2703 = vmatpush.msra.mxu0 %v1120
        %2704 = vmatpush.msra.mxu0 %v1118
        %2705 = vmatpush.msra.mxu0 %v1116
        %2706 = vmatpush.msra.mxu0 %v1114
        %2707 = vmatpush.msra.mxu0 %v1112
        %2708 = vmatpush.msra.mxu0 %v1110
        %2709 = vmatpush.msra.mxu0 %v1108
        %2710 = vmatpush.msra.mxu0 %v1106
        %2711 = vmatpush.msra.mxu0 %v1104
        %2712 = vmatpush.msra.mxu0 %v1102
        %2713 = vmatpush.msra.mxu0 %v1100
        %2714 = vmatpush.msra.mxu0 %v1098
        %2715 = vmatmul.f32.gmra.mxu0 %v991
        %v2716 = vpop.f32.mrf.mxu0
        %v2717 = vadd.f32 %v2691, %v2716
        %2718 = vmatmul.f32.gmra.mxu0 %v995
        %v2719 = vpop.f32.mrf.mxu0
        %v2720 = vadd.f32 %v2694, %v2719
        %2721 = vmatmul.f32.gmra.mxu0 %v999
        %v2722 = vpop.f32.mrf.mxu0
        %v2723 = vadd.f32 %v2697, %v2722
        %2724 = vdwg.mxu0
        %2725 = vmatpush.msra.mxu0 %v1033
        %2726 = vmatpush.msra.mxu0 %v1031
        %2727 = vmatpush.msra.mxu0 %v1029
        %2728 = vmatpush.msra.mxu0 %v1027
        %2729 = vmatpush.msra.mxu0 %v1025
        %2730 = vmatpush.msra.mxu0 %v1023
        %2731 = vmatpush.msra.mxu0 %v1021
        %2732 = vmatpush.msra.mxu0 %v1019
        %2733 = vmatpush.msra.mxu0 %v1017
        %2734 = vmatpush.msra.mxu0 %v1015
        %2735 = vmatpush.msra.mxu0 %v1013
        %2736 = vmatpush.msra.mxu0 %v1011
        %2737 = vmatpush.msra.mxu0 %v1009
        %2738 = vmatpush.msra.mxu0 %v1007
        %2739 = vmatpush.msra.mxu0 %v1005
        %2740 = vmatpush.msra.mxu0 %v1003
        %2741 = vmatmul.f32.gmra.mxu0 %v988
        %v2742 = vpop.f32.mrf.mxu0
        %v2743 = vadd.f32 %v2613, %v2742
        %2744 = vmatmul.f32.gmra.mxu0 %v992
        %v2745 = vpop.f32.mrf.mxu0
        %v2746 = vadd.f32 %v2616, %v2745
        %2747 = vmatmul.f32.gmra.mxu0 %v996
        %v2748 = vpop.f32.mrf.mxu0
        %v2749 = vadd.f32 %v2619, %v2748
        %2750 = vdwg.mxu0
        %2751 = vmatpush.msra.mxu0 %v1065
        %2752 = vmatpush.msra.mxu0 %v1063
        %2753 = vmatpush.msra.mxu0 %v1061
        %2754 = vmatpush.msra.mxu0 %v1059
        %2755 = vmatpush.msra.mxu0 %v1057
        %2756 = vmatpush.msra.mxu0 %v1055
        %2757 = vmatpush.msra.mxu0 %v1053
        %2758 = vmatpush.msra.mxu0 %v1051
        %2759 = vmatpush.msra.mxu0 %v1049
        %2760 = vmatpush.msra.mxu0 %v1047
        %2761 = vmatpush.msra.mxu0 %v1045
        %2762 = vmatpush.msra.mxu0 %v1043
        %2763 = vmatpush.msra.mxu0 %v1041
        %2764 = vmatpush.msra.mxu0 %v1039
        %2765 = vmatpush.msra.mxu0 %v1037
        %2766 = vmatpush.msra.mxu0 %v1035
        %2767 = vmatmul.f32.gmra.mxu0 %v989
        %v2768 = vpop.f32.mrf.mxu0
        %v2769 = vadd.f32 %v2743, %v2768
        %2770 = vmatmul.f32.gmra.mxu0 %v993
        %v2771 = vpop.f32.mrf.mxu0
        %v2772 = vadd.f32 %v2746, %v2771
        %2773 = vmatmul.f32.gmra.mxu0 %v997
        %v2774 = vpop.f32.mrf.mxu0
        %v2775 = vadd.f32 %v2749, %v2774
        %2776 = vdwg.mxu0
        %2777 = vmatpush.msra.mxu0 %v1097
        %2778 = vmatpush.msra.mxu0 %v1095
        %2779 = vmatpush.msra.mxu0 %v1093
        %2780 = vmatpush.msra.mxu0 %v1091
        %2781 = vmatpush.msra.mxu0 %v1089
        %2782 = vmatpush.msra.mxu0 %v1087
        %2783 = vmatpush.msra.mxu0 %v1085
        %2784 = vmatpush.msra.mxu0 %v1083
        %2785 = vmatpush.msra.mxu0 %v1081
        %2786 = vmatpush.msra.mxu0 %v1079
        %2787 = vmatpush.msra.mxu0 %v1077
        %2788 = vmatpush.msra.mxu0 %v1075
        %2789 = vmatpush.msra.mxu0 %v1073
        %2790 = vmatpush.msra.mxu0 %v1071
        %2791 = vmatpush.msra.mxu0 %v1069
        %2792 = vmatpush.msra.mxu0 %v1067
        %2793 = vmatmul.f32.gmra.mxu0 %v990
        %v2794 = vpop.f32.mrf.mxu0
        %v2795 = vadd.f32 %v2769, %v2794
        %2796 = vmatmul.f32.gmra.mxu0 %v994
        %v2797 = vpop.f32.mrf.mxu0
        %v2798 = vadd.f32 %v2772, %v2797
        %2799 = vmatmul.f32.gmra.mxu0 %v998
        %v2800 = vpop.f32.mrf.mxu0
        %v2801 = vadd.f32 %v2775, %v2800
        %2802 = vdwg.mxu0
        %2803 = vmatpush.msra.mxu0 %v1129
        %2804 = vmatpush.msra.mxu0 %v1127
        %2805 = vmatpush.msra.mxu0 %v1125
        %2806 = vmatpush.msra.mxu0 %v1123
        %2807 = vmatpush.msra.mxu0 %v1121
        %2808 = vmatpush.msra.mxu0 %v1119
        %2809 = vmatpush.msra.mxu0 %v1117
        %2810 = vmatpush.msra.mxu0 %v1115
        %2811 = vmatpush.msra.mxu0 %v1113
        %2812 = vmatpush.msra.mxu0 %v1111
        %2813 = vmatpush.msra.mxu0 %v1109
        %2814 = vmatpush.msra.mxu0 %v1107
        %2815 = vmatpush.msra.mxu0 %v1105
        %2816 = vmatpush.msra.mxu0 %v1103
        %2817 = vmatpush.msra.mxu0 %v1101
        %2818 = vmatpush.msra.mxu0 %v1099
        %2819 = vmatmul.f32.gmra.mxu0 %v991
        %v2820 = vpop.f32.mrf.mxu0
        %v2821 = vadd.f32 %v2795, %v2820
        %2822 = vmatmul.f32.gmra.mxu0 %v995
        %v2823 = vpop.f32.mrf.mxu0
        %v2824 = vadd.f32 %v2798, %v2823
        %2825 = vmatmul.f32.gmra.mxu0 %v999
        %v2826 = vpop.f32.mrf.mxu0
        %v2827 = vadd.f32 %v2801, %v2826
        %2828 = vdwg.mxu0
        %v2829 = vadd.f32 %v2717, %v1712
        %v2830 = vadd.f32 %v2821, %v1713
        %v2831 = vadd.f32 %v2720, %v1712
        %v2832 = vadd.f32 %v2824, %v1713
        %v2833 = vadd.f32 %v2723, %v1712
        %v2834 = vadd.f32 %v2827, %v1713
        %v2835 = vmax.f32 %v2829, 0.0
        %v2836 = vmax.f32 %v2830, 0.0
        %v2837 = vmax.f32 %v2831, 0.0
        %v2838 = vmax.f32 %v2832, 0.0
        %v2839 = vmax.f32 %v2833, 0.0
        %v2840 = vmax.f32 %v2834, 0.0
        %v2853 = vrot.slane %v678, 1
        %v2854 = vrot.slane %v682, 1
        %v2855 = vsel %vm723, %v2853, %v2854
        %v2856 = vrot.slane %v679, 1
        %v2857 = vrot.slane %v683, 1
        %v2858 = vsel %vm723, %v2856, %v2857
        %v2859 = vrot.slane %v680, 1
        %v2860 = vrot.slane %v684, 1
        %v2861 = vsel %vm723, %v2859, %v2860
        %v2862 = vrot.slane %v681, 1
        %v2863 = vrot.slane %v685, 1
        %v2864 = vsel %vm723, %v2862, %v2863
        %v2865 = vrot.slane %v686, 1
        %v2866 = vsel %vm723, %v2854, %v2865
        %v2867 = vrot.slane %v687, 1
        %v2868 = vsel %vm723, %v2857, %v2867
        %v2869 = vrot.slane %v688, 1
        %v2870 = vsel %vm723, %v2860, %v2869
        %v2871 = vrot.slane %v689, 1
        %v2872 = vsel %vm723, %v2863, %v2871
        %2881 = vmatpush.msra.mxu0 %v1887
        %2882 = vmatpush.msra.mxu0 %v1885
        %2883 = vmatpush.msra.mxu0 %v1883
        %2884 = vmatpush.msra.mxu0 %v1881
        %2885 = vmatpush.msra.mxu0 %v1879
        %2886 = vmatpush.msra.mxu0 %v1877
        %2887 = vmatpush.msra.mxu0 %v1875
        %2888 = vmatpush.msra.mxu0 %v1873
        %2889 = vmatpush.msra.mxu0 %v1871
        %2890 = vmatpush.msra.mxu0 %v1869
        %2891 = vmatpush.msra.mxu0 %v1867
        %2892 = vmatpush.msra.mxu0 %v1865
        %2893 = vmatpush.msra.mxu0 %v1863
        %2894 = vmatpush.msra.mxu0 %v1861
        %2895 = vmatpush.msra.mxu0 %v1859
        %2896 = vmatpush.msra.mxu0 %v1857
        %2897 = vmatmul.f32.gmra.mxu0 %v988
        %v2898 = vpop.f32.mrf.mxu0
        %v2899 = vadd.f32 0.0, %v2898
        %2900 = vmatmul.f32.gmra.mxu0 %v992
        %v2901 = vpop.f32.mrf.mxu0
        %v2902 = vadd.f32 0.0, %v2901
        %2903 = vmatmul.f32.gmra.mxu0 %v996
        %v2904 = vpop.f32.mrf.mxu0
        %v2905 = vadd.f32 0.0, %v2904
        %2906 = vdwg.mxu0
        %2907 = vmatpush.msra.mxu0 %v1919
        %2908 = vmatpush.msra.mxu0 %v1917
        %2909 = vmatpush.msra.mxu0 %v1915
        %2910 = vmatpush.msra.mxu0 %v1913
        %2911 = vmatpush.msra.mxu0 %v1911
        %2912 = vmatpush.msra.mxu0 %v1909
        %2913 = vmatpush.msra.mxu0 %v1907
        %2914 = vmatpush.msra.mxu0 %v1905
        %2915 = vmatpush.msra.mxu0 %v1903
        %2916 = vmatpush.msra.mxu0 %v1901
        %2917 = vmatpush.msra.mxu0 %v1899
        %2918 = vmatpush.msra.mxu0 %v1897
        %2919 = vmatpush.msra.mxu0 %v1895
        %2920 = vmatpush.msra.mxu0 %v1893
        %2921 = vmatpush.msra.mxu0 %v1891
        %2922 = vmatpush.msra.mxu0 %v1889
        %2923 = vmatmul.f32.gmra.mxu0 %v989
        %v2924 = vpop.f32.mrf.mxu0
        %v2925 = vadd.f32 %v2899, %v2924
        %2926 = vmatmul.f32.gmra.mxu0 %v993
        %v2927 = vpop.f32.mrf.mxu0
        %v2928 = vadd.f32 %v2902, %v2927
        %2929 = vmatmul.f32.gmra.mxu0 %v997
        %v2930 = vpop.f32.mrf.mxu0
        %v2931 = vadd.f32 %v2905, %v2930
        %2932 = vdwg.mxu0
        %2933 = vmatpush.msra.mxu0 %v1951
        %2934 = vmatpush.msra.mxu0 %v1949
        %2935 = vmatpush.msra.mxu0 %v1947
        %2936 = vmatpush.msra.mxu0 %v1945
        %2937 = vmatpush.msra.mxu0 %v1943
        %2938 = vmatpush.msra.mxu0 %v1941
        %2939 = vmatpush.msra.mxu0 %v1939
        %2940 = vmatpush.msra.mxu0 %v1937
        %2941 = vmatpush.msra.mxu0 %v1935
        %2942 = vmatpush.msra.mxu0 %v1933
        %2943 = vmatpush.msra.mxu0 %v1931
        %2944 = vmatpush.msra.mxu0 %v1929
        %2945 = vmatpush.msra.mxu0 %v1927
        %2946 = vmatpush.msra.mxu0 %v1925
        %2947 = vmatpush.msra.mxu0 %v1923
        %2948 = vmatpush.msra.mxu0 %v1921
        %2949 = vmatmul.f32.gmra.mxu0 %v990
        %v2950 = vpop.f32.mrf.mxu0
        %v2951 = vadd.f32 %v2925, %v2950
        %2952 = vmatmul.f32.gmra.mxu0 %v994
        %v2953 = vpop.f32.mrf.mxu0
        %v2954 = vadd.f32 %v2928, %v2953
        %2955 = vmatmul.f32.gmra.mxu0 %v998
        %v2956 = vpop.f32.mrf.mxu0
        %v2957 = vadd.f32 %v2931, %v2956
        %2958 = vdwg.mxu0
        %2959 = vmatpush.msra.mxu0 %v1983
        %2960 = vmatpush.msra.mxu0 %v1981
        %2961 = vmatpush.msra.mxu0 %v1979
        %2962 = vmatpush.msra.mxu0 %v1977
        %2963 = vmatpush.msra.mxu0 %v1975
        %2964 = vmatpush.msra.mxu0 %v1973
        %2965 = vmatpush.msra.mxu0 %v1971
        %2966 = vmatpush.msra.mxu0 %v1969
        %2967 = vmatpush.msra.mxu0 %v1967
        %2968 = vmatpush.msra.mxu0 %v1965
        %2969 = vmatpush.msra.mxu0 %v1963
        %2970 = vmatpush.msra.mxu0 %v1961
        %2971 = vmatpush.msra.mxu0 %v1959
        %2972 = vmatpush.msra.mxu0 %v1957
        %2973 = vmatpush.msra.mxu0 %v1955
        %2974 = vmatpush.msra.mxu0 %v1953
        %2975 = vmatmul.f32.gmra.mxu0 %v991
        %v2976 = vpop.f32.mrf.mxu0
        %v2977 = vadd.f32 %v2951, %v2976
        %2978 = vmatmul.f32.gmra.mxu0 %v995
        %v2979 = vpop.f32.mrf.mxu0
        %v2980 = vadd.f32 %v2954, %v2979
        %2981 = vmatmul.f32.gmra.mxu0 %v999
        %v2982 = vpop.f32.mrf.mxu0
        %v2983 = vadd.f32 %v2957, %v2982
        %2984 = vdwg.mxu0
        %2985 = vmatpush.msra.mxu0 %v1888
        %2986 = vmatpush.msra.mxu0 %v1886
        %2987 = vmatpush.msra.mxu0 %v1884
        %2988 = vmatpush.msra.mxu0 %v1882
        %2989 = vmatpush.msra.mxu0 %v1880
        %2990 = vmatpush.msra.mxu0 %v1878
        %2991 = vmatpush.msra.mxu0 %v1876
        %2992 = vmatpush.msra.mxu0 %v1874
        %2993 = vmatpush.msra.mxu0 %v1872
        %2994 = vmatpush.msra.mxu0 %v1870
        %2995 = vmatpush.msra.mxu0 %v1868
        %2996 = vmatpush.msra.mxu0 %v1866
        %2997 = vmatpush.msra.mxu0 %v1864
        %2998 = vmatpush.msra.mxu0 %v1862
        %2999 = vmatpush.msra.mxu0 %v1860
        %3000 = vmatpush.msra.mxu0 %v1858
        %3001 = vmatmul.f32.gmra.mxu0 %v988
        %v3002 = vpop.f32.mrf.mxu0
        %v3003 = vadd.f32 0.0, %v3002
        %3004 = vmatmul.f32.gmra.mxu0 %v992
        %v3005 = vpop.f32.mrf.mxu0
        %v3006 = vadd.f32 0.0, %v3005
        %3007 = vmatmul.f32.gmra.mxu0 %v996
        %v3008 = vpop.f32.mrf.mxu0
        %v3009 = vadd.f32 0.0, %v3008
        %3010 = vdwg.mxu0
        %3011 = vmatpush.msra.mxu0 %v1920
        %3012 = vmatpush.msra.mxu0 %v1918
        %3013 = vmatpush.msra.mxu0 %v1916
        %3014 = vmatpush.msra.mxu0 %v1914
        %3015 = vmatpush.msra.mxu0 %v1912
        %3016 = vmatpush.msra.mxu0 %v1910
        %3017 = vmatpush.msra.mxu0 %v1908
        %3018 = vmatpush.msra.mxu0 %v1906
        %3019 = vmatpush.msra.mxu0 %v1904
        %3020 = vmatpush.msra.mxu0 %v1902
        %3021 = vmatpush.msra.mxu0 %v1900
        %3022 = vmatpush.msra.mxu0 %v1898
        %3023 = vmatpush.msra.mxu0 %v1896
        %3024 = vmatpush.msra.mxu0 %v1894
        %3025 = vmatpush.msra.mxu0 %v1892
        %3026 = vmatpush.msra.mxu0 %v1890
        %3027 = vmatmul.f32.gmra.mxu0 %v989
        %v3028 = vpop.f32.mrf.mxu0
        %v3029 = vadd.f32 %v3003, %v3028
        %3030 = vmatmul.f32.gmra.mxu0 %v993
        %v3031 = vpop.f32.mrf.mxu0
        %v3032 = vadd.f32 %v3006, %v3031
        %3033 = vmatmul.f32.gmra.mxu0 %v997
        %v3034 = vpop.f32.mrf.mxu0
        %v3035 = vadd.f32 %v3009, %v3034
        %3036 = vdwg.mxu0
        %3037 = vmatpush.msra.mxu0 %v1952
        %3038 = vmatpush.msra.mxu0 %v1950
        %3039 = vmatpush.msra.mxu0 %v1948
        %3040 = vmatpush.msra.mxu0 %v1946
        %3041 = vmatpush.msra.mxu0 %v1944
        %3042 = vmatpush.msra.mxu0 %v1942
        %3043 = vmatpush.msra.mxu0 %v1940
        %3044 = vmatpush.msra.mxu0 %v1938
        %3045 = vmatpush.msra.mxu0 %v1936
        %3046 = vmatpush.msra.mxu0 %v1934
        %3047 = vmatpush.msra.mxu0 %v1932
        %3048 = vmatpush.msra.mxu0 %v1930
        %3049 = vmatpush.msra.mxu0 %v1928
        %3050 = vmatpush.msra.mxu0 %v1926
        %3051 = vmatpush.msra.mxu0 %v1924
        %3052 = vmatpush.msra.mxu0 %v1922
        %3053 = vmatmul.f32.gmra.mxu0 %v990
        %v3054 = vpop.f32.mrf.mxu0
        %v3055 = vadd.f32 %v3029, %v3054
        %3056 = vmatmul.f32.gmra.mxu0 %v994
        %v3057 = vpop.f32.mrf.mxu0
        %v3058 = vadd.f32 %v3032, %v3057
        %3059 = vmatmul.f32.gmra.mxu0 %v998
        %v3060 = vpop.f32.mrf.mxu0
        %v3061 = vadd.f32 %v3035, %v3060
        %3062 = vdwg.mxu0
        %3063 = vmatpush.msra.mxu0 %v1984
        %3064 = vmatpush.msra.mxu0 %v1982
        %3065 = vmatpush.msra.mxu0 %v1980
        %3066 = vmatpush.msra.mxu0 %v1978
        %3067 = vmatpush.msra.mxu0 %v1976
        %3068 = vmatpush.msra.mxu0 %v1974
        %3069 = vmatpush.msra.mxu0 %v1972
        %3070 = vmatpush.msra.mxu0 %v1970
        %3071 = vmatpush.msra.mxu0 %v1968
        %3072 = vmatpush.msra.mxu0 %v1966
        %3073 = vmatpush.msra.mxu0 %v1964
        %3074 = vmatpush.msra.mxu0 %v1962
        %3075 = vmatpush.msra.mxu0 %v1960
        %3076 = vmatpush.msra.mxu0 %v1958
        %3077 = vmatpush.msra.mxu0 %v1956
        %3078 = vmatpush.msra.mxu0 %v1954
        %3079 = vmatmul.f32.gmra.mxu0 %v991
        %v3080 = vpop.f32.mrf.mxu0
        %v3081 = vadd.f32 %v3055, %v3080
        %3082 = vmatmul.f32.gmra.mxu0 %v995
        %v3083 = vpop.f32.mrf.mxu0
        %v3084 = vadd.f32 %v3058, %v3083
        %3085 = vmatmul.f32.gmra.mxu0 %v999
        %v3086 = vpop.f32.mrf.mxu0
        %v3087 = vadd.f32 %v3061, %v3086
        %3088 = vdwg.mxu0
        %3089 = vmatpush.msra.mxu0 %v1758
        %3090 = vmatpush.msra.mxu0 %v1756
        %3091 = vmatpush.msra.mxu0 %v1754
        %3092 = vmatpush.msra.mxu0 %v1752
        %3093 = vmatpush.msra.mxu0 %v1750
        %3094 = vmatpush.msra.mxu0 %v1748
        %3095 = vmatpush.msra.mxu0 %v1746
        %3096 = vmatpush.msra.mxu0 %v1744
        %3097 = vmatpush.msra.mxu0 %v1742
        %3098 = vmatpush.msra.mxu0 %v1740
        %3099 = vmatpush.msra.mxu0 %v1738
        %3100 = vmatpush.msra.mxu0 %v1736
        %3101 = vmatpush.msra.mxu0 %v1734
        %3102 = vmatpush.msra.mxu0 %v1732
        %3103 = vmatpush.msra.mxu0 %v1730
        %3104 = vmatpush.msra.mxu0 %v1728
        %3105 = vmatmul.f32.gmra.mxu0 %v2855
        %v3106 = vpop.f32.mrf.mxu0
        %v3107 = vadd.f32 %v2977, %v3106
        %3108 = vmatmul.f32.gmra.mxu0 %v2866
        %v3109 = vpop.f32.mrf.mxu0
        %v3110 = vadd.f32 %v2980, %v3109
        %3111 = vmatmul.f32.gmra.mxu0 0.0
        %v3112 = vpop.f32.mrf.mxu0
        %v3113 = vadd.f32 %v2983, %v3112
        %3114 = vdwg.mxu0
        %3115 = vmatpush.msra.mxu0 %v1790
        %3116 = vmatpush.msra.mxu0 %v1788
        %3117 = vmatpush.msra.mxu0 %v1786
        %3118 = vmatpush.msra.mxu0 %v1784
        %3119 = vmatpush.msra.mxu0 %v1782
        %3120 = vmatpush.msra.mxu0 %v1780
        %3121 = vmatpush.msra.mxu0 %v1778
        %3122 = vmatpush.msra.mxu0 %v1776
        %3123 = vmatpush.msra.mxu0 %v1774
        %3124 = vmatpush.msra.mxu0 %v1772
        %3125 = vmatpush.msra.mxu0 %v1770
        %3126 = vmatpush.msra.mxu0 %v1768
        %3127 = vmatpush.msra.mxu0 %v1766
        %3128 = vmatpush.msra.mxu0 %v1764
        %3129 = vmatpush.msra.mxu0 %v1762
        %3130 = vmatpush.msra.mxu0 %v1760
        %3131 = vmatmul.f32.gmra.mxu0 %v2858
        %v3132 = vpop.f32.mrf.mxu0
        %v3133 = vadd.f32 %v3107, %v3132
        %3134 = vmatmul.f32.gmra.mxu0 %v2868
        %v3135 = vpop.f32.mrf.mxu0
        %v3136 = vadd.f32 %v3110, %v3135
        %3137 = vmatmul.f32.gmra.mxu0 0.0
        %v3138 = vpop.f32.mrf.mxu0
        %v3139 = vadd.f32 %v3113, %v3138
        %3140 = vdwg.mxu0
        %3141 = vmatpush.msra.mxu0 %v1822
        %3142 = vmatpush.msra.mxu0 %v1820
        %3143 = vmatpush.msra.mxu0 %v1818
        %3144 = vmatpush.msra.mxu0 %v1816
        %3145 = vmatpush.msra.mxu0 %v1814
        %3146 = vmatpush.msra.mxu0 %v1812
        %3147 = vmatpush.msra.mxu0 %v1810
        %3148 = vmatpush.msra.mxu0 %v1808
        %3149 = vmatpush.msra.mxu0 %v1806
        %3150 = vmatpush.msra.mxu0 %v1804
        %3151 = vmatpush.msra.mxu0 %v1802
        %3152 = vmatpush.msra.mxu0 %v1800
        %3153 = vmatpush.msra.mxu0 %v1798
        %3154 = vmatpush.msra.mxu0 %v1796
        %3155 = vmatpush.msra.mxu0 %v1794
        %3156 = vmatpush.msra.mxu0 %v1792
        %3157 = vmatmul.f32.gmra.mxu0 %v2861
        %v3158 = vpop.f32.mrf.mxu0
        %v3159 = vadd.f32 %v3133, %v3158
        %3160 = vmatmul.f32.gmra.mxu0 %v2870
        %v3161 = vpop.f32.mrf.mxu0
        %v3162 = vadd.f32 %v3136, %v3161
        %3163 = vmatmul.f32.gmra.mxu0 0.0
        %v3164 = vpop.f32.mrf.mxu0
        %v3165 = vadd.f32 %v3139, %v3164
        %3166 = vdwg.mxu0
        %3167 = vmatpush.msra.mxu0 %v1854
        %3168 = vmatpush.msra.mxu0 %v1852
        %3169 = vmatpush.msra.mxu0 %v1850
        %3170 = vmatpush.msra.mxu0 %v1848
        %3171 = vmatpush.msra.mxu0 %v1846
        %3172 = vmatpush.msra.mxu0 %v1844
        %3173 = vmatpush.msra.mxu0 %v1842
        %3174 = vmatpush.msra.mxu0 %v1840
        %3175 = vmatpush.msra.mxu0 %v1838
        %3176 = vmatpush.msra.mxu0 %v1836
        %3177 = vmatpush.msra.mxu0 %v1834
        %3178 = vmatpush.msra.mxu0 %v1832
        %3179 = vmatpush.msra.mxu0 %v1830
        %3180 = vmatpush.msra.mxu0 %v1828
        %3181 = vmatpush.msra.mxu0 %v1826
        %3182 = vmatpush.msra.mxu0 %v1824
        %3183 = vmatmul.f32.gmra.mxu0 %v2864
        %v3184 = vpop.f32.mrf.mxu0
        %v3185 = vadd.f32 %v3159, %v3184
        %3186 = vmatmul.f32.gmra.mxu0 %v2872
        %v3187 = vpop.f32.mrf.mxu0
        %v3188 = vadd.f32 %v3162, %v3187
        %3189 = vmatmul.f32.gmra.mxu0 0.0
        %v3190 = vpop.f32.mrf.mxu0
        %v3191 = vadd.f32 %v3165, %v3190
        %3192 = vdwg.mxu0
        %3193 = vmatpush.msra.mxu0 %v1759
        %3194 = vmatpush.msra.mxu0 %v1757
        %3195 = vmatpush.msra.mxu0 %v1755
        %3196 = vmatpush.msra.mxu0 %v1753
        %3197 = vmatpush.msra.mxu0 %v1751
        %3198 = vmatpush.msra.mxu0 %v1749
        %3199 = vmatpush.msra.mxu0 %v1747
        %3200 = vmatpush.msra.mxu0 %v1745
        %3201 = vmatpush.msra.mxu0 %v1743
        %3202 = vmatpush.msra.mxu0 %v1741
        %3203 = vmatpush.msra.mxu0 %v1739
        %3204 = vmatpush.msra.mxu0 %v1737
        %3205 = vmatpush.msra.mxu0 %v1735
        %3206 = vmatpush.msra.mxu0 %v1733
        %3207 = vmatpush.msra.mxu0 %v1731
        %3208 = vmatpush.msra.mxu0 %v1729
        %3209 = vmatmul.f32.gmra.mxu0 %v2855
        %v3210 = vpop.f32.mrf.mxu0
        %v3211 = vadd.f32 %v3081, %v3210
        %3212 = vmatmul.f32.gmra.mxu0 %v2866
        %v3213 = vpop.f32.mrf.mxu0
        %v3214 = vadd.f32 %v3084, %v3213
        %3215 = vmatmul.f32.gmra.mxu0 0.0
        %v3216 = vpop.f32.mrf.mxu0
        %v3217 = vadd.f32 %v3087, %v3216
        %3218 = vdwg.mxu0
        %3219 = vmatpush.msra.mxu0 %v1791
        %3220 = vmatpush.msra.mxu0 %v1789
        %3221 = vmatpush.msra.mxu0 %v1787
        %3222 = vmatpush.msra.mxu0 %v1785
        %3223 = vmatpush.msra.mxu0 %v1783
        %3224 = vmatpush.msra.mxu0 %v1781
        %3225 = vmatpush.msra.mxu0 %v1779
        %3226 = vmatpush.msra.mxu0 %v1777
        %3227 = vmatpush.msra.mxu0 %v1775
        %3228 = vmatpush.msra.mxu0 %v1773
        %3229 = vmatpush.msra.mxu0 %v1771
        %3230 = vmatpush.msra.mxu0 %v1769
        %3231 = vmatpush.msra.mxu0 %v1767
        %3232 = vmatpush.msra.mxu0 %v1765
        %3233 = vmatpush.msra.mxu0 %v1763
        %3234 = vmatpush.msra.mxu0 %v1761
        %3235 = vmatmul.f32.gmra.mxu0 %v2858
        %v3236 = vpop.f32.mrf.mxu0
        %v3237 = vadd.f32 %v3211, %v3236
        %3238 = vmatmul.f32.gmra.mxu0 %v2868
        %v3239 = vpop.f32.mrf.mxu0
        %v3240 = vadd.f32 %v3214, %v3239
        %3241 = vmatmul.f32.gmra.mxu0 0.0
        %v3242 = vpop.f32.mrf.mxu0
        %v3243 = vadd.f32 %v3217, %v3242
        %3244 = vdwg.mxu0
        %3245 = vmatpush.msra.mxu0 %v1823
        %3246 = vmatpush.msra.mxu0 %v1821
        %3247 = vmatpush.msra.mxu0 %v1819
        %3248 = vmatpush.msra.mxu0 %v1817
        %3249 = vmatpush.msra.mxu0 %v1815
        %3250 = vmatpush.msra.mxu0 %v1813
        %3251 = vmatpush.msra.mxu0 %v1811
        %3252 = vmatpush.msra.mxu0 %v1809
        %3253 = vmatpush.msra.mxu0 %v1807
        %3254 = vmatpush.msra.mxu0 %v1805
        %3255 = vmatpush.msra.mxu0 %v1803
        %3256 = vmatpush.msra.mxu0 %v1801
        %3257 = vmatpush.msra.mxu0 %v1799
        %3258 = vmatpush.msra.mxu0 %v1797
        %3259 = vmatpush.msra.mxu0 %v1795
        %3260 = vmatpush.msra.mxu0 %v1793
        %3261 = vmatmul.f32.gmra.mxu0 %v2861
        %v3262 = vpop.f32.mrf.mxu0
        %v3263 = vadd.f32 %v3237, %v3262
        %3264 = vmatmul.f32.gmra.mxu0 %v2870
        %v3265 = vpop.f32.mrf.mxu0
        %v3266 = vadd.f32 %v3240, %v3265
        %3267 = vmatmul.f32.gmra.mxu0 0.0
        %v3268 = vpop.f32.mrf.mxu0
        %v3269 = vadd.f32 %v3243, %v3268
        %3270 = vdwg.mxu0
        %3271 = vmatpush.msra.mxu0 %v1855
        %3272 = vmatpush.msra.mxu0 %v1853
        %3273 = vmatpush.msra.mxu0 %v1851
        %3274 = vmatpush.msra.mxu0 %v1849
        %3275 = vmatpush.msra.mxu0 %v1847
        %3276 = vmatpush.msra.mxu0 %v1845
        %3277 = vmatpush.msra.mxu0 %v1843
        %3278 = vmatpush.msra.mxu0 %v1841
        %3279 = vmatpush.msra.mxu0 %v1839
        %3280 = vmatpush.msra.mxu0 %v1837
        %3281 = vmatpush.msra.mxu0 %v1835
        %3282 = vmatpush.msra.mxu0 %v1833
        %3283 = vmatpush.msra.mxu0 %v1831
        %3284 = vmatpush.msra.mxu0 %v1829
        %3285 = vmatpush.msra.mxu0 %v1827
        %3286 = vmatpush.msra.mxu0 %v1825
        %3287 = vmatmul.f32.gmra.mxu0 %v2864
        %v3288 = vpop.f32.mrf.mxu0
        %v3289 = vadd.f32 %v3263, %v3288
        %3290 = vmatmul.f32.gmra.mxu0 %v2872
        %v3291 = vpop.f32.mrf.mxu0
        %v3292 = vadd.f32 %v3266, %v3291
        %3293 = vmatmul.f32.gmra.mxu0 0.0
        %v3294 = vpop.f32.mrf.mxu0
        %v3295 = vadd.f32 %v3269, %v3294
        %3296 = vdwg.mxu0
        %v3297 = vadd.f32 %v3185, %v1712
        %v3298 = vadd.f32 %v3289, %v1713
        %v3299 = vadd.f32 %v3188, %v1712
        %v3300 = vadd.f32 %v3292, %v1713
        %v3301 = vadd.f32 %v3191, %v1712
        %v3302 = vadd.f32 %v3295, %v1713
        %v3303 = vmax.f32 %v3297, 0.0
        %v3304 = vmax.f32 %v3298, 0.0
        %v3305 = vmax.f32 %v3299, 0.0
        %v3306 = vmax.f32 %v3300, 0.0
        %v3307 = vmax.f32 %v3301, 0.0
        %v3308 = vmax.f32 %v3302, 0.0
        %v3309 = vld [vmem:[%s5] sm:$0xff]
        %v3310 = vld [vmem:[%s5 + $0x8] sm:$0xff]
        %v3311 = vld [vmem:[%s5 + $0x10] sm:$0xff]
        %v3312 = vld [vmem:[%s5 + $0x18] sm:$0xff]
        %v3313 = vld [vmem:[%s5 + $0x20] sm:$0xff]
        %v3314 = vld [vmem:[%s5 + $0x28] sm:$0xff]
        %v3315 = vld [vmem:[%s5 + $0x30] sm:$0xff]
        %v3316 = vld [vmem:[%s5 + $0x38] sm:$0xff]
        %v3317 = vld [vmem:[%s5 + $0x40] sm:$0xff]
        %v3318 = vld [vmem:[%s5 + $0x48] sm:$0xff]
        %v3319 = vld [vmem:[%s5 + $0x50] sm:$0xff]
        %v3320 = vld [vmem:[%s5 + $0x58] sm:$0xff]
        %v3321 = vld [vmem:[%s5 + $0x60] sm:$0xff]
        %v3322 = vld [vmem:[%s5 + $0x68] sm:$0xff]
        %v3323 = vld [vmem:[%s5 + $0x70] sm:$0xff]
        %v3324 = vld [vmem:[%s5 + $0x78] sm:$0xff]
        %v3325 = vld [vmem:[%s5 + $0x80] sm:$0xff]
        %v3326 = vld [vmem:[%s5 + $0x88] sm:$0xff]
        %v3327 = vld [vmem:[%s5 + $0x90] sm:$0xff]
        %v3328 = vld [vmem:[%s5 + $0x98] sm:$0xff]
        %v3329 = vld [vmem:[%s5 + $0xa0] sm:$0xff]
        %v3330 = vld [vmem:[%s5 + $0xa8] sm:$0xff]
        %v3331 = vld [vmem:[%s5 + $0xb0] sm:$0xff]
        %v3332 = vld [vmem:[%s5 + $0xb8] sm:$0xff]
        %v3333 = vld [vmem:[%s5 + $0xc0] sm:$0xff]
        %v3334 = vld [vmem:[%s5 + $0xc8] sm:$0xff]
        %v3335 = vld [vmem:[%s5 + $0xd0] sm:$0xff]
        %v3336 = vld [vmem:[%s5 + $0xd8] sm:$0xff]
        %v3337 = vld [vmem:[%s5 + $0xe0] sm:$0xff]
        %v3338 = vld [vmem:[%s5 + $0xe8] sm:$0xff]
        %v3339 = vld [vmem:[%s5 + $0xf0] sm:$0xff]
        %v3340 = vld [vmem:[%s5 + $0xf8] sm:$0xff]
        %s3341 = scalar_lea.vmem %s5, 256
        %v3342 = vld [vmem:[%s3341] sm:$0xff]
        %v3343 = vld [vmem:[%s3341 + $0x8] sm:$0xff]
        %v3344 = vld [vmem:[%s3341 + $0x10] sm:$0xff]
        %v3345 = vld [vmem:[%s3341 + $0x18] sm:$0xff]
        %v3346 = vld [vmem:[%s3341 + $0x20] sm:$0xff]
        %v3347 = vld [vmem:[%s3341 + $0x28] sm:$0xff]
        %v3348 = vld [vmem:[%s3341 + $0x30] sm:$0xff]
        %v3349 = vld [vmem:[%s3341 + $0x38] sm:$0xff]
        %v3350 = vld [vmem:[%s3341 + $0x40] sm:$0xff]
        %v3351 = vld [vmem:[%s3341 + $0x48] sm:$0xff]
        %v3352 = vld [vmem:[%s3341 + $0x50] sm:$0xff]
        %v3353 = vld [vmem:[%s3341 + $0x58] sm:$0xff]
        %v3354 = vld [vmem:[%s3341 + $0x60] sm:$0xff]
        %v3355 = vld [vmem:[%s3341 + $0x68] sm:$0xff]
        %v3356 = vld [vmem:[%s3341 + $0x70] sm:$0xff]
        %v3357 = vld [vmem:[%s3341 + $0x78] sm:$0xff]
        %v3358 = vld [vmem:[%s3341 + $0x80] sm:$0xff]
        %v3359 = vld [vmem:[%s3341 + $0x88] sm:$0xff]
        %v3360 = vld [vmem:[%s3341 + $0x90] sm:$0xff]
        %v3361 = vld [vmem:[%s3341 + $0x98] sm:$0xff]
        %v3362 = vld [vmem:[%s3341 + $0xa0] sm:$0xff]
        %v3363 = vld [vmem:[%s3341 + $0xa8] sm:$0xff]
        %v3364 = vld [vmem:[%s3341 + $0xb0] sm:$0xff]
        %v3365 = vld [vmem:[%s3341 + $0xb8] sm:$0xff]
        %v3366 = vld [vmem:[%s3341 + $0xc0] sm:$0xff]
        %v3367 = vld [vmem:[%s3341 + $0xc8] sm:$0xff]
        %v3368 = vld [vmem:[%s3341 + $0xd0] sm:$0xff]
        %v3369 = vld [vmem:[%s3341 + $0xd8] sm:$0xff]
        %v3370 = vld [vmem:[%s3341 + $0xe0] sm:$0xff]
        %v3371 = vld [vmem:[%s3341 + $0xe8] sm:$0xff]
        %v3372 = vld [vmem:[%s3341 + $0xf0] sm:$0xff]
        %v3373 = vld [vmem:[%s3341 + $0xf8] sm:$0xff]
        %3374 = vmatpush.msra.mxu0 %v3357
        %3375 = vmatpush.msra.mxu0 %v3356
        %3376 = vmatpush.msra.mxu0 %v3355
        %3377 = vmatpush.msra.mxu0 %v3354
        %3378 = vmatpush.msra.mxu0 %v3353
        %3379 = vmatpush.msra.mxu0 %v3352
        %3380 = vmatpush.msra.mxu0 %v3351
        %3381 = vmatpush.msra.mxu0 %v3350
        %3382 = vmatpush.msra.mxu0 %v3349
        %3383 = vmatpush.msra.mxu0 %v3348
        %3384 = vmatpush.msra.mxu0 %v3347
        %3385 = vmatpush.msra.mxu0 %v3346
        %3386 = vmatpush.msra.mxu0 %v3345
        %3387 = vmatpush.msra.mxu0 %v3344
        %3388 = vmatpush.msra.mxu0 %v3343
        %3389 = vmatpush.msra.mxu0 %v3342
        %3390 = vmatmul.f32.gmra.mxu0 %v2407
        %v3391 = vpop.f32.mrf.mxu0
        %v3392 = vadd.f32 0.0, %v3391
        %3393 = vmatmul.f32.gmra.mxu0 %v2409
        %v3394 = vpop.f32.mrf.mxu0
        %v3395 = vadd.f32 0.0, %v3394
        %3396 = vmatmul.f32.gmra.mxu0 %v2411
        %v3397 = vpop.f32.mrf.mxu0
        %v3398 = vadd.f32 0.0, %v3397
        %3399 = vdwg.mxu0
        %3400 = vmatpush.msra.mxu0 %v3373
        %3401 = vmatpush.msra.mxu0 %v3372
        %3402 = vmatpush.msra.mxu0 %v3371
        %3403 = vmatpush.msra.mxu0 %v3370
        %3404 = vmatpush.msra.mxu0 %v3369
        %3405 = vmatpush.msra.mxu0 %v3368
        %3406 = vmatpush.msra.mxu0 %v3367
        %3407 = vmatpush.msra.mxu0 %v3366
        %3408 = vmatpush.msra.mxu0 %v3365
        %3409 = vmatpush.msra.mxu0 %v3364
        %3410 = vmatpush.msra.mxu0 %v3363
        %3411 = vmatpush.msra.mxu0 %v3362
        %3412 = vmatpush.msra.mxu0 %v3361
        %3413 = vmatpush.msra.mxu0 %v3360
        %3414 = vmatpush.msra.mxu0 %v3359
        %3415 = vmatpush.msra.mxu0 %v3358
        %3416 = vmatmul.f32.gmra.mxu0 %v2408
        %v3417 = vpop.f32.mrf.mxu0
        %v3418 = vadd.f32 %v3392, %v3417
        %3419 = vmatmul.f32.gmra.mxu0 %v2410
        %v3420 = vpop.f32.mrf.mxu0
        %v3421 = vadd.f32 %v3395, %v3420
        %3422 = vmatmul.f32.gmra.mxu0 %v2412
        %v3423 = vpop.f32.mrf.mxu0
        %v3424 = vadd.f32 %v3398, %v3423
        %3425 = vdwg.mxu0
        %3426 = vmatpush.msra.mxu0 %v3324
        %3427 = vmatpush.msra.mxu0 %v3323
        %3428 = vmatpush.msra.mxu0 %v3322
        %3429 = vmatpush.msra.mxu0 %v3321
        %3430 = vmatpush.msra.mxu0 %v3320
        %3431 = vmatpush.msra.mxu0 %v3319
        %3432 = vmatpush.msra.mxu0 %v3318
        %3433 = vmatpush.msra.mxu0 %v3317
        %3434 = vmatpush.msra.mxu0 %v3316
        %3435 = vmatpush.msra.mxu0 %v3315
        %3436 = vmatpush.msra.mxu0 %v3314
        %3437 = vmatpush.msra.mxu0 %v3313
        %3438 = vmatpush.msra.mxu0 %v3312
        %3439 = vmatpush.msra.mxu0 %v3311
        %3440 = vmatpush.msra.mxu0 %v3310
        %3441 = vmatpush.msra.mxu0 %v3309
        %3442 = vmatmul.f32.gmra.mxu0 %v1722
        %v3443 = vpop.f32.mrf.mxu0
        %v3444 = vadd.f32 %v3418, %v3443
        %3445 = vmatmul.f32.gmra.mxu0 %v1724
        %v3446 = vpop.f32.mrf.mxu0
        %v3447 = vadd.f32 %v3421, %v3446
        %3448 = vmatmul.f32.gmra.mxu0 %v1726
        %v3449 = vpop.f32.mrf.mxu0
        %v3450 = vadd.f32 %v3424, %v3449
        %3451 = vdwg.mxu0
        %3452 = vmatpush.msra.mxu0 %v3340
        %3453 = vmatpush.msra.mxu0 %v3339
        %3454 = vmatpush.msra.mxu0 %v3338
        %3455 = vmatpush.msra.mxu0 %v3337
        %3456 = vmatpush.msra.mxu0 %v3336
        %3457 = vmatpush.msra.mxu0 %v3335
        %3458 = vmatpush.msra.mxu0 %v3334
        %3459 = vmatpush.msra.mxu0 %v3333
        %3460 = vmatpush.msra.mxu0 %v3332
        %3461 = vmatpush.msra.mxu0 %v3331
        %3462 = vmatpush.msra.mxu0 %v3330
        %3463 = vmatpush.msra.mxu0 %v3329
        %3464 = vmatpush.msra.mxu0 %v3328
        %3465 = vmatpush.msra.mxu0 %v3327
        %3466 = vmatpush.msra.mxu0 %v3326
        %3467 = vmatpush.msra.mxu0 %v3325
        %3468 = vmatmul.f32.gmra.mxu0 %v1723
        %v3469 = vpop.f32.mrf.mxu0
        %v3470 = vadd.f32 %v3444, %v3469
        %3471 = vmatmul.f32.gmra.mxu0 %v1725
        %v3472 = vpop.f32.mrf.mxu0
        %v3473 = vadd.f32 %v3447, %v3472
        %3474 = vmatmul.f32.gmra.mxu0 %v1727
        %v3475 = vpop.f32.mrf.mxu0
        %v3476 = vadd.f32 %v3450, %v3475
        %3477 = vdwg.mxu0
        %s3478 = scalar_lea.vmem %s5, 512
        %v3479 = vld [vmem:[%s3478] sm:$0xff]
        %v3480 = vld [vmem:[%s3478 + $0x8] sm:$0xff]
        %v3481 = vld [vmem:[%s3478 + $0x10] sm:$0xff]
        %v3482 = vld [vmem:[%s3478 + $0x18] sm:$0xff]
        %v3483 = vld [vmem:[%s3478 + $0x20] sm:$0xff]
        %v3484 = vld [vmem:[%s3478 + $0x28] sm:$0xff]
        %v3485 = vld [vmem:[%s3478 + $0x30] sm:$0xff]
        %v3486 = vld [vmem:[%s3478 + $0x38] sm:$0xff]
        %v3487 = vld [vmem:[%s3478 + $0x40] sm:$0xff]
        %v3488 = vld [vmem:[%s3478 + $0x48] sm:$0xff]
        %v3489 = vld [vmem:[%s3478 + $0x50] sm:$0xff]
        %v3490 = vld [vmem:[%s3478 + $0x58] sm:$0xff]
        %v3491 = vld [vmem:[%s3478 + $0x60] sm:$0xff]
        %v3492 = vld [vmem:[%s3478 + $0x68] sm:$0xff]
        %v3493 = vld [vmem:[%s3478 + $0x70] sm:$0xff]
        %v3494 = vld [vmem:[%s3478 + $0x78] sm:$0xff]
        %v3495 = vld [vmem:[%s3478 + $0x80] sm:$0xff]
        %v3496 = vld [vmem:[%s3478 + $0x88] sm:$0xff]
        %v3497 = vld [vmem:[%s3478 + $0x90] sm:$0xff]
        %v3498 = vld [vmem:[%s3478 + $0x98] sm:$0xff]
        %v3499 = vld [vmem:[%s3478 + $0xa0] sm:$0xff]
        %v3500 = vld [vmem:[%s3478 + $0xa8] sm:$0xff]
        %v3501 = vld [vmem:[%s3478 + $0xb0] sm:$0xff]
        %v3502 = vld [vmem:[%s3478 + $0xb8] sm:$0xff]
        %v3503 = vld [vmem:[%s3478 + $0xc0] sm:$0xff]
        %v3504 = vld [vmem:[%s3478 + $0xc8] sm:$0xff]
        %v3505 = vld [vmem:[%s3478 + $0xd0] sm:$0xff]
        %v3506 = vld [vmem:[%s3478 + $0xd8] sm:$0xff]
        %v3507 = vld [vmem:[%s3478 + $0xe0] sm:$0xff]
        %v3508 = vld [vmem:[%s3478 + $0xe8] sm:$0xff]
        %v3509 = vld [vmem:[%s3478 + $0xf0] sm:$0xff]
        %v3510 = vld [vmem:[%s3478 + $0xf8] sm:$0xff]
        %3511 = vmatpush.msra.mxu0 %v3494
        %3512 = vmatpush.msra.mxu0 %v3493
        %3513 = vmatpush.msra.mxu0 %v3492
        %3514 = vmatpush.msra.mxu0 %v3491
        %3515 = vmatpush.msra.mxu0 %v3490
        %3516 = vmatpush.msra.mxu0 %v3489
        %3517 = vmatpush.msra.mxu0 %v3488
        %3518 = vmatpush.msra.mxu0 %v3487
        %3519 = vmatpush.msra.mxu0 %v3486
        %3520 = vmatpush.msra.mxu0 %v3485
        %3521 = vmatpush.msra.mxu0 %v3484
        %3522 = vmatpush.msra.mxu0 %v3483
        %3523 = vmatpush.msra.mxu0 %v3482
        %3524 = vmatpush.msra.mxu0 %v3481
        %3525 = vmatpush.msra.mxu0 %v3480
        %3526 = vmatpush.msra.mxu0 %v3479
        %3527 = vmatmul.f32.gmra.mxu0 %v2835
        %v3528 = vpop.f32.mrf.mxu0
        %v3529 = vadd.f32 0.0, %v3528
        %3530 = vmatmul.f32.gmra.mxu0 %v2837
        %v3531 = vpop.f32.mrf.mxu0
        %v3532 = vadd.f32 0.0, %v3531
        %3533 = vmatmul.f32.gmra.mxu0 %v2839
        %v3534 = vpop.f32.mrf.mxu0
        %v3535 = vadd.f32 0.0, %v3534
        %3536 = vdwg.mxu0
        %3537 = vmatpush.msra.mxu0 %v3510
        %3538 = vmatpush.msra.mxu0 %v3509
        %3539 = vmatpush.msra.mxu0 %v3508
        %3540 = vmatpush.msra.mxu0 %v3507
        %3541 = vmatpush.msra.mxu0 %v3506
        %3542 = vmatpush.msra.mxu0 %v3505
        %3543 = vmatpush.msra.mxu0 %v3504
        %3544 = vmatpush.msra.mxu0 %v3503
        %3545 = vmatpush.msra.mxu0 %v3502
        %3546 = vmatpush.msra.mxu0 %v3501
        %3547 = vmatpush.msra.mxu0 %v3500
        %3548 = vmatpush.msra.mxu0 %v3499
        %3549 = vmatpush.msra.mxu0 %v3498
        %3550 = vmatpush.msra.mxu0 %v3497
        %3551 = vmatpush.msra.mxu0 %v3496
        %3552 = vmatpush.msra.mxu0 %v3495
        %3553 = vmatmul.f32.gmra.mxu0 %v2836
        %v3554 = vpop.f32.mrf.mxu0
        %v3555 = vadd.f32 %v3529, %v3554
        %3556 = vmatmul.f32.gmra.mxu0 %v2838
        %v3557 = vpop.f32.mrf.mxu0
        %v3558 = vadd.f32 %v3532, %v3557
        %3559 = vmatmul.f32.gmra.mxu0 %v2840
        %v3560 = vpop.f32.mrf.mxu0
        %v3561 = vadd.f32 %v3535, %v3560
        %3562 = vdwg.mxu0
        %v3563 = vadd.f32 %v3470, %v3555
        %v3564 = vadd.f32 %v3473, %v3558
        %v3565 = vadd.f32 %v3476, %v3561
        %s3566 = scalar_lea.vmem %s5, 768
        %v3567 = vld [vmem:[%s3566] sm:$0xff]
        %v3568 = vld [vmem:[%s3566 + $0x8] sm:$0xff]
        %v3569 = vld [vmem:[%s3566 + $0x10] sm:$0xff]
        %v3570 = vld [vmem:[%s3566 + $0x18] sm:$0xff]
        %v3571 = vld [vmem:[%s3566 + $0x20] sm:$0xff]
        %v3572 = vld [vmem:[%s3566 + $0x28] sm:$0xff]
        %v3573 = vld [vmem:[%s3566 + $0x30] sm:$0xff]
        %v3574 = vld [vmem:[%s3566 + $0x38] sm:$0xff]
        %v3575 = vld [vmem:[%s3566 + $0x40] sm:$0xff]
        %v3576 = vld [vmem:[%s3566 + $0x48] sm:$0xff]
        %v3577 = vld [vmem:[%s3566 + $0x50] sm:$0xff]
        %v3578 = vld [vmem:[%s3566 + $0x58] sm:$0xff]
        %v3579 = vld [vmem:[%s3566 + $0x60] sm:$0xff]
        %v3580 = vld [vmem:[%s3566 + $0x68] sm:$0xff]
        %v3581 = vld [vmem:[%s3566 + $0x70] sm:$0xff]
        %v3582 = vld [vmem:[%s3566 + $0x78] sm:$0xff]
        %v3583 = vld [vmem:[%s3566 + $0x80] sm:$0xff]
        %v3584 = vld [vmem:[%s3566 + $0x88] sm:$0xff]
        %v3585 = vld [vmem:[%s3566 + $0x90] sm:$0xff]
        %v3586 = vld [vmem:[%s3566 + $0x98] sm:$0xff]
        %v3587 = vld [vmem:[%s3566 + $0xa0] sm:$0xff]
        %v3588 = vld [vmem:[%s3566 + $0xa8] sm:$0xff]
        %v3589 = vld [vmem:[%s3566 + $0xb0] sm:$0xff]
        %v3590 = vld [vmem:[%s3566 + $0xb8] sm:$0xff]
        %v3591 = vld [vmem:[%s3566 + $0xc0] sm:$0xff]
        %v3592 = vld [vmem:[%s3566 + $0xc8] sm:$0xff]
        %v3593 = vld [vmem:[%s3566 + $0xd0] sm:$0xff]
        %v3594 = vld [vmem:[%s3566 + $0xd8] sm:$0xff]
        %v3595 = vld [vmem:[%s3566 + $0xe0] sm:$0xff]
        %v3596 = vld [vmem:[%s3566 + $0xe8] sm:$0xff]
        %v3597 = vld [vmem:[%s3566 + $0xf0] sm:$0xff]
        %v3598 = vld [vmem:[%s3566 + $0xf8] sm:$0xff]
        %3599 = vmatpush.msra.mxu0 %v3582
        %3600 = vmatpush.msra.mxu0 %v3581
        %3601 = vmatpush.msra.mxu0 %v3580
        %3602 = vmatpush.msra.mxu0 %v3579
        %3603 = vmatpush.msra.mxu0 %v3578
        %3604 = vmatpush.msra.mxu0 %v3577
        %3605 = vmatpush.msra.mxu0 %v3576
        %3606 = vmatpush.msra.mxu0 %v3575
        %3607 = vmatpush.msra.mxu0 %v3574
        %3608 = vmatpush.msra.mxu0 %v3573
        %3609 = vmatpush.msra.mxu0 %v3572
        %3610 = vmatpush.msra.mxu0 %v3571
        %3611 = vmatpush.msra.mxu0 %v3570
        %3612 = vmatpush.msra.mxu0 %v3569
        %3613 = vmatpush.msra.mxu0 %v3568
        %3614 = vmatpush.msra.mxu0 %v3567
        %3615 = vmatmul.f32.gmra.mxu0 %v3303
        %v3616 = vpop.f32.mrf.mxu0
        %v3617 = vadd.f32 0.0, %v3616
        %3618 = vmatmul.f32.gmra.mxu0 %v3305
        %v3619 = vpop.f32.mrf.mxu0
        %v3620 = vadd.f32 0.0, %v3619
        %3621 = vmatmul.f32.gmra.mxu0 %v3307
        %v3622 = vpop.f32.mrf.mxu0
        %v3623 = vadd.f32 0.0, %v3622
        %3624 = vdwg.mxu0
        %3625 = vmatpush.msra.mxu0 %v3598
        %3626 = vmatpush.msra.mxu0 %v3597
        %3627 = vmatpush.msra.mxu0 %v3596
        %3628 = vmatpush.msra.mxu0 %v3595
        %3629 = vmatpush.msra.mxu0 %v3594
        %3630 = vmatpush.msra.mxu0 %v3593
        %3631 = vmatpush.msra.mxu0 %v3592
        %3632 = vmatpush.msra.mxu0 %v3591
        %3633 = vmatpush.msra.mxu0 %v3590
        %3634 = vmatpush.msra.mxu0 %v3589
        %3635 = vmatpush.msra.mxu0 %v3588
        %3636 = vmatpush.msra.mxu0 %v3587
        %3637 = vmatpush.msra.mxu0 %v3586
        %3638 = vmatpush.msra.mxu0 %v3585
        %3639 = vmatpush.msra.mxu0 %v3584
        %3640 = vmatpush.msra.mxu0 %v3583
        %3641 = vmatmul.f32.gmra.mxu0 %v3304
        %v3642 = vpop.f32.mrf.mxu0
        %v3643 = vadd.f32 %v3617, %v3642
        %3644 = vmatmul.f32.gmra.mxu0 %v3306
        %v3645 = vpop.f32.mrf.mxu0
        %v3646 = vadd.f32 %v3620, %v3645
        %3647 = vmatmul.f32.gmra.mxu0 %v3308
        %v3648 = vpop.f32.mrf.mxu0
        %v3649 = vadd.f32 %v3623, %v3648
        %3650 = vdwg.mxu0
        %v3651 = vadd.f32 %v3563, %v3643
        %v3652 = vadd.f32 %v3564, %v3646
        %v3653 = vadd.f32 %v3565, %v3649
        %v3660 = vrot.slane %v1722, 1
        %v3661 = vrot.slane %v1724, 1
        %v3662 = vsel %vm723, %v3660, %v3661
        %v3663 = vrot.slane %v1723, 1
        %v3664 = vrot.slane %v1725, 1
        %v3665 = vsel %vm723, %v3663, %v3664
        %v3666 = vrot.slane %v1726, 1
        %v3667 = vsel %vm723, %v3661, %v3666
        %v3668 = vrot.slane %v1727, 1
        %v3669 = vsel %vm723, %v3664, %v3668
        %s3674 = scalar_lea.vmem %s5, 1024
        %v3675 = vld [vmem:[%s3674] sm:$0xff]
        %v3676 = vld [vmem:[%s3674 + $0x8] sm:$0xff]
        %v3677 = vld [vmem:[%s3674 + $0x10] sm:$0xff]
        %v3678 = vld [vmem:[%s3674 + $0x18] sm:$0xff]
        %v3679 = vld [vmem:[%s3674 + $0x20] sm:$0xff]
        %v3680 = vld [vmem:[%s3674 + $0x28] sm:$0xff]
        %v3681 = vld [vmem:[%s3674 + $0x30] sm:$0xff]
        %v3682 = vld [vmem:[%s3674 + $0x38] sm:$0xff]
        %v3683 = vld [vmem:[%s3674 + $0x40] sm:$0xff]
        %v3684 = vld [vmem:[%s3674 + $0x48] sm:$0xff]
        %v3685 = vld [vmem:[%s3674 + $0x50] sm:$0xff]
        %v3686 = vld [vmem:[%s3674 + $0x58] sm:$0xff]
        %v3687 = vld [vmem:[%s3674 + $0x60] sm:$0xff]
        %v3688 = vld [vmem:[%s3674 + $0x68] sm:$0xff]
        %v3689 = vld [vmem:[%s3674 + $0x70] sm:$0xff]
        %v3690 = vld [vmem:[%s3674 + $0x78] sm:$0xff]
        %v3691 = vld [vmem:[%s3674 + $0x80] sm:$0xff]
        %v3692 = vld [vmem:[%s3674 + $0x88] sm:$0xff]
        %v3693 = vld [vmem:[%s3674 + $0x90] sm:$0xff]
        %v3694 = vld [vmem:[%s3674 + $0x98] sm:$0xff]
        %v3695 = vld [vmem:[%s3674 + $0xa0] sm:$0xff]
        %v3696 = vld [vmem:[%s3674 + $0xa8] sm:$0xff]
        %v3697 = vld [vmem:[%s3674 + $0xb0] sm:$0xff]
        %v3698 = vld [vmem:[%s3674 + $0xb8] sm:$0xff]
        %v3699 = vld [vmem:[%s3674 + $0xc0] sm:$0xff]
        %v3700 = vld [vmem:[%s3674 + $0xc8] sm:$0xff]
        %v3701 = vld [vmem:[%s3674 + $0xd0] sm:$0xff]
        %v3702 = vld [vmem:[%s3674 + $0xd8] sm:$0xff]
        %v3703 = vld [vmem:[%s3674 + $0xe0] sm:$0xff]
        %v3704 = vld [vmem:[%s3674 + $0xe8] sm:$0xff]
        %v3705 = vld [vmem:[%s3674 + $0xf0] sm:$0xff]
        %v3706 = vld [vmem:[%s3674 + $0xf8] sm:$0xff]
        %3707 = vmatpush.msra.mxu0 %v3690
        %3708 = vmatpush.msra.mxu0 %v3689
        %3709 = vmatpush.msra.mxu0 %v3688
        %3710 = vmatpush.msra.mxu0 %v3687
        %3711 = vmatpush.msra.mxu0 %v3686
        %3712 = vmatpush.msra.mxu0 %v3685
        %3713 = vmatpush.msra.mxu0 %v3684
        %3714 = vmatpush.msra.mxu0 %v3683
        %3715 = vmatpush.msra.mxu0 %v3682
        %3716 = vmatpush.msra.mxu0 %v3681
        %3717 = vmatpush.msra.mxu0 %v3680
        %3718 = vmatpush.msra.mxu0 %v3679
        %3719 = vmatpush.msra.mxu0 %v3678
        %3720 = vmatpush.msra.mxu0 %v3677
        %3721 = vmatpush.msra.mxu0 %v3676
        %3722 = vmatpush.msra.mxu0 %v3675
        %3723 = vmatmul.f32.gmra.mxu0 %v3662
        %v3724 = vpop.f32.mrf.mxu0
        %v3725 = vadd.f32 0.0, %v3724
        %3726 = vmatmul.f32.gmra.mxu0 %v3667
        %v3727 = vpop.f32.mrf.mxu0
        %v3728 = vadd.f32 0.0, %v3727
        %3729 = vmatmul.f32.gmra.mxu0 0.0
        %v3730 = vpop.f32.mrf.mxu0
        %v3731 = vadd.f32 0.0, %v3730
        %3732 = vdwg.mxu0
        %3733 = vmatpush.msra.mxu0 %v3706
        %3734 = vmatpush.msra.mxu0 %v3705
        %3735 = vmatpush.msra.mxu0 %v3704
        %3736 = vmatpush.msra.mxu0 %v3703
        %3737 = vmatpush.msra.mxu0 %v3702
        %3738 = vmatpush.msra.mxu0 %v3701
        %3739 = vmatpush.msra.mxu0 %v3700
        %3740 = vmatpush.msra.mxu0 %v3699
        %3741 = vmatpush.msra.mxu0 %v3698
        %3742 = vmatpush.msra.mxu0 %v3697
        %3743 = vmatpush.msra.mxu0 %v3696
        %3744 = vmatpush.msra.mxu0 %v3695
        %3745 = vmatpush.msra.mxu0 %v3694
        %3746 = vmatpush.msra.mxu0 %v3693
        %3747 = vmatpush.msra.mxu0 %v3692
        %3748 = vmatpush.msra.mxu0 %v3691
        %3749 = vmatmul.f32.gmra.mxu0 %v3665
        %v3750 = vpop.f32.mrf.mxu0
        %v3751 = vadd.f32 %v3725, %v3750
        %3752 = vmatmul.f32.gmra.mxu0 %v3669
        %v3753 = vpop.f32.mrf.mxu0
        %v3754 = vadd.f32 %v3728, %v3753
        %3755 = vmatmul.f32.gmra.mxu0 0.0
        %v3756 = vpop.f32.mrf.mxu0
        %v3757 = vadd.f32 %v3731, %v3756
        %3758 = vdwg.mxu0
        %v3759 = vadd.f32 %v3651, %v3751
        %v3760 = vadd.f32 %v3652, %v3754
        %v3761 = vadd.f32 %v3653, %v3757
        %v3762 = vld [vmem:[#allocation9] sm:$0x1]
        %v3764 = vperm.slane %v3762, 0
        %v3766 = vadd.f32 %v3759, %v3764
        %v3767 = vadd.f32 %v3760, %v3764
        %v3768 = vadd.f32 %v3761, %v3764
        %vm3769 = vcmask 392192
        %3770 = vst.msk [vmem:[%s355] sm:$0xff] %vm3769, %v3766
        %3771 = vst.msk [vmem:[%s355 + $0x8] sm:$0xff] %vm3769, %v3767
        %vm3772 = vcmask 385024
        %3773 = vst.msk [vmem:[%s355 + $0x10] sm:$0x1] %vm3772, %v3768
        %p3774 = scmp.lt.s32.totalorder %s21, 1
        %s3775 = scalar_select %p3774, %s21, 1
        %s3776 = smul.addr %s3775, 3
        %s3777 = smul.addr %s3776, 8
        %s3778 = scalar_lea.vmem %s7, %s3777
        // Predicated region
        $region69: #{decoder_forward.1} parent=47 // pred_check
          %p3779 = pneg %p191
        $region70: #{decoder_forward.1} parent=47 // pred_check_branch
          %3781 = sbr.rel (%p3779) target = $region72
        $region71: #{decoder_forward.1} parent=47 // pred_region
          _
        $region72: #{decoder_forward.1} parent=47 // pred_fallthru
          _
      $region48: #{decoder_forward.1} parent=5 // pred_fallthru
        _
      %p3782 = scmp.le.s32.totalorder 2, %s16
      // Predicated region
      $region73: #{decoder_forward.1} parent=5 // pred_check
        %p3783 = pneg %p3782
      $region74: #{decoder_forward.1} parent=5 // pred_check_branch
        %3785 = sbr.rel (%p3783) target = $region76
      $region75: #{decoder_forward.1} parent=5 // pred_region
        %s3786 = ssub.s32 %s16, 2
        // Predicated region
        $region77: #{decoder_forward.1} parent=75 // pred_check
          %p3787 = pneg %p197
        $region78: #{decoder_forward.1} parent=75 // pred_check_branch
          %3789 = sbr.rel (%p3787) target = $region80
        $region79: #{decoder_forward.1} parent=75 // pred_region
          %p3790 = scmp.lt.s32.totalorder %s22, 1
          %s3791 = scalar_select %p3790, %s22, 1
          %s3792 = smul.addr %s3791, 3
          %s3793 = smul.addr %s3792, 8
          %s3794 = scalar_lea.vmem %s7, %s3793
        $region80: #{decoder_forward.1} parent=75 // pred_fallthru
          _
      $region76: #{decoder_forward.1} parent=5 // pred_fallthru
        _
    $region6: #{decoder_forward.1} parent=1 // loop_footer
      %s20 = sadd.s32 1, %s16
    $region7: #{decoder_forward.1} parent=1 // loop_footer_branch
      %15 = sbr.rel target = $region3
    $region8: #{decoder_forward.1} parent=1 // loop_exit
      _
    %3795 = vsyncpa [#allocation3], 1
    %s3796 = scalar_lea.sflag [#allocation3], 1
    %3797 = vsyncpa %s3796, 1
    %3798 = vsyncpa [#allocation5], 1
    %3799 = vsyncpa [#allocation8], 1

</llo_original>
